<compile_context>
chip_gen: v7x
topology: tpu7x:2x2x1
jax: 0.10.0
libtpu: 0.0.40
codegen_flags: <defaults>
</compile_context>

<pallas_src>
import functools

import numpy as np
import jax
import jax.numpy as jnp
from jax import lax
from jax.experimental import pallas as pl
from jax.experimental.pallas import tpu as pltpu

BN_EPS = 1e-5                      # PyTorch BatchNorm2d default
_VMEM_LIMIT = 48 * 1024 * 1024     # raised scoped-VMEM limit, < v7x 64 MiB physical


# ----------------------------------------------------------------------------
# helpers
# ----------------------------------------------------------------------------
def _const_spec(shape, grid_rank):
    """Whole-array block, always block (0,...,0): weights stay VMEM-resident."""
    nd = len(shape)
    if grid_rank == 1:
        return pl.BlockSpec(shape, lambda i: (0,) * nd)
    return pl.BlockSpec(shape, lambda i, p, t: (0,) * nd)


def _pick_lane_tiles(p):
    """(padded pixel count, lane tile) for the mix stage."""
    if p <= 2048:
        return p, p                          # single full-extent tile (legal)
    for cand in (2048, 1536, 1024, 512, 384, 256, 128):
        if p % cand == 0:
            return p, cand
    tl = 2048
    pp = -(-p // tl) * tl                    # pad; GAP sum masks the tail
    return pp, tl


# ----------------------------------------------------------------------------
# Stage 1: fused "mix" stage (all 1x1 convs + modulation + GAP partial sums)
# ----------------------------------------------------------------------------
def _mix_kernel(x_ref, y_ref, wx_ref, bx_ref, wy_ref, by_ref,
                wcx_ref, wcy_ref, bc_ref, wff_ref, bff_ref,
                xo_ref, yo_ref, s_ref, *, c1, tl, p_valid):
    t = pl.program_id(2)

    xb = x_ref[0, 0].astype(jnp.float32)     # (c1, tl)
    yb = y_ref[0, 0].astype(jnp.float32)

    # --- stacked 1x1 convs (2 dots instead of 4) ---------------------------
    tx = jnp.dot(wx_ref[...], xb, preferred_element_type=jnp.float32) + bx_ref[...]
    ty = jnp.dot(wy_ref[...], yb, preferred_element_type=jnp.float32) + by_ref[...]
    x_tr = jnp.maximum(tx[:c1], 0.0)         # relu(x_tr(x))
    x_tr2_x = tx[c1:]                        # x_tr_2(x)
    y_tr = jnp.maximum(ty[:c1], 0.0)         # relu(x_t_tr(y))
    x_tr2_y = ty[c1:]                        # x_tr_2(y)

    # cond = cat(x_tr, y_tr): the concat is never materialized, the four
    # conditioning convs are stacked into one (4c1, c1) weight per half.
    cc = (jnp.dot(wcx_ref[...], x_tr, preferred_element_type=jnp.float32)
          + jnp.dot(wcy_ref[...], y_tr, preferred_element_type=jnp.float32)
          + bc_ref[...])                     # (4*c1, tl)
    alpha, beta = cc[:c1], cc[c1:2 * c1]
    alpha_c, beta_c = cc[2 * c1:3 * c1], cc[3 * c1:]

    y_feat = jnp.maximum((alpha + 1.0) * x_tr2_y + beta, 0.0)
    x_feat = jnp.maximum((alpha_c + 1.0) * x_tr2_x + beta_c, 0.0)

    y_ff = jnp.dot(wff_ref[0], y_feat, preferred_element_type=jnp.float32) + bff_ref[0]
    x_ff = jnp.dot(wff_ref[1], x_feat, preferred_element_type=jnp.float32) + bff_ref[1]

    x_new = xb + 0.1 * y_ff
    y_new = yb + 0.1 * x_ff
    xo_ref[0, 0] = x_new.astype(xo_ref.dtype)
    yo_ref[0, 0] = y_new.astype(yo_ref.dtype)

    # --- GAP partial sum of fdx = x_new - y_new  (vy = -vx since tanh is odd)
    diff = x_new - y_new
    if p_valid is not None:                  # static flag: pixel dim is padded
        pix = t * tl + lax.broadcasted_iota(jnp.int32, (1, tl), 1)
        diff = jnp.where(pix < p_valid, diff, 0.0)

    @pl.when(t == 0)
    def _():
        s_ref[...] = jnp.zeros_like(s_ref)

    s_ref[0, 0] += jnp.sum(diff, axis=1, keepdims=True)


def _mix_stage(x_ph, y_ph, wx, bx, wy, by, wcx, wcy, bc, wff, bff, *, tl, p_valid):
    n, nph, c1, pp = x_ph.shape
    nt = pp // tl
    grid = (n, nph, nt)
    act_spec = pl.BlockSpec((1, 1, c1, tl), lambda i, p, t: (i, p, 0, t))
    sum_spec = pl.BlockSpec((1, 1, c1, 1), lambda i, p, t: (i, p, 0, 0))
    kernel = functools.partial(_mix_kernel, c1=c1, tl=tl, p_valid=p_valid)
    return pl.pallas_call(
        kernel,
        out_shape=(jax.ShapeDtypeStruct((n, nph, c1, pp), jnp.bfloat16),
                   jax.ShapeDtypeStruct((n, nph, c1, pp), jnp.bfloat16),
                   jax.ShapeDtypeStruct((n, nph, c1, 1), jnp.float32)),
        grid_spec=pltpu.PrefetchScalarGridSpec(
            num_scalar_prefetch=0,
            grid=grid,
            in_specs=[act_spec, act_spec,
                      _const_spec(wx.shape, 3), _const_spec(bx.shape, 3),
                      _const_spec(wy.shape, 3), _const_spec(by.shape, 3),
                      _const_spec(wcx.shape, 3), _const_spec(wcy.shape, 3),
                      _const_spec(bc.shape, 3),
                      _const_spec(wff.shape, 3), _const_spec(bff.shape, 3)],
            out_specs=(act_spec, act_spec, sum_spec)),
        compiler_params=pltpu.CompilerParams(
            dimension_semantics=("parallel", "parallel", "arbitrary"),
            vmem_limit_bytes=_VMEM_LIMIT),
    )(x_ph, y_ph, wx, bx, wy, by, wcx, wcy, bc, wff, bff)


# ----------------------------------------------------------------------------
# Stage 2: fused downsample stage
#   out_x = SiLU(BN(conv1_1x1_s2(x))) + SiLU(BN(conv2_3x3_s2(x + vx*y)))
#   out_y = SiLU(BN(conv1t_1x1_s2(y))) + SiLU(BN(conv2t_3x3_s2(y - vx*x)))
# Inputs arrive in phase-quadrant layout (N, 4, c1, Ho*Wo); the 9 stride-2
# taps are built in VMEM from the 4 phase planes (no HBM im2col).
# ----------------------------------------------------------------------------
def _down_kernel(x_ref, y_ref, vx_ref, w1x_ref, w2x_ref, w1y_ref, w2y_ref,
                 sc_ref, bi_ref, ox_ref, oy_ref, *, wo):
    pp = x_ref.shape[-1]
    x2 = x_ref[0].astype(jnp.float32)        # (4, c1, pp): phases ee, eo, oe, oo
    y2 = y_ref[0].astype(jnp.float32)
    vx = vx_ref[0][None]                     # (1, c1, 1)

    # residual mixing at pixel resolution (vy = -vx, tanh is odd)
    xr = x2 + vx * y2
    yr = y2 - vx * x2

    # boundary masks over the row-major (ho, wo) flattening of each phase
    pix = lax.broadcasted_iota(jnp.int32, (1, pp), 1)
    ok_col = (pix % wo) != 0                 # column j-1 exists
    ok_row = pix >= wo                       # row i-1 exists
    ok_both = jnp.logical_and(ok_row, ok_col)

    def shifted(plane, s, ok):               # value at pix - s, zero outside image
        rolled = jnp.concatenate([plane[:, pp - s:], plane[:, :pp - s]], axis=1)
        return jnp.where(ok, rolled, 0.0)

    def taps9(q):                            # (4, c1, pp) -> (9*c1, pp), tap-major
        ee, eo, oe, oo = q[0], q[1], q[2], q[3]
        return jnp.concatenate(
            [shifted(oo, wo + 1, ok_both),   # (kh,kw)=(0,0): in[2i-1, 2j-1]
             shifted(oe, wo, ok_row),        # (0,1): in[2i-1, 2j]
             shifted(oo, wo, ok_row),        # (0,2): in[2i-1, 2j+1]
             shifted(eo, 1, ok_col),         # (1,0): in[2i,   2j-1]
             ee,                             # (1,1): in[2i,   2j]
             eo,                             # (1,2): in[2i,   2j+1]
             shifted(oo, 1, ok_col),         # (2,0): in[2i+1, 2j-1]
             oe,                             # (2,1): in[2i+1, 2j]
             oo],                            # (2,2): in[2i+1, 2j+1]
            axis=0)

    def cbs(w, v, i):                        # conv (folded BN) + SiLU
        z = jnp.dot(w, v, preferred_element_type=jnp.float32)
        z = z * sc_ref[i] + bi_ref[i]
        return z * pl.reciprocal(1.0 + jnp.exp(-z), approx=True)

    # The 1x1 stride-2 conv touches only the even/even phase (its center tap).
    ox_ref[0] = (cbs(w1x_ref[...], x2[0], 0)
                 + cbs(w2x_ref[...], taps9(xr), 1)).astype(ox_ref.dtype)
    oy_ref[0] = (cbs(w1y_ref[...], y2[0], 2)
                 + cbs(w2y_ref[...], taps9(yr), 3)).astype(oy_ref.dtype)


def _down_stage(x_ph, y_ph, vx, w1x, w2x, w1y, w2y, sc, bi, *, wo):
    n, nph, c1, pp = x_ph.shape
    c2 = w1x.shape[0]
    act_spec = pl.BlockSpec((1, nph, c1, pp), lambda i: (i, 0, 0, 0))
    vx_spec = pl.BlockSpec((1, c1, 1), lambda i: (i, 0, 0))
    out_spec = pl.BlockSpec((1, c2, pp), lambda i: (i, 0, 0))
    kernel = functools.partial(_down_kernel, wo=wo)
    return pl.pallas_call(
        kernel,
        out_shape=(jax.ShapeDtypeStruct((n, c2, pp), jnp.float32),
                   jax.ShapeDtypeStruct((n, c2, pp), jnp.float32)),
        grid_spec=pltpu.PrefetchScalarGridSpec(
            num_scalar_prefetch=0,
            grid=(n,),
            in_specs=[act_spec, act_spec, vx_spec,
                      _const_spec(w1x.shape, 1), _const_spec(w2x.shape, 1),
                      _const_spec(w1y.shape, 1), _const_spec(w2y.shape, 1),
                      _const_spec(sc.shape, 1), _const_spec(bi.shape, 1)],
            out_specs=(out_spec, out_spec)),
        compiler_params=pltpu.CompilerParams(
            dimension_semantics=("parallel",),
            vmem_limit_bytes=_VMEM_LIMIT),
    )(x_ph, y_ph, vx, w1x, w2x, w1y, w2y, sc, bi)


# ----------------------------------------------------------------------------
# Weight packing
# ----------------------------------------------------------------------------
def _pack_mix(params, c1):
    def w2d(p_):
        return p_["w"][:, :, 0, 0]

    def b2d(p_):
        return p_["b"][:, None]

    wx = jnp.concatenate([w2d(params["x_tr"]), w2d(params["x_tr_2"])], axis=0)
    bx = jnp.concatenate([b2d(params["x_tr"]), b2d(params["x_tr_2"])], axis=0)
    wy = jnp.concatenate([w2d(params["x_t_tr"]), w2d(params["x_tr_2"])], axis=0)
    by = jnp.concatenate([b2d(params["x_t_tr"]), b2d(params["x_tr_2"])], axis=0)

    order = ("tr_alpha", "tr_beta", "tr_alpha_copy", "tr_beta_copy")
    wc = [w2d(params[nm]) for nm in order]                   # each (c1, 2*c1)
    wcx = jnp.concatenate([wi[:, :c1] for wi in wc], axis=0)  # (4c1, c1)
    wcy = jnp.concatenate([wi[:, c1:] for wi in wc], axis=0)  # (4c1, c1)
    bc = jnp.concatenate([b2d(params[nm]) for nm in order], axis=0)

    wff = jnp.stack([w2d(params["y_feat_fuse"]), w2d(params["x_feat_fuse"])])
    bff = jnp.stack([b2d(params["y_feat_fuse"]), b2d(params["x_feat_fuse"])])
    return wx, bx, wy, by, wcx, wcy, bc, wff, bff


def _pack_down(params, c1):
    c2 = 2 * c1

    def w1(p_):                              # (2c1, c1) 1x1 weight
        return p_["w"][:, :, 0, 0]

    def w3(p_):                              # (2c1, 9c1), col = tap*c1 + cin
        return jnp.transpose(p_["w"], (0, 2, 3, 1)).reshape(c2, 9 * c1)

    w1x, w2x = w1(params["conv1"]), w3(params["conv2"])
    w1y, w2y = w1(params["conv1_t"]), w3(params["conv2_t"])
    order = ("conv1", "conv2", "conv1_t", "conv2_t")
    sc = jnp.stack([params[nm]["scale"][:, None] for nm in order])  # (4, 2c1, 1)
    bi = jnp.stack([params[nm]["bias"][:, None] for nm in order])   # (4, 2c1, 1)
    return w1x, w2x, w1y, w2y, sc, bi


# ----------------------------------------------------------------------------
# Wrapper
# ----------------------------------------------------------------------------
def plard_forward(params, x_nchw, y_nchw):
    n, c1, h, w = x_nchw.shape
    assert h % 2 == 0 and w % 2 == 0, "even spatial dims expected (stride-2 convs)"
    ho, wo = h // 2, w // 2
    assert ho >= 2 and wo >= 2
    p = ho * wo
    pp, tl = _pick_lane_tiles(p)

    # Phase-quadrant layout (n, 4, c1, ho*wo), phase = 2*(row&1) + (col&1).
    # One XLA transpose pass per input; activations cross HBM as bf16.
    def to_phase(t):
        t6 = t.astype(jnp.float32).reshape(n, c1, ho, 2, wo, 2)
        t6 = jnp.transpose(t6, (0, 3, 5, 1, 2, 4))           # (n, rp, cp, c1, ho, wo)
        t4 = t6.reshape(n, 4, c1, p).astype(jnp.bfloat16)
        if pp != p:
            t4 = jnp.pad(t4, ((0, 0), (0, 0), (0, 0), (0, pp - p)))
        return t4

    x_ph = to_phase(x_nchw)
    y_ph = to_phase(y_nchw)

    # ---- fused mix stage ----
    wx, bx, wy, by, wcx, wcy, bc, wff, bff = _pack_mix(params, c1)
    x_new, y_new, fdx_sum = _mix_stage(
        x_ph, y_ph, wx, bx, wy, by, wcx, wcy, bc, wff, bff,
        tl=tl, p_valid=(p if pp != p else None))

    # GAP + tanh on a tiny (n, c1) tensor; vy = -vx because tanh is odd.
    vx = jnp.tanh(jnp.sum(fdx_sum, axis=1) / float(h * w))    # (n, c1, 1)

    # ---- fused downsample stage ----
    w1x, w2x, w1y, w2y, sc, bi = _pack_down(params, c1)
    out_x, out_y = _down_stage(x_new, y_new, vx, w1x, w2x, w1y, w2y, sc, bi, wo=wo)

    out_x = out_x[:, :, :p].reshape(n, 2 * c1, ho, wo)
    out_y = out_y[:, :, :p].reshape(n, 2 * c1, ho, wo)
    return out_x, out_y


# ----------------------------------------------------------------------------
# Deterministic synthetic parameters (shapes match the PyTorch module, eval mode)
# ----------------------------------------------------------------------------
def _conv1x1b(key, cin, cout):
    kw, kb = jax.random.split(key)
    w = jax.random.normal(kw, (cout, cin, 1, 1), jnp.float32) / np.sqrt(cin)
    b = 0.1 * jax.random.normal(kb, (cout,), jnp.float32)
    return {"w": w, "b": b}


def _conv_bn_act(key, cin, cout, k, s):
    kw, kg, kb, km, kv = jax.random.split(key, 5)
    w = jax.random.normal(kw, (cout, cin, k, k), jnp.float32) / np.sqrt(cin * k * k)
    gamma = 1.0 + 0.1 * jax.random.normal(kg, (cout,), jnp.float32)
    beta = 0.1 * jax.random.normal(kb, (cout,), jnp.float32)
    mean = 0.1 * jax.random.normal(km, (cout,), jnp.float32)
    var = jax.random.uniform(kv, (cout,), jnp.float32, minval=0.5, maxval=1.5)
    scale = gamma / jnp.sqrt(var + BN_EPS)
    bias = beta - mean * scale
    return {"w": w, "scale": scale, "bias": bias, "k": k, "s": s}


def make_params(key, c1):
    names1 = ("x_tr", "x_t_tr", "x_tr_2", "x_t_tr_2", "x_feat_fuse", "y_feat_fuse")
    names2 = ("tr_alpha", "tr_beta", "tr_alpha_copy", "tr_beta_copy")
    keys = jax.random.split(key, len(names1) + len(names2) + 4)
    p, i = {}, 0
    for nm in names1:                        # x_t_tr_2 exists but is unused in forward
        p[nm] = _conv1x1b(keys[i], c1, c1); i += 1
    for nm in names2:
        p[nm] = _conv1x1b(keys[i], 2 * c1, c1); i += 1
    p["conv1"] = _conv_bn_act(keys[i], c1, 2 * c1, 1, 2); i += 1
    p["conv1_t"] = _conv_bn_act(keys[i], c1, 2 * c1, 1, 2); i += 1
    p["conv2"] = _conv_bn_act(keys[i], c1, 2 * c1, 3, 2); i += 1
    p["conv2_t"] = _conv_bn_act(keys[i], c1, 2 * c1, 3, 2); i += 1
    return p


# ----------------------------------------------------------------------------
# Pure-JAX reference (mirrors the PyTorch module in eval mode)
# ----------------------------------------------------------------------------
def _ref_conv1x1(x, p):
    y = lax.conv_general_dilated(x, p["w"], (1, 1), [(0, 0), (0, 0)],
                                 dimension_numbers=("NCHW", "OIHW", "NCHW"),
                                 precision=lax.Precision.HIGHEST)
    return y + p["b"][None, :, None, None]


def _ref_conv_bn_silu(x, p):
    k, s = p["k"], p["s"]
    pad = k // 2
    y = lax.conv_general_dilated(x, p["w"], (s, s), [(pad, pad), (pad, pad)],
                                 dimension_numbers=("NCHW", "OIHW", "NCHW"),
                                 precision=lax.Precision.HIGHEST)
    y = y * p["scale"][None, :, None, None] + p["bias"][None, :, None, None]
    return y * jax.nn.sigmoid(y)


def plard_reference(params, x, y):
    relu = jax.nn.relu
    x_tr = relu(_ref_conv1x1(x, params["x_tr"]))
    y_tr = relu(_ref_conv1x1(y, params["x_t_tr"]))
    cond = jnp.concatenate([x_tr, y_tr], axis=1)
    alpha = _ref_conv1x1(cond, params["tr_alpha"])
    beta = _ref_conv1x1(cond, params["tr_beta"])
    alpha_c = _ref_conv1x1(cond, params["tr_alpha_copy"])
    beta_c = _ref_conv1x1(cond, params["tr_beta_copy"])
    y_feat = relu((alpha + 1.0) * _ref_conv1x1(y, params["x_tr_2"]) + beta)
    y_feat_fuse = _ref_conv1x1(y_feat, params["y_feat_fuse"])
    x_feat = relu((alpha_c + 1.0) * _ref_conv1x1(x, params["x_tr_2"]) + beta_c)
    x_feat_fuse = _ref_conv1x1(x_feat, params["x_feat_fuse"])
    y2 = y + 0.1 * x_feat_fuse
    x2 = x + 0.1 * y_feat_fuse
    vx = jnp.tanh(jnp.mean(x2 - y2, axis=(2, 3), keepdims=True))
    x_res = x2 + vx * y2
    vy = jnp.tanh(jnp.mean(y2 - x2, axis=(2, 3), keepdims=True))
    y_res = y2 + vy * x2
    out_x = _ref_conv_bn_silu(x2, params["conv1"]) + _ref_conv_bn_silu(x_res, params["conv2"])
    out_y = _ref_conv_bn_silu(y2, params["conv1_t"]) + _ref_conv_bn_silu(y_res, params["conv2_t"])
    return out_x, out_y


# ----------------------------------------------------------------------------
if __name__ == "__main__":
    N, C1, H, W = 2, 4, 16, 16

    root = jax.random.PRNGKey(0)
    kx, ky, kp = jax.random.split(root, 3)
    x = jax.random.normal(kx, (N, C1, H, W), jnp.float32)
    y = jax.random.normal(ky, (N, C1, H, W), jnp.float32)
    params = make_params(kp, C1)

    out_x, out_y = jax.jit(plard_forward)(params, x, y)
    out_x, out_y = jax.block_until_ready((out_x, out_y))

    ref_x, ref_y = plard_reference(params, x, y)
    ref_x, ref_y = jax.block_until_ready((ref_x, ref_y))

    assert out_x.shape == (N, 2 * C1, H // 2, W // 2), out_x.shape
    assert out_y.shape == (N, 2 * C1, H // 2, W // 2), out_y.shape
    # bf16 activation I/O + approx-EUP sigmoid => slightly relaxed tolerance.
    np.testing.assert_allclose(np.asarray(out_x), np.asarray(ref_x), rtol=2e-2, atol=2e-2)
    np.testing.assert_allclose(np.asarray(out_y), np.asarray(ref_y), rtol=2e-2, atol=2e-2)
    print("KERNEL_OK")
</pallas_src>

<mosaic_0001>
module attributes {stable_mosaic.version = 11 : i64} {
  func.func @_mix_kernel(%arg0: i32, %arg1: i32, %arg2: i32, %arg3: memref<1x1x4x64xbf16, #tpu.memory_space<vmem>>, %arg4: memref<1x1x4x64xbf16, #tpu.memory_space<vmem>>, %arg5: memref<8x4xf32, #tpu.memory_space<vmem>>, %arg6: memref<8x1xf32, #tpu.memory_space<vmem>>, %arg7: memref<8x4xf32, #tpu.memory_space<vmem>>, %arg8: memref<8x1xf32, #tpu.memory_space<vmem>>, %arg9: memref<16x4xf32, #tpu.memory_space<vmem>>, %arg10: memref<16x4xf32, #tpu.memory_space<vmem>>, %arg11: memref<16x1xf32, #tpu.memory_space<vmem>>, %arg12: memref<2x4x4xf32, #tpu.memory_space<vmem>>, %arg13: memref<2x4x1xf32, #tpu.memory_space<vmem>>, %arg14: memref<1x1x4x64xbf16, #tpu.memory_space<vmem>>, %arg15: memref<1x1x4x64xbf16, #tpu.memory_space<vmem>>, %arg16: memref<1x1x4x1xf32, #tpu.memory_space<vmem>>) attributes {dimension_semantics = [#tpu.dimension_semantics<parallel>, #tpu.dimension_semantics<parallel>, #tpu.dimension_semantics<arbitrary>], iteration_bounds = array<i64: 2, 4, 1>, scalar_prefetch = 0 : i64, scratch_operands = 0 : i64, tpu.core_type = #tpu.core_type<tc>, window_params = [{transform_indices = @transform_0, window_bounds = array<i64: 1, 1, 4, 64>}, {transform_indices = @transform_1, window_bounds = array<i64: 1, 1, 4, 64>}, {pipeline_mode = #tpu.pipeline_mode<synchronous>, transform_indices = @transform_2, window_bounds = array<i64: 8, 4>}, {pipeline_mode = #tpu.pipeline_mode<synchronous>, transform_indices = @transform_3, window_bounds = array<i64: 8, 1>}, {pipeline_mode = #tpu.pipeline_mode<synchronous>, transform_indices = @transform_4, window_bounds = array<i64: 8, 4>}, {pipeline_mode = #tpu.pipeline_mode<synchronous>, transform_indices = @transform_5, window_bounds = array<i64: 8, 1>}, {pipeline_mode = #tpu.pipeline_mode<synchronous>, transform_indices = @transform_6, window_bounds = array<i64: 16, 4>}, {pipeline_mode = #tpu.pipeline_mode<synchronous>, transform_indices = @transform_7, window_bounds = array<i64: 16, 4>}, {pipeline_mode = #tpu.pipeline_mode<synchronous>, transform_indices = @transform_8, window_bounds = array<i64: 16, 1>}, {pipeline_mode = #tpu.pipeline_mode<synchronous>, transform_indices = @transform_9, window_bounds = array<i64: 2, 4, 4>}, {pipeline_mode = #tpu.pipeline_mode<synchronous>, transform_indices = @transform_10, window_bounds = array<i64: 2, 4, 1>}, {transform_indices = @transform_11, window_bounds = array<i64: 1, 1, 4, 64>}, {transform_indices = @transform_12, window_bounds = array<i64: 1, 1, 4, 64>}, {transform_indices = @transform_13, window_bounds = array<i64: 1, 1, 4, 1>}]} {
    %c0 = arith.constant 0 : index
    %c0_0 = arith.constant 0 : index
    %c0_1 = arith.constant 0 : index
    %c0_2 = arith.constant 0 : index
    %0 = vector.load %arg3[%c0, %c0_0, %c0_1, %c0_2] : memref<1x1x4x64xbf16, #tpu.memory_space<vmem>>, vector<1x1x4x64xbf16>
    %1 = vector.shape_cast %0 : vector<1x1x4x64xbf16> to vector<4x64xbf16>
    %2 = arith.extf %1 : vector<4x64xbf16> to vector<4x64xf32>
    %c0_3 = arith.constant 0 : index
    %c0_4 = arith.constant 0 : index
    %c0_5 = arith.constant 0 : index
    %c0_6 = arith.constant 0 : index
    %3 = vector.load %arg4[%c0_3, %c0_4, %c0_5, %c0_6] : memref<1x1x4x64xbf16, #tpu.memory_space<vmem>>, vector<1x1x4x64xbf16>
    %4 = vector.shape_cast %3 : vector<1x1x4x64xbf16> to vector<4x64xbf16>
    %5 = arith.extf %4 : vector<4x64xbf16> to vector<4x64xf32>
    %c0_7 = arith.constant 0 : index
    %c0_8 = arith.constant 0 : index
    %6 = vector.load %arg5[%c0_7, %c0_8] : memref<8x4xf32, #tpu.memory_space<vmem>>, vector<8x4xf32>
    %cst = arith.constant dense<0.000000e+00> : vector<8x64xf32>
    %7 = tpu.matmul %6, %2, %cst {dimension_numbers = #tpu.dot_dimension_numbers<[1], [0], [0], [1], [0, 0, 1, 1], [], []>} : vector<8x4xf32>, vector<4x64xf32>, vector<8x64xf32> -> vector<8x64xf32>
    %c0_9 = arith.constant 0 : index
    %c0_10 = arith.constant 0 : index
    %8 = vector.load %arg6[%c0_9, %c0_10] : memref<8x1xf32, #tpu.memory_space<vmem>>, vector<8x1xf32>
    %9 = vector.broadcast %8 : vector<8x1xf32> to vector<8x64xf32>
    %10 = arith.addf %7, %9 : vector<8x64xf32>
    %c0_11 = arith.constant 0 : index
    %c0_12 = arith.constant 0 : index
    %11 = vector.load %arg7[%c0_11, %c0_12] : memref<8x4xf32, #tpu.memory_space<vmem>>, vector<8x4xf32>
    %cst_13 = arith.constant dense<0.000000e+00> : vector<8x64xf32>
    %12 = tpu.matmul %11, %5, %cst_13 {dimension_numbers = #tpu.dot_dimension_numbers<[1], [0], [0], [1], [0, 0, 1, 1], [], []>} : vector<8x4xf32>, vector<4x64xf32>, vector<8x64xf32> -> vector<8x64xf32>
    %c0_14 = arith.constant 0 : index
    %c0_15 = arith.constant 0 : index
    %13 = vector.load %arg8[%c0_14, %c0_15] : memref<8x1xf32, #tpu.memory_space<vmem>>, vector<8x1xf32>
    %14 = vector.broadcast %13 : vector<8x1xf32> to vector<8x64xf32>
    %15 = arith.addf %12, %14 : vector<8x64xf32>
    %16 = vector.extract_strided_slice %10 {offsets = [0, 0], sizes = [4, 64], strides = [1, 1]} : vector<8x64xf32> to vector<4x64xf32>
    %cst_16 = arith.constant 0.000000e+00 : f32
    %17 = vector.broadcast %cst_16 : f32 to vector<4x64xf32>
    %18 = arith.maximumf %16, %17 : vector<4x64xf32>
    %19 = vector.extract_strided_slice %10 {offsets = [4, 0], sizes = [4, 64], strides = [1, 1]} : vector<8x64xf32> to vector<4x64xf32>
    %20 = vector.extract_strided_slice %15 {offsets = [0, 0], sizes = [4, 64], strides = [1, 1]} : vector<8x64xf32> to vector<4x64xf32>
    %cst_17 = arith.constant 0.000000e+00 : f32
    %21 = vector.broadcast %cst_17 : f32 to vector<4x64xf32>
    %22 = arith.maximumf %20, %21 : vector<4x64xf32>
    %23 = vector.extract_strided_slice %15 {offsets = [4, 0], sizes = [4, 64], strides = [1, 1]} : vector<8x64xf32> to vector<4x64xf32>
    %c0_18 = arith.constant 0 : index
    %c0_19 = arith.constant 0 : index
    %24 = vector.load %arg9[%c0_18, %c0_19] : memref<16x4xf32, #tpu.memory_space<vmem>>, vector<16x4xf32>
    %cst_20 = arith.constant dense<0.000000e+00> : vector<16x64xf32>
    %25 = tpu.matmul %24, %18, %cst_20 {dimension_numbers = #tpu.dot_dimension_numbers<[1], [0], [0], [1], [0, 0, 1, 1], [], []>} : vector<16x4xf32>, vector<4x64xf32>, vector<16x64xf32> -> vector<16x64xf32>
    %c0_21 = arith.constant 0 : index
    %c0_22 = arith.constant 0 : index
    %26 = vector.load %arg10[%c0_21, %c0_22] : memref<16x4xf32, #tpu.memory_space<vmem>>, vector<16x4xf32>
    %cst_23 = arith.constant dense<0.000000e+00> : vector<16x64xf32>
    %27 = tpu.matmul %26, %22, %cst_23 {dimension_numbers = #tpu.dot_dimension_numbers<[1], [0], [0], [1], [0, 0, 1, 1], [], []>} : vector<16x4xf32>, vector<4x64xf32>, vector<16x64xf32> -> vector<16x64xf32>
    %28 = arith.addf %25, %27 : vector<16x64xf32>
    %c0_24 = arith.constant 0 : index
    %c0_25 = arith.constant 0 : index
    %29 = vector.load %arg11[%c0_24, %c0_25] : memref<16x1xf32, #tpu.memory_space<vmem>>, vector<16x1xf32>
    %30 = vector.broadcast %29 : vector<16x1xf32> to vector<16x64xf32>
    %31 = arith.addf %28, %30 : vector<16x64xf32>
    %32 = vector.extract_strided_slice %31 {offsets = [0, 0], sizes = [4, 64], strides = [1, 1]} : vector<16x64xf32> to vector<4x64xf32>
    %33 = vector.extract_strided_slice %31 {offsets = [4, 0], sizes = [4, 64], strides = [1, 1]} : vector<16x64xf32> to vector<4x64xf32>
    %34 = vector.extract_strided_slice %31 {offsets = [8, 0], sizes = [4, 64], strides = [1, 1]} : vector<16x64xf32> to vector<4x64xf32>
    %35 = vector.extract_strided_slice %31 {offsets = [12, 0], sizes = [4, 64], strides = [1, 1]} : vector<16x64xf32> to vector<4x64xf32>
    %cst_26 = arith.constant 1.000000e+00 : f32
    %36 = vector.broadcast %cst_26 : f32 to vector<4x64xf32>
    %37 = arith.addf %32, %36 : vector<4x64xf32>
    %38 = arith.mulf %37, %23 : vector<4x64xf32>
    %39 = arith.addf %38, %33 : vector<4x64xf32>
    %cst_27 = arith.constant 0.000000e+00 : f32
    %40 = vector.broadcast %cst_27 : f32 to vector<4x64xf32>
    %41 = arith.maximumf %39, %40 : vector<4x64xf32>
    %cst_28 = arith.constant 1.000000e+00 : f32
    %42 = vector.broadcast %cst_28 : f32 to vector<4x64xf32>
    %43 = arith.addf %34, %42 : vector<4x64xf32>
    %44 = arith.mulf %43, %19 : vector<4x64xf32>
    %45 = arith.addf %44, %35 : vector<4x64xf32>
    %cst_29 = arith.constant 0.000000e+00 : f32
    %46 = vector.broadcast %cst_29 : f32 to vector<4x64xf32>
    %47 = arith.maximumf %45, %46 : vector<4x64xf32>
    %c0_30 = arith.constant 0 : index
    %c0_31 = arith.constant 0 : index
    %c0_32 = arith.constant 0 : index
    %48 = vector.load %arg12[%c0_30, %c0_31, %c0_32] : memref<2x4x4xf32, #tpu.memory_space<vmem>>, vector<1x4x4xf32>
    %49 = vector.shape_cast %48 : vector<1x4x4xf32> to vector<4x4xf32>
    %cst_33 = arith.constant dense<0.000000e+00> : vector<4x64xf32>
    %50 = tpu.matmul %49, %41, %cst_33 {dimension_numbers = #tpu.dot_dimension_numbers<[1], [0], [0], [1], [0, 0, 1, 1], [], []>} : vector<4x4xf32>, vector<4x64xf32>, vector<4x64xf32> -> vector<4x64xf32>
    %c0_34 = arith.constant 0 : index
    %c0_35 = arith.constant 0 : index
    %c0_36 = arith.constant 0 : index
    %51 = vector.load %arg13[%c0_34, %c0_35, %c0_36] : memref<2x4x1xf32, #tpu.memory_space<vmem>>, vector<1x4x1xf32>
    %52 = vector.shape_cast %51 : vector<1x4x1xf32> to vector<4x1xf32>
    %53 = vector.broadcast %52 : vector<4x1xf32> to vector<4x64xf32>
    %54 = arith.addf %50, %53 : vector<4x64xf32>
    %c1 = arith.constant 1 : index
    %c0_37 = arith.constant 0 : index
    %c0_38 = arith.constant 0 : index
    %55 = vector.load %arg12[%c1, %c0_37, %c0_38] : memref<2x4x4xf32, #tpu.memory_space<vmem>>, vector<1x4x4xf32>
    %56 = vector.shape_cast %55 : vector<1x4x4xf32> to vector<4x4xf32>
    %cst_39 = arith.constant dense<0.000000e+00> : vector<4x64xf32>
    %57 = tpu.matmul %56, %47, %cst_39 {dimension_numbers = #tpu.dot_dimension_numbers<[1], [0], [0], [1], [0, 0, 1, 1], [], []>} : vector<4x4xf32>, vector<4x64xf32>, vector<4x64xf32> -> vector<4x64xf32>
    %c1_40 = arith.constant 1 : index
    %c0_41 = arith.constant 0 : index
    %c0_42 = arith.constant 0 : index
    %58 = vector.load %arg13[%c1_40, %c0_41, %c0_42] : memref<2x4x1xf32, #tpu.memory_space<vmem>>, vector<1x4x1xf32>
    %59 = vector.shape_cast %58 : vector<1x4x1xf32> to vector<4x1xf32>
    %60 = vector.broadcast %59 : vector<4x1xf32> to vector<4x64xf32>
    %61 = arith.addf %57, %60 : vector<4x64xf32>
    %cst_43 = arith.constant 1.000000e-01 : f32
    %62 = vector.broadcast %cst_43 : f32 to vector<4x64xf32>
    %63 = arith.mulf %62, %54 : vector<4x64xf32>
    %64 = arith.addf %2, %63 : vector<4x64xf32>
    %cst_44 = arith.constant 1.000000e-01 : f32
    %65 = vector.broadcast %cst_44 : f32 to vector<4x64xf32>
    %66 = arith.mulf %65, %61 : vector<4x64xf32>
    %67 = arith.addf %5, %66 : vector<4x64xf32>
    %68 = arith.truncf %64 : vector<4x64xf32> to vector<4x64xbf16>
    %c0_45 = arith.constant 0 : index
    %c0_46 = arith.constant 0 : index
    %c0_47 = arith.constant 0 : index
    %c0_48 = arith.constant 0 : index
    %69 = vector.load %arg14[%c0_45, %c0_46, %c0_47, %c0_48] : memref<1x1x4x64xbf16, #tpu.memory_space<vmem>>, vector<1x1x4x64xbf16>
    %70 = vector.shape_cast %69 : vector<1x1x4x64xbf16> to vector<4x64xbf16>
    %71 = vector.shape_cast %68 : vector<4x64xbf16> to vector<1x1x4x64xbf16>
    tpu.vector_store %arg14[%c0_45, %c0_46, %c0_47, %c0_48], %71 {strides = array<i32>} : memref<1x1x4x64xbf16, #tpu.memory_space<vmem>>, vector<1x1x4x64xbf16>,
    %72 = arith.truncf %67 : vector<4x64xf32> to vector<4x64xbf16>
    %c0_49 = arith.constant 0 : index
    %c0_50 = arith.constant 0 : index
    %c0_51 = arith.constant 0 : index
    %c0_52 = arith.constant 0 : index
    %73 = vector.load %arg15[%c0_49, %c0_50, %c0_51, %c0_52] : memref<1x1x4x64xbf16, #tpu.memory_space<vmem>>, vector<1x1x4x64xbf16>
    %74 = vector.shape_cast %73 : vector<1x1x4x64xbf16> to vector<4x64xbf16>
    %75 = vector.shape_cast %72 : vector<4x64xbf16> to vector<1x1x4x64xbf16>
    tpu.vector_store %arg15[%c0_49, %c0_50, %c0_51, %c0_52], %75 {strides = array<i32>} : memref<1x1x4x64xbf16, #tpu.memory_space<vmem>>, vector<1x1x4x64xbf16>,
    %76 = arith.subf %64, %67 : vector<4x64xf32>
    %c0_i32 = arith.constant 0 : i32
    %77 = arith.cmpi eq, %arg2, %c0_i32 : i32
    %78 = arith.extui %77 : i1 to i32
    %c0_i32_53 = arith.constant 0 : i32
    %79 = arith.cmpi ne, %78, %c0_i32_53 : i32
    scf.if %79 {
      %cst_63 = arith.constant 0.000000e+00 : f32
      %88 = vector.broadcast %cst_63 : f32 to vector<1x1x4x1xf32>
      %c0_64 = arith.constant 0 : index
      %c0_65 = arith.constant 0 : index
      %c0_66 = arith.constant 0 : index
      %c0_67 = arith.constant 0 : index
      %89 = vector.load %arg16[%c0_64, %c0_65, %c0_66, %c0_67] : memref<1x1x4x1xf32, #tpu.memory_space<vmem>>, vector<1x1x4x1xf32>
      tpu.vector_store %arg16[%c0_64, %c0_65, %c0_66, %c0_67], %88 {strides = array<i32>} : memref<1x1x4x1xf32, #tpu.memory_space<vmem>>, vector<1x1x4x1xf32>,
    } else {
    }
    %c0_54 = arith.constant 0 : index
    %c0_55 = arith.constant 0 : index
    %c0_56 = arith.constant 0 : index
    %c0_57 = arith.constant 0 : index
    %80 = vector.load %arg16[%c0_54, %c0_55, %c0_56, %c0_57] : memref<1x1x4x1xf32, #tpu.memory_space<vmem>>, vector<1x1x4x1xf32>
    %81 = vector.shape_cast %80 : vector<1x1x4x1xf32> to vector<4x1xf32>
    %cst_58 = arith.constant dense<0.000000e+00> : vector<4xf32>
    %82 = vector.multi_reduction <add>, %76, %cst_58 [1] : vector<4x64xf32> to vector<4xf32>
    %83 = vector.shape_cast %82 : vector<4xf32> to vector<4x1xf32>
    %84 = arith.addf %81, %83 : vector<4x1xf32>
    %c0_59 = arith.constant 0 : index
    %c0_60 = arith.constant 0 : index
    %c0_61 = arith.constant 0 : index
    %c0_62 = arith.constant 0 : index
    %85 = vector.load %arg16[%c0_59, %c0_60, %c0_61, %c0_62] : memref<1x1x4x1xf32, #tpu.memory_space<vmem>>, vector<1x1x4x1xf32>
    %86 = vector.shape_cast %85 : vector<1x1x4x1xf32> to vector<4x1xf32>
    %87 = vector.shape_cast %84 : vector<4x1xf32> to vector<1x1x4x1xf32>
    tpu.vector_store %arg16[%c0_59, %c0_60, %c0_61, %c0_62], %87 {strides = array<i32>} : memref<1x1x4x1xf32, #tpu.memory_space<vmem>>, vector<1x1x4x1xf32>,
    return
  }
  func.func @transform_0(%arg0: i32, %arg1: i32, %arg2: i32) -> (i32, i32, i32, i32) {
    %c0_i32 = arith.constant 0 : i32
    %c0_i32_0 = arith.constant 0 : i32
    return %arg0, %arg1, %c0_i32, %arg2 : i32, i32, i32, i32
  }
  func.func @transform_1(%arg0: i32, %arg1: i32, %arg2: i32) -> (i32, i32, i32, i32) {
    %c0_i32 = arith.constant 0 : i32
    %c0_i32_0 = arith.constant 0 : i32
    return %arg0, %arg1, %c0_i32, %arg2 : i32, i32, i32, i32
  }
  func.func @transform_2(%arg0: i32, %arg1: i32, %arg2: i32) -> (i32, i32) {
    %c0_i32 = arith.constant 0 : i32
    %c0_i32_0 = arith.constant 0 : i32
    %c0_i32_1 = arith.constant 0 : i32
    return %c0_i32, %c0_i32_0 : i32, i32
  }
  func.func @transform_3(%arg0: i32, %arg1: i32, %arg2: i32) -> (i32, i32) {
    %c0_i32 = arith.constant 0 : i32
    %c0_i32_0 = arith.constant 0 : i32
    %c0_i32_1 = arith.constant 0 : i32
    return %c0_i32, %c0_i32_0 : i32, i32
  }
  func.func @transform_4(%arg0: i32, %arg1: i32, %arg2: i32) -> (i32, i32) {
    %c0_i32 = arith.constant 0 : i32
    %c0_i32_0 = arith.constant 0 : i32
    %c0_i32_1 = arith.constant 0 : i32
    return %c0_i32, %c0_i32_0 : i32, i32
  }
  func.func @transform_5(%arg0: i32, %arg1: i32, %arg2: i32) -> (i32, i32) {
    %c0_i32 = arith.constant 0 : i32
    %c0_i32_0 = arith.constant 0 : i32
    %c0_i32_1 = arith.constant 0 : i32
    return %c0_i32, %c0_i32_0 : i32, i32
  }
  func.func @transform_6(%arg0: i32, %arg1: i32, %arg2: i32) -> (i32, i32) {
    %c0_i32 = arith.constant 0 : i32
    %c0_i32_0 = arith.constant 0 : i32
    %c0_i32_1 = arith.constant 0 : i32
    return %c0_i32, %c0_i32_0 : i32, i32
  }
  func.func @transform_7(%arg0: i32, %arg1: i32, %arg2: i32) -> (i32, i32) {
    %c0_i32 = arith.constant 0 : i32
    %c0_i32_0 = arith.constant 0 : i32
    %c0_i32_1 = arith.constant 0 : i32
    return %c0_i32, %c0_i32_0 : i32, i32
  }
  func.func @transform_8(%arg0: i32, %arg1: i32, %arg2: i32) -> (i32, i32) {
    %c0_i32 = arith.constant 0 : i32
    %c0_i32_0 = arith.constant 0 : i32
    %c0_i32_1 = arith.constant 0 : i32
    return %c0_i32, %c0_i32_0 : i32, i32
  }
  func.func @transform_9(%arg0: i32, %arg1: i32, %arg2: i32) -> (i32, i32, i32) {
    %c0_i32 = arith.constant 0 : i32
    %c0_i32_0 = arith.constant 0 : i32
    %c0_i32_1 = arith.constant 0 : i32
    %c0_i32_2 = arith.constant 0 : i32
    return %c0_i32, %c0_i32_0, %c0_i32_1 : i32, i32, i32
  }
  func.func @transform_10(%arg0: i32, %arg1: i32, %arg2: i32) -> (i32, i32, i32) {
    %c0_i32 = arith.constant 0 : i32
    %c0_i32_0 = arith.constant 0 : i32
    %c0_i32_1 = arith.constant 0 : i32
    %c0_i32_2 = arith.constant 0 : i32
    return %c0_i32, %c0_i32_0, %c0_i32_1 : i32, i32, i32
  }
  func.func @transform_11(%arg0: i32, %arg1: i32, %arg2: i32) -> (i32, i32, i32, i32) {
    %c0_i32 = arith.constant 0 : i32
    %c0_i32_0 = arith.constant 0 : i32
    return %arg0, %arg1, %c0_i32, %arg2 : i32, i32, i32, i32
  }
  func.func @transform_12(%arg0: i32, %arg1: i32, %arg2: i32) -> (i32, i32, i32, i32) {
    %c0_i32 = arith.constant 0 : i32
    %c0_i32_0 = arith.constant 0 : i32
    return %arg0, %arg1, %c0_i32, %arg2 : i32, i32, i32, i32
  }
  func.func @transform_13(%arg0: i32, %arg1: i32, %arg2: i32) -> (i32, i32, i32, i32) {
    %c0_i32 = arith.constant 0 : i32
    %c0_i32_0 = arith.constant 0 : i32
    %c0_i32_1 = arith.constant 0 : i32
    return %arg0, %arg1, %c0_i32, %c0_i32_0 : i32, i32, i32, i32
  }
}

module attributes {stable_mosaic.version = 11 : i64} {
  func.func @_down_kernel(%arg0: i32, %arg1: memref<1x4x4x64xbf16, #tpu.memory_space<vmem>>, %arg2: memref<1x4x4x64xbf16, #tpu.memory_space<vmem>>, %arg3: memref<1x4x1xf32, #tpu.memory_space<vmem>>, %arg4: memref<8x4xf32, #tpu.memory_space<vmem>>, %arg5: memref<8x36xf32, #tpu.memory_space<vmem>>, %arg6: memref<8x4xf32, #tpu.memory_space<vmem>>, %arg7: memref<8x36xf32, #tpu.memory_space<vmem>>, %arg8: memref<4x8x1xf32, #tpu.memory_space<vmem>>, %arg9: memref<4x8x1xf32, #tpu.memory_space<vmem>>, %arg10: memref<1x8x64xf32, #tpu.memory_space<vmem>>, %arg11: memref<1x8x64xf32, #tpu.memory_space<vmem>>) attributes {dimension_semantics = [#tpu.dimension_semantics<parallel>], iteration_bounds = array<i64: 2>, scalar_prefetch = 0 : i64, scratch_operands = 0 : i64, tpu.core_type = #tpu.core_type<tc>, window_params = [{transform_indices = @transform_0, window_bounds = array<i64: 1, 4, 4, 64>}, {transform_indices = @transform_1, window_bounds = array<i64: 1, 4, 4, 64>}, {transform_indices = @transform_2, window_bounds = array<i64: 1, 4, 1>}, {pipeline_mode = #tpu.pipeline_mode<synchronous>, transform_indices = @transform_3, window_bounds = array<i64: 8, 4>}, {pipeline_mode = #tpu.pipeline_mode<synchronous>, transform_indices = @transform_4, window_bounds = array<i64: 8, 36>}, {pipeline_mode = #tpu.pipeline_mode<synchronous>, transform_indices = @transform_5, window_bounds = array<i64: 8, 4>}, {pipeline_mode = #tpu.pipeline_mode<synchronous>, transform_indices = @transform_6, window_bounds = array<i64: 8, 36>}, {pipeline_mode = #tpu.pipeline_mode<synchronous>, transform_indices = @transform_7, window_bounds = array<i64: 4, 8, 1>}, {pipeline_mode = #tpu.pipeline_mode<synchronous>, transform_indices = @transform_8, window_bounds = array<i64: 4, 8, 1>}, {transform_indices = @transform_9, window_bounds = array<i64: 1, 8, 64>}, {transform_indices = @transform_10, window_bounds = array<i64: 1, 8, 64>}]} {
    %c0 = arith.constant 0 : index
    %c0_0 = arith.constant 0 : index
    %c0_1 = arith.constant 0 : index
    %c0_2 = arith.constant 0 : index
    %0 = vector.load %arg1[%c0, %c0_0, %c0_1, %c0_2] : memref<1x4x4x64xbf16, #tpu.memory_space<vmem>>, vector<1x4x4x64xbf16>
    %1 = vector.shape_cast %0 : vector<1x4x4x64xbf16> to vector<4x4x64xbf16>
    %2 = arith.extf %1 : vector<4x4x64xbf16> to vector<4x4x64xf32>
    %c0_3 = arith.constant 0 : index
    %c0_4 = arith.constant 0 : index
    %c0_5 = arith.constant 0 : index
    %c0_6 = arith.constant 0 : index
    %3 = vector.load %arg2[%c0_3, %c0_4, %c0_5, %c0_6] : memref<1x4x4x64xbf16, #tpu.memory_space<vmem>>, vector<1x4x4x64xbf16>
    %4 = vector.shape_cast %3 : vector<1x4x4x64xbf16> to vector<4x4x64xbf16>
    %5 = arith.extf %4 : vector<4x4x64xbf16> to vector<4x4x64xf32>
    %c0_7 = arith.constant 0 : index
    %c0_8 = arith.constant 0 : index
    %c0_9 = arith.constant 0 : index
    %6 = vector.load %arg3[%c0_7, %c0_8, %c0_9] : memref<1x4x1xf32, #tpu.memory_space<vmem>>, vector<1x4x1xf32>
    %7 = vector.shape_cast %6 : vector<1x4x1xf32> to vector<4x1xf32>
    %8 = vector.shape_cast %7 : vector<4x1xf32> to vector<1x4x1xf32>
    %9 = vector.broadcast %8 : vector<1x4x1xf32> to vector<4x4x64xf32>
    %10 = arith.mulf %9, %5 : vector<4x4x64xf32>
    %11 = arith.addf %2, %10 : vector<4x4x64xf32>
    %12 = vector.broadcast %8 : vector<1x4x1xf32> to vector<4x4x64xf32>
    %13 = arith.mulf %12, %2 : vector<4x4x64xf32>
    %14 = arith.subf %5, %13 : vector<4x4x64xf32>
    %15 = tpu.iota {dimensions = array<i32: 1>} : vector<1x64xi32>
    %c8_i32 = arith.constant 8 : i32
    %c0_i32 = arith.constant 0 : i32
    %16 = arith.cmpi eq, %c8_i32, %c0_i32 : i32
    %c1_i32 = arith.constant 1 : i32
    %17 = arith.select %16, %c1_i32, %c8_i32 : i32
    %18 = vector.broadcast %17 : i32 to vector<1x64xi32>
    %19 = arith.remsi %15, %18 : vector<1x64xi32>
    %c0_i32_10 = arith.constant 0 : i32
    %20 = vector.broadcast %c0_i32_10 : i32 to vector<1x64xi32>
    %21 = arith.cmpi ne, %19, %20 : vector<1x64xi32>
    %c0_i32_11 = arith.constant 0 : i32
    %22 = vector.broadcast %c0_i32_11 : i32 to vector<1x64xi32>
    %23 = arith.cmpi slt, %19, %22 : vector<1x64xi32>
    %c0_i32_12 = arith.constant 0 : i32
    %24 = arith.cmpi slt, %17, %c0_i32_12 : i32
    %25 = vector.broadcast %24 : i1 to vector<1x64xi1>
    %26 = vector.broadcast %25 : vector<1x64xi1> to vector<1x64xi1>
    %27 = arith.xori %23, %26 : vector<1x64xi1>
    %28 = arith.andi %27, %21 : vector<1x64xi1>
    %29 = vector.broadcast %17 : i32 to vector<1x64xi32>
    %30 = arith.addi %19, %29 : vector<1x64xi32>
    %31 = arith.select %28, %30, %19 : vector<1x64xi1>, vector<1x64xi32>
    %c0_i32_13 = arith.constant 0 : i32
    %32 = vector.broadcast %c0_i32_13 : i32 to vector<1x64xi32>
    %33 = arith.cmpi ne, %31, %32 : vector<1x64xi32>
    %c8_i32_14 = arith.constant 8 : i32
    %34 = vector.broadcast %c8_i32_14 : i32 to vector<1x64xi32>
    %35 = arith.cmpi sge, %15, %34 : vector<1x64xi32>
    %36 = arith.andi %35, %33 : vector<1x64xi1>
    %c0_15 = arith.constant 0 : index
    %c0_16 = arith.constant 0 : index
    %37 = vector.load %arg4[%c0_15, %c0_16] : memref<8x4xf32, #tpu.memory_space<vmem>>, vector<8x4xf32>
    %38 = vector.extract_strided_slice %2 {offsets = [0, 0, 0], sizes = [1, 4, 64], strides = [1, 1, 1]} : vector<4x4x64xf32> to vector<1x4x64xf32>
    %39 = vector.shape_cast %38 : vector<1x4x64xf32> to vector<4x64xf32>
    %cst = arith.constant dense<0.000000e+00> : vector<8x64xf32>
    %40 = tpu.matmul %37, %39, %cst {dimension_numbers = #tpu.dot_dimension_numbers<[1], [0], [0], [1], [0, 0, 1, 1], [], []>} : vector<8x4xf32>, vector<4x64xf32>, vector<8x64xf32> -> vector<8x64xf32>
    %c0_17 = arith.constant 0 : index
    %c0_18 = arith.constant 0 : index
    %c0_19 = arith.constant 0 : index
    %41 = vector.load %arg8[%c0_17, %c0_18, %c0_19] : memref<4x8x1xf32, #tpu.memory_space<vmem>>, vector<1x8x1xf32>
    %42 = vector.shape_cast %41 : vector<1x8x1xf32> to vector<8x1xf32>
    %43 = vector.broadcast %42 : vector<8x1xf32> to vector<8x64xf32>
    %44 = arith.mulf %40, %43 : vector<8x64xf32>
    %c0_20 = arith.constant 0 : index
    %c0_21 = arith.constant 0 : index
    %c0_22 = arith.constant 0 : index
    %45 = vector.load %arg9[%c0_20, %c0_21, %c0_22] : memref<4x8x1xf32, #tpu.memory_space<vmem>>, vector<1x8x1xf32>
    %46 = vector.shape_cast %45 : vector<1x8x1xf32> to vector<8x1xf32>
    %47 = vector.broadcast %46 : vector<8x1xf32> to vector<8x64xf32>
    %48 = arith.addf %44, %47 : vector<8x64xf32>
    %cst_23 = arith.constant 0.000000e+00 : f32
    %49 = vector.broadcast %cst_23 : f32 to vector<8x64xf32>
    %50 = arith.subf %49, %48 : vector<8x64xf32>
    %51 = math.exp %50 : vector<8x64xf32>
    %cst_24 = arith.constant 1.000000e+00 : f32
    %52 = vector.broadcast %cst_24 : f32 to vector<8x64xf32>
    %53 = arith.addf %52, %51 : vector<8x64xf32>
    %54 = tpu.reciprocal %53 {approx = true} : vector<8x64xf32> -> vector<8x64xf32>
    %55 = arith.mulf %48, %54 : vector<8x64xf32>
    %c0_25 = arith.constant 0 : index
    %c0_26 = arith.constant 0 : index
    %56 = vector.load %arg5[%c0_25, %c0_26] : memref<8x36xf32, #tpu.memory_space<vmem>>, vector<8x36xf32>
    %57 = vector.extract_strided_slice %11 {offsets = [0, 0, 0], sizes = [1, 4, 64], strides = [1, 1, 1]} : vector<4x4x64xf32> to vector<1x4x64xf32>
    %58 = vector.shape_cast %57 : vector<1x4x64xf32> to vector<4x64xf32>
    %59 = vector.extract_strided_slice %11 {offsets = [1, 0, 0], sizes = [1, 4, 64], strides = [1, 1, 1]} : vector<4x4x64xf32> to vector<1x4x64xf32>
    %60 = vector.shape_cast %59 : vector<1x4x64xf32> to vector<4x64xf32>
    %61 = vector.extract_strided_slice %11 {offsets = [2, 0, 0], sizes = [1, 4, 64], strides = [1, 1, 1]} : vector<4x4x64xf32> to vector<1x4x64xf32>
    %62 = vector.shape_cast %61 : vector<1x4x64xf32> to vector<4x64xf32>
    %63 = vector.extract_strided_slice %11 {offsets = [3, 0, 0], sizes = [1, 4, 64], strides = [1, 1, 1]} : vector<4x4x64xf32> to vector<1x4x64xf32>
    %64 = vector.shape_cast %63 : vector<1x4x64xf32> to vector<4x64xf32>
    %65 = vector.extract_strided_slice %64 {offsets = [0, 55], sizes = [4, 9], strides = [1, 1]} : vector<4x64xf32> to vector<4x9xf32>
    %66 = vector.extract_strided_slice %64 {offsets = [0, 0], sizes = [4, 55], strides = [1, 1]} : vector<4x64xf32> to vector<4x55xf32>
    %67 = tpu.concatenate %65, %66 in 1 : vector<4x9xf32>, vector<4x55xf32> -> vector<4x64xf32>
    %cst_27 = arith.constant 0.000000e+00 : f32
    %68 = vector.shape_cast %36 : vector<1x64xi1> to vector<1x64xi1>
    %69 = vector.broadcast %68 : vector<1x64xi1> to vector<4x64xi1>
    %70 = vector.broadcast %cst_27 : f32 to vector<4x64xf32>
    %71 = arith.select %69, %67, %70 : vector<4x64xi1>, vector<4x64xf32>
    %72 = vector.extract_strided_slice %62 {offsets = [0, 56], sizes = [4, 8], strides = [1, 1]} : vector<4x64xf32> to vector<4x8xf32>
    %73 = vector.extract_strided_slice %62 {offsets = [0, 0], sizes = [4, 56], strides = [1, 1]} : vector<4x64xf32> to vector<4x56xf32>
    %74 = tpu.concatenate %72, %73 in 1 : vector<4x8xf32>, vector<4x56xf32> -> vector<4x64xf32>
    %cst_28 = arith.constant 0.000000e+00 : f32
    %75 = vector.shape_cast %35 : vector<1x64xi1> to vector<1x64xi1>
    %76 = vector.broadcast %75 : vector<1x64xi1> to vector<4x64xi1>
    %77 = vector.broadcast %cst_28 : f32 to vector<4x64xf32>
    %78 = arith.select %76, %74, %77 : vector<4x64xi1>, vector<4x64xf32>
    %79 = vector.extract_strided_slice %64 {offsets = [0, 56], sizes = [4, 8], strides = [1, 1]} : vector<4x64xf32> to vector<4x8xf32>
    %80 = vector.extract_strided_slice %64 {offsets = [0, 0], sizes = [4, 56], strides = [1, 1]} : vector<4x64xf32> to vector<4x56xf32>
    %81 = tpu.concatenate %79, %80 in 1 : vector<4x8xf32>, vector<4x56xf32> -> vector<4x64xf32>
    %cst_29 = arith.constant 0.000000e+00 : f32
    %82 = vector.shape_cast %35 : vector<1x64xi1> to vector<1x64xi1>
    %83 = vector.broadcast %82 : vector<1x64xi1> to vector<4x64xi1>
    %84 = vector.broadcast %cst_29 : f32 to vector<4x64xf32>
    %85 = arith.select %83, %81, %84 : vector<4x64xi1>, vector<4x64xf32>
    %86 = vector.extract_strided_slice %60 {offsets = [0, 63], sizes = [4, 1], strides = [1, 1]} : vector<4x64xf32> to vector<4x1xf32>
    %87 = vector.extract_strided_slice %60 {offsets = [0, 0], sizes = [4, 63], strides = [1, 1]} : vector<4x64xf32> to vector<4x63xf32>
    %88 = tpu.concatenate %86, %87 in 1 : vector<4x1xf32>, vector<4x63xf32> -> vector<4x64xf32>
    %cst_30 = arith.constant 0.000000e+00 : f32
    %89 = vector.shape_cast %33 : vector<1x64xi1> to vector<1x64xi1>
    %90 = vector.broadcast %89 : vector<1x64xi1> to vector<4x64xi1>
    %91 = vector.broadcast %cst_30 : f32 to vector<4x64xf32>
    %92 = arith.select %90, %88, %91 : vector<4x64xi1>, vector<4x64xf32>
    %93 = vector.extract_strided_slice %64 {offsets = [0, 63], sizes = [4, 1], strides = [1, 1]} : vector<4x64xf32> to vector<4x1xf32>
    %94 = vector.extract_strided_slice %64 {offsets = [0, 0], sizes = [4, 63], strides = [1, 1]} : vector<4x64xf32> to vector<4x63xf32>
    %95 = tpu.concatenate %93, %94 in 1 : vector<4x1xf32>, vector<4x63xf32> -> vector<4x64xf32>
    %cst_31 = arith.constant 0.000000e+00 : f32
    %96 = vector.shape_cast %33 : vector<1x64xi1> to vector<1x64xi1>
    %97 = vector.broadcast %96 : vector<1x64xi1> to vector<4x64xi1>
    %98 = vector.broadcast %cst_31 : f32 to vector<4x64xf32>
    %99 = arith.select %97, %95, %98 : vector<4x64xi1>, vector<4x64xf32>
    %100 = tpu.concatenate %71, %78, %85, %92, %58, %60, %99, %62, %64 in 0 : vector<4x64xf32>, vector<4x64xf32>, vector<4x64xf32>, vector<4x64xf32>, vector<4x64xf32>, vector<4x64xf32>, vector<4x64xf32>, vector<4x64xf32>, vector<4x64xf32> -> vector<36x64xf32>
    %cst_32 = arith.constant dense<0.000000e+00> : vector<8x64xf32>
    %101 = tpu.matmul %56, %100, %cst_32 {dimension_numbers = #tpu.dot_dimension_numbers<[1], [0], [0], [1], [0, 0, 1, 1], [], []>} : vector<8x36xf32>, vector<36x64xf32>, vector<8x64xf32> -> vector<8x64xf32>
    %c1 = arith.constant 1 : index
    %c0_33 = arith.constant 0 : index
    %c0_34 = arith.constant 0 : index
    %102 = vector.load %arg8[%c1, %c0_33, %c0_34] : memref<4x8x1xf32, #tpu.memory_space<vmem>>, vector<1x8x1xf32>
    %103 = vector.shape_cast %102 : vector<1x8x1xf32> to vector<8x1xf32>
    %104 = vector.broadcast %103 : vector<8x1xf32> to vector<8x64xf32>
    %105 = arith.mulf %101, %104 : vector<8x64xf32>
    %c1_35 = arith.constant 1 : index
    %c0_36 = arith.constant 0 : index
    %c0_37 = arith.constant 0 : index
    %106 = vector.load %arg9[%c1_35, %c0_36, %c0_37] : memref<4x8x1xf32, #tpu.memory_space<vmem>>, vector<1x8x1xf32>
    %107 = vector.shape_cast %106 : vector<1x8x1xf32> to vector<8x1xf32>
    %108 = vector.broadcast %107 : vector<8x1xf32> to vector<8x64xf32>
    %109 = arith.addf %105, %108 : vector<8x64xf32>
    %cst_38 = arith.constant 0.000000e+00 : f32
    %110 = vector.broadcast %cst_38 : f32 to vector<8x64xf32>
    %111 = arith.subf %110, %109 : vector<8x64xf32>
    %112 = math.exp %111 : vector<8x64xf32>
    %cst_39 = arith.constant 1.000000e+00 : f32
    %113 = vector.broadcast %cst_39 : f32 to vector<8x64xf32>
    %114 = arith.addf %113, %112 : vector<8x64xf32>
    %115 = tpu.reciprocal %114 {approx = true} : vector<8x64xf32> -> vector<8x64xf32>
    %116 = arith.mulf %109, %115 : vector<8x64xf32>
    %117 = arith.addf %55, %116 : vector<8x64xf32>
    %c0_40 = arith.constant 0 : index
    %c0_41 = arith.constant 0 : index
    %c0_42 = arith.constant 0 : index
    %118 = vector.load %arg10[%c0_40, %c0_41, %c0_42] : memref<1x8x64xf32, #tpu.memory_space<vmem>>, vector<1x8x64xf32>
    %119 = vector.shape_cast %118 : vector<1x8x64xf32> to vector<8x64xf32>
    %120 = vector.shape_cast %117 : vector<8x64xf32> to vector<1x8x64xf32>
    tpu.vector_store %arg10[%c0_40, %c0_41, %c0_42], %120 {strides = array<i32>} : memref<1x8x64xf32, #tpu.memory_space<vmem>>, vector<1x8x64xf32>,
    %c0_43 = arith.constant 0 : index
    %c0_44 = arith.constant 0 : index
    %121 = vector.load %arg6[%c0_43, %c0_44] : memref<8x4xf32, #tpu.memory_space<vmem>>, vector<8x4xf32>
    %122 = vector.extract_strided_slice %5 {offsets = [0, 0, 0], sizes = [1, 4, 64], strides = [1, 1, 1]} : vector<4x4x64xf32> to vector<1x4x64xf32>
    %123 = vector.shape_cast %122 : vector<1x4x64xf32> to vector<4x64xf32>
    %cst_45 = arith.constant dense<0.000000e+00> : vector<8x64xf32>
    %124 = tpu.matmul %121, %123, %cst_45 {dimension_numbers = #tpu.dot_dimension_numbers<[1], [0], [0], [1], [0, 0, 1, 1], [], []>} : vector<8x4xf32>, vector<4x64xf32>, vector<8x64xf32> -> vector<8x64xf32>
    %c2 = arith.constant 2 : index
    %c0_46 = arith.constant 0 : index
    %c0_47 = arith.constant 0 : index
    %125 = vector.load %arg8[%c2, %c0_46, %c0_47] : memref<4x8x1xf32, #tpu.memory_space<vmem>>, vector<1x8x1xf32>
    %126 = vector.shape_cast %125 : vector<1x8x1xf32> to vector<8x1xf32>
    %127 = vector.broadcast %126 : vector<8x1xf32> to vector<8x64xf32>
    %128 = arith.mulf %124, %127 : vector<8x64xf32>
    %c2_48 = arith.constant 2 : index
    %c0_49 = arith.constant 0 : index
    %c0_50 = arith.constant 0 : index
    %129 = vector.load %arg9[%c2_48, %c0_49, %c0_50] : memref<4x8x1xf32, #tpu.memory_space<vmem>>, vector<1x8x1xf32>
    %130 = vector.shape_cast %129 : vector<1x8x1xf32> to vector<8x1xf32>
    %131 = vector.broadcast %130 : vector<8x1xf32> to vector<8x64xf32>
    %132 = arith.addf %128, %131 : vector<8x64xf32>
    %cst_51 = arith.constant 0.000000e+00 : f32
    %133 = vector.broadcast %cst_51 : f32 to vector<8x64xf32>
    %134 = arith.subf %133, %132 : vector<8x64xf32>
    %135 = math.exp %134 : vector<8x64xf32>
    %cst_52 = arith.constant 1.000000e+00 : f32
    %136 = vector.broadcast %cst_52 : f32 to vector<8x64xf32>
    %137 = arith.addf %136, %135 : vector<8x64xf32>
    %138 = tpu.reciprocal %137 {approx = true} : vector<8x64xf32> -> vector<8x64xf32>
    %139 = arith.mulf %132, %138 : vector<8x64xf32>
    %c0_53 = arith.constant 0 : index
    %c0_54 = arith.constant 0 : index
    %140 = vector.load %arg7[%c0_53, %c0_54] : memref<8x36xf32, #tpu.memory_space<vmem>>, vector<8x36xf32>
    %141 = vector.extract_strided_slice %14 {offsets = [0, 0, 0], sizes = [1, 4, 64], strides = [1, 1, 1]} : vector<4x4x64xf32> to vector<1x4x64xf32>
    %142 = vector.shape_cast %141 : vector<1x4x64xf32> to vector<4x64xf32>
    %143 = vector.extract_strided_slice %14 {offsets = [1, 0, 0], sizes = [1, 4, 64], strides = [1, 1, 1]} : vector<4x4x64xf32> to vector<1x4x64xf32>
    %144 = vector.shape_cast %143 : vector<1x4x64xf32> to vector<4x64xf32>
    %145 = vector.extract_strided_slice %14 {offsets = [2, 0, 0], sizes = [1, 4, 64], strides = [1, 1, 1]} : vector<4x4x64xf32> to vector<1x4x64xf32>
    %146 = vector.shape_cast %145 : vector<1x4x64xf32> to vector<4x64xf32>
    %147 = vector.extract_strided_slice %14 {offsets = [3, 0, 0], sizes = [1, 4, 64], strides = [1, 1, 1]} : vector<4x4x64xf32> to vector<1x4x64xf32>
    %148 = vector.shape_cast %147 : vector<1x4x64xf32> to vector<4x64xf32>
    %149 = vector.extract_strided_slice %148 {offsets = [0, 55], sizes = [4, 9], strides = [1, 1]} : vector<4x64xf32> to vector<4x9xf32>
    %150 = vector.extract_strided_slice %148 {offsets = [0, 0], sizes = [4, 55], strides = [1, 1]} : vector<4x64xf32> to vector<4x55xf32>
    %151 = tpu.concatenate %149, %150 in 1 : vector<4x9xf32>, vector<4x55xf32> -> vector<4x64xf32>
    %cst_55 = arith.constant 0.000000e+00 : f32
    %152 = vector.shape_cast %36 : vector<1x64xi1> to vector<1x64xi1>
    %153 = vector.broadcast %152 : vector<1x64xi1> to vector<4x64xi1>
    %154 = vector.broadcast %cst_55 : f32 to vector<4x64xf32>
    %155 = arith.select %153, %151, %154 : vector<4x64xi1>, vector<4x64xf32>
    %156 = vector.extract_strided_slice %146 {offsets = [0, 56], sizes = [4, 8], strides = [1, 1]} : vector<4x64xf32> to vector<4x8xf32>
    %157 = vector.extract_strided_slice %146 {offsets = [0, 0], sizes = [4, 56], strides = [1, 1]} : vector<4x64xf32> to vector<4x56xf32>
    %158 = tpu.concatenate %156, %157 in 1 : vector<4x8xf32>, vector<4x56xf32> -> vector<4x64xf32>
    %cst_56 = arith.constant 0.000000e+00 : f32
    %159 = vector.shape_cast %35 : vector<1x64xi1> to vector<1x64xi1>
    %160 = vector.broadcast %159 : vector<1x64xi1> to vector<4x64xi1>
    %161 = vector.broadcast %cst_56 : f32 to vector<4x64xf32>
    %162 = arith.select %160, %158, %161 : vector<4x64xi1>, vector<4x64xf32>
    %163 = vector.extract_strided_slice %148 {offsets = [0, 56], sizes = [4, 8], strides = [1, 1]} : vector<4x64xf32> to vector<4x8xf32>
    %164 = vector.extract_strided_slice %148 {offsets = [0, 0], sizes = [4, 56], strides = [1, 1]} : vector<4x64xf32> to vector<4x56xf32>
    %165 = tpu.concatenate %163, %164 in 1 : vector<4x8xf32>, vector<4x56xf32> -> vector<4x64xf32>
    %cst_57 = arith.constant 0.000000e+00 : f32
    %166 = vector.shape_cast %35 : vector<1x64xi1> to vector<1x64xi1>
    %167 = vector.broadcast %166 : vector<1x64xi1> to vector<4x64xi1>
    %168 = vector.broadcast %cst_57 : f32 to vector<4x64xf32>
    %169 = arith.select %167, %165, %168 : vector<4x64xi1>, vector<4x64xf32>
    %170 = vector.extract_strided_slice %144 {offsets = [0, 63], sizes = [4, 1], strides = [1, 1]} : vector<4x64xf32> to vector<4x1xf32>
    %171 = vector.extract_strided_slice %144 {offsets = [0, 0], sizes = [4, 63], strides = [1, 1]} : vector<4x64xf32> to vector<4x63xf32>
    %172 = tpu.concatenate %170, %171 in 1 : vector<4x1xf32>, vector<4x63xf32> -> vector<4x64xf32>
    %cst_58 = arith.constant 0.000000e+00 : f32
    %173 = vector.shape_cast %33 : vector<1x64xi1> to vector<1x64xi1>
    %174 = vector.broadcast %173 : vector<1x64xi1> to vector<4x64xi1>
    %175 = vector.broadcast %cst_58 : f32 to vector<4x64xf32>
    %176 = arith.select %174, %172, %175 : vector<4x64xi1>, vector<4x64xf32>
    %177 = vector.extract_strided_slice %148 {offsets = [0, 63], sizes = [4, 1], strides = [1, 1]} : vector<4x64xf32> to vector<4x1xf32>
    %178 = vector.extract_strided_slice %148 {offsets = [0, 0], sizes = [4, 63], strides = [1, 1]} : vector<4x64xf32> to vector<4x63xf32>
    %179 = tpu.concatenate %177, %178 in 1 : vector<4x1xf32>, vector<4x63xf32> -> vector<4x64xf32>
    %cst_59 = arith.constant 0.000000e+00 : f32
    %180 = vector.shape_cast %33 : vector<1x64xi1> to vector<1x64xi1>
    %181 = vector.broadcast %180 : vector<1x64xi1> to vector<4x64xi1>
    %182 = vector.broadcast %cst_59 : f32 to vector<4x64xf32>
    %183 = arith.select %181, %179, %182 : vector<4x64xi1>, vector<4x64xf32>
    %184 = tpu.concatenate %155, %162, %169, %176, %142, %144, %183, %146, %148 in 0 : vector<4x64xf32>, vector<4x64xf32>, vector<4x64xf32>, vector<4x64xf32>, vector<4x64xf32>, vector<4x64xf32>, vector<4x64xf32>, vector<4x64xf32>, vector<4x64xf32> -> vector<36x64xf32>
    %cst_60 = arith.constant dense<0.000000e+00> : vector<8x64xf32>
    %185 = tpu.matmul %140, %184, %cst_60 {dimension_numbers = #tpu.dot_dimension_numbers<[1], [0], [0], [1], [0, 0, 1, 1], [], []>} : vector<8x36xf32>, vector<36x64xf32>, vector<8x64xf32> -> vector<8x64xf32>
    %c3 = arith.constant 3 : index
    %c0_61 = arith.constant 0 : index
    %c0_62 = arith.constant 0 : index
    %186 = vector.load %arg8[%c3, %c0_61, %c0_62] : memref<4x8x1xf32, #tpu.memory_space<vmem>>, vector<1x8x1xf32>
    %187 = vector.shape_cast %186 : vector<1x8x1xf32> to vector<8x1xf32>
    %188 = vector.broadcast %187 : vector<8x1xf32> to vector<8x64xf32>
    %189 = arith.mulf %185, %188 : vector<8x64xf32>
    %c3_63 = arith.constant 3 : index
    %c0_64 = arith.constant 0 : index
    %c0_65 = arith.constant 0 : index
    %190 = vector.load %arg9[%c3_63, %c0_64, %c0_65] : memref<4x8x1xf32, #tpu.memory_space<vmem>>, vector<1x8x1xf32>
    %191 = vector.shape_cast %190 : vector<1x8x1xf32> to vector<8x1xf32>
    %192 = vector.broadcast %191 : vector<8x1xf32> to vector<8x64xf32>
    %193 = arith.addf %189, %192 : vector<8x64xf32>
    %cst_66 = arith.constant 0.000000e+00 : f32
    %194 = vector.broadcast %cst_66 : f32 to vector<8x64xf32>
    %195 = arith.subf %194, %193 : vector<8x64xf32>
    %196 = math.exp %195 : vector<8x64xf32>
    %cst_67 = arith.constant 1.000000e+00 : f32
    %197 = vector.broadcast %cst_67 : f32 to vector<8x64xf32>
    %198 = arith.addf %197, %196 : vector<8x64xf32>
    %199 = tpu.reciprocal %198 {approx = true} : vector<8x64xf32> -> vector<8x64xf32>
    %200 = arith.mulf %193, %199 : vector<8x64xf32>
    %201 = arith.addf %139, %200 : vector<8x64xf32>
    %c0_68 = arith.constant 0 : index
    %c0_69 = arith.constant 0 : index
    %c0_70 = arith.constant 0 : index
    %202 = vector.load %arg11[%c0_68, %c0_69, %c0_70] : memref<1x8x64xf32, #tpu.memory_space<vmem>>, vector<1x8x64xf32>
    %203 = vector.shape_cast %202 : vector<1x8x64xf32> to vector<8x64xf32>
    %204 = vector.shape_cast %201 : vector<8x64xf32> to vector<1x8x64xf32>
    tpu.vector_store %arg11[%c0_68, %c0_69, %c0_70], %204 {strides = array<i32>} : memref<1x8x64xf32, #tpu.memory_space<vmem>>, vector<1x8x64xf32>,
    return
  }
  func.func @transform_0(%arg0: i32) -> (i32, i32, i32, i32) {
    %c0_i32 = arith.constant 0 : i32
    %c0_i32_0 = arith.constant 0 : i32
    %c0_i32_1 = arith.constant 0 : i32
    %c0_i32_2 = arith.constant 0 : i32
    return %arg0, %c0_i32, %c0_i32_0, %c0_i32_1 : i32, i32, i32, i32
  }
  func.func @transform_1(%arg0: i32) -> (i32, i32, i32, i32) {
    %c0_i32 = arith.constant 0 : i32
    %c0_i32_0 = arith.constant 0 : i32
    %c0_i32_1 = arith.constant 0 : i32
    %c0_i32_2 = arith.constant 0 : i32
    return %arg0, %c0_i32, %c0_i32_0, %c0_i32_1 : i32, i32, i32, i32
  }
  func.func @transform_2(%arg0: i32) -> (i32, i32, i32) {
    %c0_i32 = arith.constant 0 : i32
    %c0_i32_0 = arith.constant 0 : i32
    %c0_i32_1 = arith.constant 0 : i32
    return %arg0, %c0_i32, %c0_i32_0 : i32, i32, i32
  }
  func.func @transform_3(%arg0: i32) -> (i32, i32) {
    %c0_i32 = arith.constant 0 : i32
    %c0_i32_0 = arith.constant 0 : i32
    %c0_i32_1 = arith.constant 0 : i32
    return %c0_i32, %c0_i32_0 : i32, i32
  }
  func.func @transform_4(%arg0: i32) -> (i32, i32) {
    %c0_i32 = arith.constant 0 : i32
    %c0_i32_0 = arith.constant 0 : i32
    %c0_i32_1 = arith.constant 0 : i32
    return %c0_i32, %c0_i32_0 : i32, i32
  }
  func.func @transform_5(%arg0: i32) -> (i32, i32) {
    %c0_i32 = arith.constant 0 : i32
    %c0_i32_0 = arith.constant 0 : i32
    %c0_i32_1 = arith.constant 0 : i32
    return %c0_i32, %c0_i32_0 : i32, i32
  }
  func.func @transform_6(%arg0: i32) -> (i32, i32) {
    %c0_i32 = arith.constant 0 : i32
    %c0_i32_0 = arith.constant 0 : i32
    %c0_i32_1 = arith.constant 0 : i32
    return %c0_i32, %c0_i32_0 : i32, i32
  }
  func.func @transform_7(%arg0: i32) -> (i32, i32, i32) {
    %c0_i32 = arith.constant 0 : i32
    %c0_i32_0 = arith.constant 0 : i32
    %c0_i32_1 = arith.constant 0 : i32
    %c0_i32_2 = arith.constant 0 : i32
    return %c0_i32, %c0_i32_0, %c0_i32_1 : i32, i32, i32
  }
  func.func @transform_8(%arg0: i32) -> (i32, i32, i32) {
    %c0_i32 = arith.constant 0 : i32
    %c0_i32_0 = arith.constant 0 : i32
    %c0_i32_1 = arith.constant 0 : i32
    %c0_i32_2 = arith.constant 0 : i32
    return %c0_i32, %c0_i32_0, %c0_i32_1 : i32, i32, i32
  }
  func.func @transform_9(%arg0: i32) -> (i32, i32, i32) {
    %c0_i32 = arith.constant 0 : i32
    %c0_i32_0 = arith.constant 0 : i32
    %c0_i32_1 = arith.constant 0 : i32
    return %arg0, %c0_i32, %c0_i32_0 : i32, i32, i32
  }
  func.func @transform_10(%arg0: i32) -> (i32, i32, i32) {
    %c0_i32 = arith.constant 0 : i32
    %c0_i32_0 = arith.constant 0 : i32
    %c0_i32_1 = arith.constant 0 : i32
    return %arg0, %c0_i32, %c0_i32_0 : i32, i32, i32
  }
}

</mosaic_0001>

<llo_original>
// kernel: plard_forward.2
$region0: #{plard_forward.2}
  #allocation0 [shape = 'u32[]', space=smem, size = 0x4, offset = 0x4, fixed_abs, tag = 'smem constant byte address 0x4 - core index']
  #allocation1 [shape = 'u32[144,128]{1,0:T(1,128)}', space=vmem, size = 0x12000, scoped, tag = 'internal scratch']
  %s0 = inlined_call_operand.vmem [shape: bf16[2,4,4,64], index: 0, kind: input, shape index: {}]
  %s1 = inlined_call_operand.vmem [shape: bf16[2,4,4,64], index: 1, kind: input, shape index: {}]
  %s2 = inlined_call_operand.vmem [shape: f32[8,4], index: 2, kind: input, shape index: {}]
  %s3 = inlined_call_operand.vmem [shape: f32[8,1], index: 3, kind: input, shape index: {}]
  %s4 = inlined_call_operand.vmem [shape: f32[8,4], index: 4, kind: input, shape index: {}]
  %s5 = inlined_call_operand.vmem [shape: f32[8,1], index: 5, kind: input, shape index: {}]
  %s6 = inlined_call_operand.vmem [shape: f32[16,4], index: 6, kind: input, shape index: {}]
  %s7 = inlined_call_operand.vmem [shape: f32[16,4], index: 7, kind: input, shape index: {}]
  %s8 = inlined_call_operand.vmem [shape: f32[16,1], index: 8, kind: input, shape index: {}]
  %s9 = inlined_call_operand.vmem [shape: f32[2,4,4], index: 9, kind: input, shape index: {}]
  %s10 = inlined_call_operand.vmem [shape: f32[2,4,1], index: 10, kind: input, shape index: {}]
  %s11 = inlined_call_operand.vmem [shape: bf16[2,4,4,64], index: 11, kind: output, shape index: {0}]
  %s12 = inlined_call_operand.vmem [shape: bf16[2,4,4,64], index: 12, kind: output, shape index: {1}]
  %s13 = inlined_call_operand.vmem [shape: f32[2,4,4,1], index: 13, kind: output, shape index: {2}]
  %14 = xla_tuple %s11, %s12, %s13
  %s15 = sld [smem:[#allocation0]]
  $region97: #{plard_forward.2} parent=0
    _
  %s17 = ssub.s32 1, %s15
  %s18 = scalar_select 0, %s17, %s15
  loop: start=0, step=1, limit=10
  $region2: #{plard_forward.2} parent=0 // loop_pre_header
    _
  $region3: #{plard_forward.2} parent=0 // loop_header
    %s20 = sphi 0, %s24
    %p21 = scmp.ge.s32.totalorder %s20, 10
    %s27 = sphi 0, %s46
    %s28 = sphi 0, %s42
    %s29 = sphi 0, %s38
    %s30 = sphi 0, %s27
    %s31 = sphi 0, %s28
    %s32 = sphi 0, %s29
    %s33 = sphi 0, %s30
    %s34 = sphi 0, %s31
    %s35 = sphi 0, %s32
    %s53 = sphi 0, %s55
    %s56 = sphi 0, %s53
    %s57 = sphi 0, %s56
    %s73 = sphi 0, %s57
    %s83 = sphi 0, %s85
    %s86 = sphi 0, %s83
    %s87 = sphi 0, %s86
    %s103 = sphi 0, %s87
    %s107 = sphi 0, %s107
    %s109 = sphi 0, %s107
    %s110 = sphi 0, %s109
    %s124 = sphi 0, %s110
    %s128 = sphi 0, %s128
    %s130 = sphi 0, %s128
    %s131 = sphi 0, %s130
    %s145 = sphi 0, %s131
    %s149 = sphi 0, %s149
    %s151 = sphi 0, %s149
    %s152 = sphi 0, %s151
    %s166 = sphi 0, %s152
    %s170 = sphi 0, %s170
    %s172 = sphi 0, %s170
    %s173 = sphi 0, %s172
    %s187 = sphi 0, %s173
    %s191 = sphi 0, %s191
    %s193 = sphi 0, %s191
    %s194 = sphi 0, %s193
    %s208 = sphi 0, %s194
    %s212 = sphi 0, %s212
    %s214 = sphi 0, %s212
    %s215 = sphi 0, %s214
    %s229 = sphi 0, %s215
    %s233 = sphi 0, %s233
    %s235 = sphi 0, %s233
    %s236 = sphi 0, %s235
    %s250 = sphi 0, %s236
    %s254 = sphi 0, %s254
    %s256 = sphi 0, %s254
    %s257 = sphi 0, %s256
    %s271 = sphi 0, %s257
    %s275 = sphi 0, %s275
    %s277 = sphi 0, %s275
    %s278 = sphi 0, %s277
    %s292 = sphi 0, %s278
    %s302 = sphi 0, %s304
    %s305 = sphi 0, %s302
    %s306 = sphi 0, %s305
    %s322 = sphi 0, %s306
    %s332 = sphi 0, %s334
    %s335 = sphi 0, %s332
    %s336 = sphi 0, %s335
    %s352 = sphi 0, %s336
    %s360 = sphi 0, %s362
    %s363 = sphi 0, %s360
    %s364 = sphi 0, %s363
    %s380 = sphi 0, %s364
  $region4: #{plard_forward.2} parent=0 // loop_header_branch
    %23 = sbr.rel (%p21) target = $region8
  $region5: #{plard_forward.2} parent=0 // loop_body
    %s25 = ssub.s32 %s20, 1
    %s26 = ssub.s32 %s20, 2
    %s36 = sadd.s32 1, %s29
    %p37 = scmp.ge.s32.totalorder %s36, 1
    %s38 = scalar_select %p37, 0, %s36
    %s39 = sadd.s32 1, %s28
    %s40 = scalar_select %p37, %s39, %s28
    %p41 = scmp.ge.s32.totalorder %s40, 4
    %s42 = scalar_select %p41, 0, %s40
    %s43 = sadd.s32 1, %s27
    %s44 = scalar_select %p41, %s43, %s27
    %p45 = scmp.ge.s32.totalorder %s44, 2
    %s46 = scalar_select %p45, 0, %s44
    %s47 = ssub.s32 %s27, %s46
    %s48 = ssub.s32 %s28, %s42
    %s49 = sor.u32 %s47, %s48
    %s50 = ssub.s32 %s29, %s38
    %s51 = sor.u32 %s49, %s50
    %p52 = scmp.eq.s32.totalorder %s51, 0
    %s54 = sadd.s32 %s53, 1
    %s55 = scalar_select %p52, %s53, %s54
    %p58 = pneg %p52
    %p59 = scmp.eq.s32.totalorder %s20, 7
    %p60 = por %p58, %p59
    %p61 = scmp.ne.s32.totalorder %s53, %s56
    %p62 = scmp.eq.s32.totalorder %s20, 0
    %p63 = por %p61, %p62
    %p64 = scmp.ne.s32.totalorder %s53, %s56
    %p65 = scmp.eq.s32.totalorder %s25, 7
    %p66 = por %p64, %p65
    %p67 = scmp.ne.s32.totalorder %s56, %s57
    %p68 = scmp.eq.s32.totalorder %s25, 0
    %p69 = por %p67, %p68
    %p70 = scmp.ne.s32.totalorder %s56, %s57
    %p71 = scmp.eq.s32.totalorder %s26, 7
    %p72 = por %p70, %p71
    %p74 = scmp.ne.s32.totalorder %s57, %s73
    %p75 = scmp.eq.s32.totalorder %s26, 0
    %p76 = por %p74, %p75
    %s77 = ssub.s32 %s27, %s46
    %s78 = ssub.s32 %s28, %s42
    %s79 = sor.u32 %s77, %s78
    %s80 = ssub.s32 %s29, %s38
    %s81 = sor.u32 %s79, %s80
    %p82 = scmp.eq.s32.totalorder %s81, 0
    %s84 = sadd.s32 %s83, 1
    %s85 = scalar_select %p82, %s83, %s84
    %p88 = pneg %p82
    %p89 = scmp.eq.s32.totalorder %s20, 7
    %p90 = por %p88, %p89
    %p91 = scmp.ne.s32.totalorder %s83, %s86
    %p92 = scmp.eq.s32.totalorder %s20, 0
    %p93 = por %p91, %p92
    %p94 = scmp.ne.s32.totalorder %s83, %s86
    %p95 = scmp.eq.s32.totalorder %s25, 7
    %p96 = por %p94, %p95
    %p97 = scmp.ne.s32.totalorder %s86, %s87
    %p98 = scmp.eq.s32.totalorder %s25, 0
    %p99 = por %p97, %p98
    %p100 = scmp.ne.s32.totalorder %s86, %s87
    %p101 = scmp.eq.s32.totalorder %s26, 7
    %p102 = por %p100, %p101
    %p104 = scmp.ne.s32.totalorder %s87, %s103
    %p105 = scmp.eq.s32.totalorder %s26, 0
    %p106 = por %p104, %p105
    %s108 = sadd.s32 %s107, 1
    %p111 = scmp.eq.s32.totalorder %s20, 7
    %p112 = scmp.ne.s32.totalorder %s107, %s109
    %p113 = scmp.eq.s32.totalorder %s20, 0
    %p114 = por %p112, %p113
    %p115 = scmp.ne.s32.totalorder %s107, %s109
    %p116 = scmp.eq.s32.totalorder %s25, 7
    %p117 = por %p115, %p116
    %p118 = scmp.ne.s32.totalorder %s109, %s110
    %p119 = scmp.eq.s32.totalorder %s25, 0
    %p120 = por %p118, %p119
    %p121 = scmp.ne.s32.totalorder %s109, %s110
    %p122 = scmp.eq.s32.totalorder %s26, 7
    %p123 = por %p121, %p122
    %p125 = scmp.ne.s32.totalorder %s110, %s124
    %p126 = scmp.eq.s32.totalorder %s26, 0
    %p127 = por %p125, %p126
    %s129 = sadd.s32 %s128, 1
    %p132 = scmp.eq.s32.totalorder %s20, 7
    %p133 = scmp.ne.s32.totalorder %s128, %s130
    %p134 = scmp.eq.s32.totalorder %s20, 0
    %p135 = por %p133, %p134
    %p136 = scmp.ne.s32.totalorder %s128, %s130
    %p137 = scmp.eq.s32.totalorder %s25, 7
    %p138 = por %p136, %p137
    %p139 = scmp.ne.s32.totalorder %s130, %s131
    %p140 = scmp.eq.s32.totalorder %s25, 0
    %p141 = por %p139, %p140
    %p142 = scmp.ne.s32.totalorder %s130, %s131
    %p143 = scmp.eq.s32.totalorder %s26, 7
    %p144 = por %p142, %p143
    %p146 = scmp.ne.s32.totalorder %s131, %s145
    %p147 = scmp.eq.s32.totalorder %s26, 0
    %p148 = por %p146, %p147
    %s150 = sadd.s32 %s149, 1
    %p153 = scmp.eq.s32.totalorder %s20, 7
    %p154 = scmp.ne.s32.totalorder %s149, %s151
    %p155 = scmp.eq.s32.totalorder %s20, 0
    %p156 = por %p154, %p155
    %p157 = scmp.ne.s32.totalorder %s149, %s151
    %p158 = scmp.eq.s32.totalorder %s25, 7
    %p159 = por %p157, %p158
    %p160 = scmp.ne.s32.totalorder %s151, %s152
    %p161 = scmp.eq.s32.totalorder %s25, 0
    %p162 = por %p160, %p161
    %p163 = scmp.ne.s32.totalorder %s151, %s152
    %p164 = scmp.eq.s32.totalorder %s26, 7
    %p165 = por %p163, %p164
    %p167 = scmp.ne.s32.totalorder %s152, %s166
    %p168 = scmp.eq.s32.totalorder %s26, 0
    %p169 = por %p167, %p168
    %s171 = sadd.s32 %s170, 1
    %p174 = scmp.eq.s32.totalorder %s20, 7
    %p175 = scmp.ne.s32.totalorder %s170, %s172
    %p176 = scmp.eq.s32.totalorder %s20, 0
    %p177 = por %p175, %p176
    %p178 = scmp.ne.s32.totalorder %s170, %s172
    %p179 = scmp.eq.s32.totalorder %s25, 7
    %p180 = por %p178, %p179
    %p181 = scmp.ne.s32.totalorder %s172, %s173
    %p182 = scmp.eq.s32.totalorder %s25, 0
    %p183 = por %p181, %p182
    %p184 = scmp.ne.s32.totalorder %s172, %s173
    %p185 = scmp.eq.s32.totalorder %s26, 7
    %p186 = por %p184, %p185
    %p188 = scmp.ne.s32.totalorder %s173, %s187
    %p189 = scmp.eq.s32.totalorder %s26, 0
    %p190 = por %p188, %p189
    %s192 = sadd.s32 %s191, 1
    %p195 = scmp.eq.s32.totalorder %s20, 7
    %p196 = scmp.ne.s32.totalorder %s191, %s193
    %p197 = scmp.eq.s32.totalorder %s20, 0
    %p198 = por %p196, %p197
    %p199 = scmp.ne.s32.totalorder %s191, %s193
    %p200 = scmp.eq.s32.totalorder %s25, 7
    %p201 = por %p199, %p200
    %p202 = scmp.ne.s32.totalorder %s193, %s194
    %p203 = scmp.eq.s32.totalorder %s25, 0
    %p204 = por %p202, %p203
    %p205 = scmp.ne.s32.totalorder %s193, %s194
    %p206 = scmp.eq.s32.totalorder %s26, 7
    %p207 = por %p205, %p206
    %p209 = scmp.ne.s32.totalorder %s194, %s208
    %p210 = scmp.eq.s32.totalorder %s26, 0
    %p211 = por %p209, %p210
    %s213 = sadd.s32 %s212, 1
    %p216 = scmp.eq.s32.totalorder %s20, 7
    %p217 = scmp.ne.s32.totalorder %s212, %s214
    %p218 = scmp.eq.s32.totalorder %s20, 0
    %p219 = por %p217, %p218
    %p220 = scmp.ne.s32.totalorder %s212, %s214
    %p221 = scmp.eq.s32.totalorder %s25, 7
    %p222 = por %p220, %p221
    %p223 = scmp.ne.s32.totalorder %s214, %s215
    %p224 = scmp.eq.s32.totalorder %s25, 0
    %p225 = por %p223, %p224
    %p226 = scmp.ne.s32.totalorder %s214, %s215
    %p227 = scmp.eq.s32.totalorder %s26, 7
    %p228 = por %p226, %p227
    %p230 = scmp.ne.s32.totalorder %s215, %s229
    %p231 = scmp.eq.s32.totalorder %s26, 0
    %p232 = por %p230, %p231
    %s234 = sadd.s32 %s233, 1
    %p237 = scmp.eq.s32.totalorder %s20, 7
    %p238 = scmp.ne.s32.totalorder %s233, %s235
    %p239 = scmp.eq.s32.totalorder %s20, 0
    %p240 = por %p238, %p239
    %p241 = scmp.ne.s32.totalorder %s233, %s235
    %p242 = scmp.eq.s32.totalorder %s25, 7
    %p243 = por %p241, %p242
    %p244 = scmp.ne.s32.totalorder %s235, %s236
    %p245 = scmp.eq.s32.totalorder %s25, 0
    %p246 = por %p244, %p245
    %p247 = scmp.ne.s32.totalorder %s235, %s236
    %p248 = scmp.eq.s32.totalorder %s26, 7
    %p249 = por %p247, %p248
    %p251 = scmp.ne.s32.totalorder %s236, %s250
    %p252 = scmp.eq.s32.totalorder %s26, 0
    %p253 = por %p251, %p252
    %s255 = sadd.s32 %s254, 1
    %p258 = scmp.eq.s32.totalorder %s20, 7
    %p259 = scmp.ne.s32.totalorder %s254, %s256
    %p260 = scmp.eq.s32.totalorder %s20, 0
    %p261 = por %p259, %p260
    %p262 = scmp.ne.s32.totalorder %s254, %s256
    %p263 = scmp.eq.s32.totalorder %s25, 7
    %p264 = por %p262, %p263
    %p265 = scmp.ne.s32.totalorder %s256, %s257
    %p266 = scmp.eq.s32.totalorder %s25, 0
    %p267 = por %p265, %p266
    %p268 = scmp.ne.s32.totalorder %s256, %s257
    %p269 = scmp.eq.s32.totalorder %s26, 7
    %p270 = por %p268, %p269
    %p272 = scmp.ne.s32.totalorder %s257, %s271
    %p273 = scmp.eq.s32.totalorder %s26, 0
    %p274 = por %p272, %p273
    %s276 = sadd.s32 %s275, 1
    %p279 = scmp.eq.s32.totalorder %s20, 7
    %p280 = scmp.ne.s32.totalorder %s275, %s277
    %p281 = scmp.eq.s32.totalorder %s20, 0
    %p282 = por %p280, %p281
    %p283 = scmp.ne.s32.totalorder %s275, %s277
    %p284 = scmp.eq.s32.totalorder %s25, 7
    %p285 = por %p283, %p284
    %p286 = scmp.ne.s32.totalorder %s277, %s278
    %p287 = scmp.eq.s32.totalorder %s25, 0
    %p288 = por %p286, %p287
    %p289 = scmp.ne.s32.totalorder %s277, %s278
    %p290 = scmp.eq.s32.totalorder %s26, 7
    %p291 = por %p289, %p290
    %p293 = scmp.ne.s32.totalorder %s278, %s292
    %p294 = scmp.eq.s32.totalorder %s26, 0
    %p295 = por %p293, %p294
    %s296 = ssub.s32 %s27, %s46
    %s297 = ssub.s32 %s28, %s42
    %s298 = sor.u32 %s296, %s297
    %s299 = ssub.s32 %s29, %s38
    %s300 = sor.u32 %s298, %s299
    %p301 = scmp.eq.s32.totalorder %s300, 0
    %s303 = sadd.s32 %s302, 1
    %s304 = scalar_select %p301, %s302, %s303
    %p307 = pneg %p301
    %p308 = scmp.eq.s32.totalorder %s20, 7
    %p309 = por %p307, %p308
    %p310 = scmp.ne.s32.totalorder %s302, %s305
    %p311 = scmp.eq.s32.totalorder %s20, 0
    %p312 = por %p310, %p311
    %p313 = scmp.ne.s32.totalorder %s302, %s305
    %p314 = scmp.eq.s32.totalorder %s25, 7
    %p315 = por %p313, %p314
    %p316 = scmp.ne.s32.totalorder %s305, %s306
    %p317 = scmp.eq.s32.totalorder %s25, 0
    %p318 = por %p316, %p317
    %p319 = scmp.ne.s32.totalorder %s305, %s306
    %p320 = scmp.eq.s32.totalorder %s26, 7
    %p321 = por %p319, %p320
    %p323 = scmp.ne.s32.totalorder %s306, %s322
    %p324 = scmp.eq.s32.totalorder %s26, 0
    %p325 = por %p323, %p324
    %s326 = ssub.s32 %s27, %s46
    %s327 = ssub.s32 %s28, %s42
    %s328 = sor.u32 %s326, %s327
    %s329 = ssub.s32 %s29, %s38
    %s330 = sor.u32 %s328, %s329
    %p331 = scmp.eq.s32.totalorder %s330, 0
    %s333 = sadd.s32 %s332, 1
    %s334 = scalar_select %p331, %s332, %s333
    %p337 = pneg %p331
    %p338 = scmp.eq.s32.totalorder %s20, 7
    %p339 = por %p337, %p338
    %p340 = scmp.ne.s32.totalorder %s332, %s335
    %p341 = scmp.eq.s32.totalorder %s20, 0
    %p342 = por %p340, %p341
    %p343 = scmp.ne.s32.totalorder %s332, %s335
    %p344 = scmp.eq.s32.totalorder %s25, 7
    %p345 = por %p343, %p344
    %p346 = scmp.ne.s32.totalorder %s335, %s336
    %p347 = scmp.eq.s32.totalorder %s25, 0
    %p348 = por %p346, %p347
    %p349 = scmp.ne.s32.totalorder %s335, %s336
    %p350 = scmp.eq.s32.totalorder %s26, 7
    %p351 = por %p349, %p350
    %p353 = scmp.ne.s32.totalorder %s336, %s352
    %p354 = scmp.eq.s32.totalorder %s26, 0
    %p355 = por %p353, %p354
    %s356 = ssub.s32 %s27, %s46
    %s357 = ssub.s32 %s28, %s42
    %s358 = sor.u32 %s356, %s357
    %p359 = scmp.eq.s32.totalorder %s358, 0
    %s361 = sadd.s32 %s360, 1
    %s362 = scalar_select %p359, %s360, %s361
    %p365 = pneg %p359
    %p366 = scmp.eq.s32.totalorder %s20, 7
    %p367 = por %p365, %p366
    %p368 = scmp.ne.s32.totalorder %s360, %s363
    %p369 = scmp.eq.s32.totalorder %s20, 0
    %p370 = por %p368, %p369
    %p371 = scmp.ne.s32.totalorder %s360, %s363
    %p372 = scmp.eq.s32.totalorder %s25, 7
    %p373 = por %p371, %p372
    %p374 = scmp.ne.s32.totalorder %s363, %s364
    %p375 = scmp.eq.s32.totalorder %s25, 0
    %p376 = por %p374, %p375
    %p377 = scmp.ne.s32.totalorder %s363, %s364
    %p378 = scmp.eq.s32.totalorder %s26, 7
    %p379 = por %p377, %p378
    %p381 = scmp.ne.s32.totalorder %s364, %s380
    %p382 = scmp.eq.s32.totalorder %s26, 0
    %p383 = por %p381, %p382
    %p384 = scmp.le.s32.totalorder 1, %s20
    %p385 = scmp.lt.s32.totalorder %s20, 9
    %p386 = pnand %p384, %p385
    %p387 = pneg %p386
    // Predicated region
    $region9: #{plard_forward.2} parent=5 // pred_check
      _
    $region10: #{plard_forward.2} parent=5 // pred_check_branch
      %389 = sbr.rel (%p386) target = $region12
    $region11: #{plard_forward.2} parent=5 // pred_region
      %s390 = ssub.s32 %s20, 1
      // Predicated region
      $region13: #{plard_forward.2} parent=11 // pred_check
        %p391 = pneg %p120
      $region14: #{plard_forward.2} parent=11 // pred_check_branch
        %393 = sbr.rel (%p391) target = $region16
      $region15: #{plard_forward.2} parent=11 // pred_region
        _
      $region16: #{plard_forward.2} parent=11 // pred_fallthru
        _
      // Predicated region
      $region17: #{plard_forward.2} parent=11 // pred_check
        %p394 = pneg %p141
      $region18: #{plard_forward.2} parent=11 // pred_check_branch
        %396 = sbr.rel (%p394) target = $region20
      $region19: #{plard_forward.2} parent=11 // pred_region
        _
      $region20: #{plard_forward.2} parent=11 // pred_fallthru
        _
      // Predicated region
      $region21: #{plard_forward.2} parent=11 // pred_check
        %p397 = pneg %p162
      $region22: #{plard_forward.2} parent=11 // pred_check_branch
        %399 = sbr.rel (%p397) target = $region24
      $region23: #{plard_forward.2} parent=11 // pred_region
        _
      $region24: #{plard_forward.2} parent=11 // pred_fallthru
        _
      // Predicated region
      $region25: #{plard_forward.2} parent=11 // pred_check
        %p400 = pneg %p183
      $region26: #{plard_forward.2} parent=11 // pred_check_branch
        %402 = sbr.rel (%p400) target = $region28
      $region27: #{plard_forward.2} parent=11 // pred_region
        _
      $region28: #{plard_forward.2} parent=11 // pred_fallthru
        _
      // Predicated region
      $region29: #{plard_forward.2} parent=11 // pred_check
        %p403 = pneg %p204
      $region30: #{plard_forward.2} parent=11 // pred_check_branch
        %405 = sbr.rel (%p403) target = $region32
      $region31: #{plard_forward.2} parent=11 // pred_region
        _
      $region32: #{plard_forward.2} parent=11 // pred_fallthru
        _
      // Predicated region
      $region33: #{plard_forward.2} parent=11 // pred_check
        %p406 = pneg %p225
      $region34: #{plard_forward.2} parent=11 // pred_check_branch
        %408 = sbr.rel (%p406) target = $region36
      $region35: #{plard_forward.2} parent=11 // pred_region
        _
      $region36: #{plard_forward.2} parent=11 // pred_fallthru
        _
      // Predicated region
      $region37: #{plard_forward.2} parent=11 // pred_check
        %p409 = pneg %p246
      $region38: #{plard_forward.2} parent=11 // pred_check_branch
        %411 = sbr.rel (%p409) target = $region40
      $region39: #{plard_forward.2} parent=11 // pred_region
        _
      $region40: #{plard_forward.2} parent=11 // pred_fallthru
        _
      // Predicated region
      $region41: #{plard_forward.2} parent=11 // pred_check
        %p412 = pneg %p267
      $region42: #{plard_forward.2} parent=11 // pred_check_branch
        %414 = sbr.rel (%p412) target = $region44
      $region43: #{plard_forward.2} parent=11 // pred_region
        _
      $region44: #{plard_forward.2} parent=11 // pred_fallthru
        _
      // Predicated region
      $region45: #{plard_forward.2} parent=11 // pred_check
        %p415 = pneg %p288
      $region46: #{plard_forward.2} parent=11 // pred_check_branch
        %417 = sbr.rel (%p415) target = $region48
      $region47: #{plard_forward.2} parent=11 // pred_region
        _
      $region48: #{plard_forward.2} parent=11 // pred_fallthru
        _
    $region12: #{plard_forward.2} parent=5 // pred_fallthru
      _
    %p418 = scmp.lt.s32.totalorder %s20, 8
    // Predicated region
    $region49: #{plard_forward.2} parent=5 // pred_check
      %p419 = pneg %p418
    $region50: #{plard_forward.2} parent=5 // pred_check_branch
      %421 = sbr.rel (%p419) target = $region52
    $region51: #{plard_forward.2} parent=5 // pred_region
      // Predicated region
      $region53: #{plard_forward.2} parent=51 // pred_check
        %p422 = pneg %p63
      $region54: #{plard_forward.2} parent=51 // pred_check_branch
        %424 = sbr.rel (%p422) target = $region56
      $region55: #{plard_forward.2} parent=51 // pred_region
        %p425 = scmp.lt.s32.totalorder %s27, 1
        %s426 = scalar_select %p425, %s27, 1
        %p427 = scmp.lt.s32.totalorder %s28, 3
        %s428 = scalar_select %p427, %s28, 3
        %p429 = scmp.lt.s32.totalorder %s29, 0
        %s430 = scalar_select %p429, %s29, 0
        %s431 = sadd.s32 %s430, %s428
        %s432 = smul.addr %s426, 4
        %s433 = sadd.s32 %s431, %s432
        %s434 = smul.addr %s433, 2
        %s435 = scalar_lea.vmem %s0, %s434
      $region56: #{plard_forward.2} parent=51 // pred_fallthru
        _
      // Predicated region
      $region57: #{plard_forward.2} parent=51 // pred_check
        %p436 = pneg %p93
      $region58: #{plard_forward.2} parent=51 // pred_check_branch
        %438 = sbr.rel (%p436) target = $region60
      $region59: #{plard_forward.2} parent=51 // pred_region
        %p439 = scmp.lt.s32.totalorder %s27, 1
        %s440 = scalar_select %p439, %s27, 1
        %p441 = scmp.lt.s32.totalorder %s28, 3
        %s442 = scalar_select %p441, %s28, 3
        %p443 = scmp.lt.s32.totalorder %s29, 0
        %s444 = scalar_select %p443, %s29, 0
        %s445 = sadd.s32 %s444, %s442
        %s446 = smul.addr %s440, 4
        %s447 = sadd.s32 %s445, %s446
        %s448 = smul.addr %s447, 2
        %s449 = scalar_lea.vmem %s1, %s448
      $region60: #{plard_forward.2} parent=51 // pred_fallthru
        _
    $region52: #{plard_forward.2} parent=5 // pred_fallthru
      _
    %p450 = scmp.le.s32.totalorder 1, %s20
    %p451 = scmp.lt.s32.totalorder %s20, 9
    %p452 = pnand %p450, %p451
    %p453 = pneg %p452
    // Predicated region
    $region61: #{plard_forward.2} parent=5 // pred_check
      _
    $region62: #{plard_forward.2} parent=5 // pred_check_branch
      %455 = sbr.rel (%p452) target = $region64
    $region63: #{plard_forward.2} parent=5 // pred_region
      %s456 = ssub.s32 %s20, 1
      %p457 = scmp.lt.s32.totalorder %s30, 1
      %s458 = scalar_select %p457, %s30, 1
      %p459 = scmp.lt.s32.totalorder %s31, 3
      %s460 = scalar_select %p459, %s31, 3
      %p461 = scmp.lt.s32.totalorder %s32, 0
      %s462 = scalar_select %p461, %s32, 0
      %s463 = sadd.s32 %s462, %s460
      %s464 = smul.addr %s458, 4
      %s465 = sadd.s32 %s463, %s464
      %s466 = smul.addr %s465, 2
      %s467 = scalar_lea.vmem %s0, %s466
      %p468 = pneg %p69
      %p469 = pneg %p66
      %p470 = scmp.lt.s32.totalorder %s30, 1
      %s471 = scalar_select %p470, %s30, 1
      %p472 = scmp.lt.s32.totalorder %s31, 3
      %s473 = scalar_select %p472, %s31, 3
      %p474 = scmp.lt.s32.totalorder %s32, 0
      %s475 = scalar_select %p474, %s32, 0
      %s476 = sadd.s32 %s475, %s473
      %s477 = smul.addr %s471, 4
      %s478 = sadd.s32 %s476, %s477
      %s479 = smul.addr %s478, 2
      %s480 = scalar_lea.vmem %s1, %s479
      %p481 = pneg %p99
      %p482 = pneg %p96
      %p483 = pneg %p120
      %p484 = pneg %p117
      %p485 = pneg %p141
      %p486 = pneg %p138
      %p487 = pneg %p162
      %p488 = pneg %p159
      %p489 = pneg %p183
      %p490 = pneg %p180
      %p491 = pneg %p204
      %p492 = pneg %p201
      %p493 = pneg %p225
      %p494 = pneg %p222
      %p495 = pneg %p246
      %p496 = pneg %p243
      %p497 = pneg %p267
      %p498 = pneg %p264
      %p499 = pneg %p288
      %p500 = pneg %p285
      %p501 = pneg %p318
      %p502 = pneg %p315
      %p503 = scmp.lt.s32.totalorder %s30, 1
      %s504 = scalar_select %p503, %s30, 1
      %p505 = scmp.lt.s32.totalorder %s31, 3
      %s506 = scalar_select %p505, %s31, 3
      %p507 = scmp.lt.s32.totalorder %s32, 0
      %s508 = scalar_select %p507, %s32, 0
      %s509 = sadd.s32 %s508, %s506
      %s510 = smul.addr %s504, 4
      %s511 = sadd.s32 %s509, %s510
      %s512 = smul.addr %s511, 2
      %s513 = scalar_lea.vmem %s11, %s512
      %p514 = pneg %p348
      %p515 = pneg %p345
      %p516 = scmp.lt.s32.totalorder %s30, 1
      %s517 = scalar_select %p516, %s30, 1
      %p518 = scmp.lt.s32.totalorder %s31, 3
      %s519 = scalar_select %p518, %s31, 3
      %p520 = scmp.lt.s32.totalorder %s32, 0
      %s521 = scalar_select %p520, %s32, 0
      %s522 = sadd.s32 %s521, %s519
      %s523 = smul.addr %s517, 4
      %s524 = sadd.s32 %s522, %s523
      %s525 = smul.addr %s524, 2
      %s526 = scalar_lea.vmem %s12, %s525
      %p527 = pneg %p376
      %p528 = pneg %p373
      %p529 = scmp.lt.s32.totalorder %s30, 1
      %s530 = scalar_select %p529, %s30, 1
      %p531 = scmp.lt.s32.totalorder %s31, 3
      %s532 = scalar_select %p531, %s31, 3
      %s533 = smul.addr %s530, 4
      %s534 = sadd.s32 %s532, %s533
      %s535 = smul.addr %s534, 4
      %s536 = scalar_lea.vmem %s13, %s535
      %p537 = scmp.lt.s32.totalorder %s30, 1
      %s538 = scalar_select %p537, %s30, 1
      %p539 = scmp.lt.s32.totalorder %s31, 3
      %s540 = scalar_select %p539, %s31, 3
      %p541 = scmp.lt.s32.totalorder %s32, 0
      %s542 = scalar_select %p541, %s32, 0
      %s543 = sadd.s32 %s542, %s540
      %s544 = smul.addr %s538, 4
      %s545 = sadd.s32 %s543, %s544
      %s546 = smul.addr %s545, 2
      %s547 = scalar_lea.vmem %s0, %s546
      %p548 = scmp.lt.s32.totalorder %s30, 1
      %s549 = scalar_select %p548, %s30, 1
      %p550 = scmp.lt.s32.totalorder %s31, 3
      %s551 = scalar_select %p550, %s31, 3
      %p552 = scmp.lt.s32.totalorder %s32, 0
      %s553 = scalar_select %p552, %s32, 0
      %s554 = sadd.s32 %s553, %s551
      %s555 = smul.addr %s549, 4
      %s556 = sadd.s32 %s554, %s555
      %s557 = smul.addr %s556, 2
      %s558 = scalar_lea.vmem %s1, %s557
      %p559 = scmp.lt.s32.totalorder %s30, 1
      %s560 = scalar_select %p559, %s30, 1
      %p561 = scmp.lt.s32.totalorder %s31, 3
      %s562 = scalar_select %p561, %s31, 3
      %p563 = scmp.lt.s32.totalorder %s32, 0
      %s564 = scalar_select %p563, %s32, 0
      %s565 = sadd.s32 %s564, %s562
      %s566 = smul.addr %s560, 4
      %s567 = sadd.s32 %s565, %s566
      %s568 = smul.addr %s567, 2
      %s569 = scalar_lea.vmem %s11, %s568
      %p570 = scmp.lt.s32.totalorder %s30, 1
      %s571 = scalar_select %p570, %s30, 1
      %p572 = scmp.lt.s32.totalorder %s31, 3
      %s573 = scalar_select %p572, %s31, 3
      %p574 = scmp.lt.s32.totalorder %s32, 0
      %s575 = scalar_select %p574, %s32, 0
      %s576 = sadd.s32 %s575, %s573
      %s577 = smul.addr %s571, 4
      %s578 = sadd.s32 %s576, %s577
      %s579 = smul.addr %s578, 2
      %s580 = scalar_lea.vmem %s12, %s579
      %p581 = scmp.lt.s32.totalorder %s30, 1
      %s582 = scalar_select %p581, %s30, 1
      %p583 = scmp.lt.s32.totalorder %s31, 3
      %s584 = scalar_select %p583, %s31, 3
      %s585 = smul.addr %s582, 4
      %s586 = sadd.s32 %s584, %s585
      %s587 = smul.addr %s586, 4
      %s588 = scalar_lea.vmem %s13, %s587
      %v589 = vld [vmem:[%s547] sm:$0x3]
      %v590 = vunpack.c.l.bf16 %v589
      %v591 = vld [vmem:[%s558] sm:$0x3]
      %v592 = vunpack.c.l.bf16 %v591
      %v593 = vld [vmem:[%s2] sm:$0xff]
      %v594 = vld [vmem:[%s3] sm:$0xff]
      %596 = vset.pattern.permute.xlu0 0
      %597 = vperm.xlu0 %596, %v594
      %v598 = vpop.permute.xlu0 %597
      %vm600 = vcmask 31744
      %v602 = vsel %vm600, %v593, 0
      %vm604 = vcmask 1043456
      %v606 = vsel %vm604, %v590, 0
      %608 = vmatprep.subr.mxu0 0.0
      %609 = vmatpush1.msra.mxu0 %v606
      %610 = vmatprep.subr.mxu0 0.0
      %611 = vmatpush1.msra.mxu0 0.0
      %612 = vmatprep.subr.mxu0 0.0
      %613 = vmatpush1.msra.mxu0 0.0
      %614 = vmatprep.subr.mxu0 0.0
      %615 = vmatpush1.msra.mxu0 0.0
      %616 = vmatprep.subr.mxu0 0.0
      %617 = vmatpush1.msra.mxu0 0.0
      %618 = vmatprep.subr.mxu0 0.0
      %619 = vmatpush1.msra.mxu0 0.0
      %620 = vmatprep.subr.mxu0 0.0
      %621 = vmatpush1.msra.mxu0 0.0
      %622 = vmatprep.subr.mxu0 0.0
      %623 = vmatpush1.msra.mxu0 0.0
      %624 = vmatprep.subr.mxu0 0.0
      %625 = vmatpush1.msra.mxu0 0.0
      %626 = vmatprep.subr.mxu0 0.0
      %627 = vmatpush1.msra.mxu0 0.0
      %628 = vmatprep.subr.mxu0 0.0
      %629 = vmatpush1.msra.mxu0 0.0
      %630 = vmatprep.subr.mxu0 0.0
      %631 = vmatpush1.msra.mxu0 0.0
      %632 = vmatprep.subr.mxu0 0.0
      %633 = vmatpush1.msra.mxu0 0.0
      %634 = vmatprep.subr.mxu0 0.0
      %635 = vmatpush1.msra.mxu0 0.0
      %636 = vmatprep.subr.mxu0 0.0
      %637 = vmatpush1.msra.mxu0 0.0
      %638 = vmatprep.subr.mxu0 0.0
      %639 = vmatpush1.msra.mxu0 0.0
      %640 = vmatprep.subr.mxu0 0.0
      %641 = vmatpush1.msra.mxu0 0.0
      %642 = vmatprep.subr.mxu0 0.0
      %643 = vmatpush1.msra.mxu0 0.0
      %644 = vmatprep.subr.mxu0 0.0
      %645 = vmatpush1.msra.mxu0 0.0
      %646 = vmatprep.subr.mxu0 0.0
      %647 = vmatpush1.msra.mxu0 0.0
      %648 = vmatprep.subr.mxu0 0.0
      %649 = vmatpush1.msra.mxu0 0.0
      %650 = vmatprep.subr.mxu0 0.0
      %651 = vmatpush1.msra.mxu0 0.0
      %652 = vmatprep.subr.mxu0 0.0
      %653 = vmatpush1.msra.mxu0 0.0
      %654 = vmatprep.subr.mxu0 0.0
      %655 = vmatpush1.msra.mxu0 0.0
      %656 = vmatprep.subr.mxu0 0.0
      %657 = vmatpush1.msra.mxu0 0.0
      %658 = vmatprep.subr.mxu0 0.0
      %659 = vmatpush1.msra.mxu0 0.0
      %660 = vmatprep.subr.mxu0 0.0
      %661 = vmatpush1.msra.mxu0 0.0
      %662 = vmatprep.subr.mxu0 0.0
      %663 = vmatpush1.msra.mxu0 0.0
      %664 = vmatprep.subr.mxu0 0.0
      %665 = vmatpush1.msra.mxu0 0.0
      %666 = vmatprep.subr.mxu0 0.0
      %667 = vmatpush1.msra.mxu0 0.0
      %668 = vmatprep.subr.mxu0 0.0
      %669 = vmatpush1.msra.mxu0 0.0
      %670 = vmatprep.subr.mxu0 0.0
      %671 = vmatpush1.msra.mxu0 0.0
      %672 = vmatprep.mubr.f32.mxu0 0.0
      %673 = vmatmul.mubr.f32.gmra.mrb[0].mxu0 %v602
      %v674 = vpop.f32.mrb[0].mxu0
      %v675 = vadd.f32 %v598, %v674
      %v676 = vpop.f32.mrb[0].mxu0
      %677 = vdwg.mxu0
      %v678 = vld [vmem:[%s4] sm:$0xff]
      %v679 = vld [vmem:[%s5] sm:$0xff]
      %681 = vset.pattern.permute.xlu0 0
      %682 = vperm.xlu0 %681, %v679
      %v683 = vpop.permute.xlu0 %682
      %v686 = vsel %vm600, %v678, 0
      %v689 = vsel %vm604, %v592, 0
      %691 = vmatprep.subr.mxu0 0.0
      %692 = vmatpush1.msra.mxu0 %v689
      %693 = vmatprep.subr.mxu0 0.0
      %694 = vmatpush1.msra.mxu0 0.0
      %695 = vmatprep.subr.mxu0 0.0
      %696 = vmatpush1.msra.mxu0 0.0
      %697 = vmatprep.subr.mxu0 0.0
      %698 = vmatpush1.msra.mxu0 0.0
      %699 = vmatprep.subr.mxu0 0.0
      %700 = vmatpush1.msra.mxu0 0.0
      %701 = vmatprep.subr.mxu0 0.0
      %702 = vmatpush1.msra.mxu0 0.0
      %703 = vmatprep.subr.mxu0 0.0
      %704 = vmatpush1.msra.mxu0 0.0
      %705 = vmatprep.subr.mxu0 0.0
      %706 = vmatpush1.msra.mxu0 0.0
      %707 = vmatprep.subr.mxu0 0.0
      %708 = vmatpush1.msra.mxu0 0.0
      %709 = vmatprep.subr.mxu0 0.0
      %710 = vmatpush1.msra.mxu0 0.0
      %711 = vmatprep.subr.mxu0 0.0
      %712 = vmatpush1.msra.mxu0 0.0
      %713 = vmatprep.subr.mxu0 0.0
      %714 = vmatpush1.msra.mxu0 0.0
      %715 = vmatprep.subr.mxu0 0.0
      %716 = vmatpush1.msra.mxu0 0.0
      %717 = vmatprep.subr.mxu0 0.0
      %718 = vmatpush1.msra.mxu0 0.0
      %719 = vmatprep.subr.mxu0 0.0
      %720 = vmatpush1.msra.mxu0 0.0
      %721 = vmatprep.subr.mxu0 0.0
      %722 = vmatpush1.msra.mxu0 0.0
      %723 = vmatprep.subr.mxu0 0.0
      %724 = vmatpush1.msra.mxu0 0.0
      %725 = vmatprep.subr.mxu0 0.0
      %726 = vmatpush1.msra.mxu0 0.0
      %727 = vmatprep.subr.mxu0 0.0
      %728 = vmatpush1.msra.mxu0 0.0
      %729 = vmatprep.subr.mxu0 0.0
      %730 = vmatpush1.msra.mxu0 0.0
      %731 = vmatprep.subr.mxu0 0.0
      %732 = vmatpush1.msra.mxu0 0.0
      %733 = vmatprep.subr.mxu0 0.0
      %734 = vmatpush1.msra.mxu0 0.0
      %735 = vmatprep.subr.mxu0 0.0
      %736 = vmatpush1.msra.mxu0 0.0
      %737 = vmatprep.subr.mxu0 0.0
      %738 = vmatpush1.msra.mxu0 0.0
      %739 = vmatprep.subr.mxu0 0.0
      %740 = vmatpush1.msra.mxu0 0.0
      %741 = vmatprep.subr.mxu0 0.0
      %742 = vmatpush1.msra.mxu0 0.0
      %743 = vmatprep.subr.mxu0 0.0
      %744 = vmatpush1.msra.mxu0 0.0
      %745 = vmatprep.subr.mxu0 0.0
      %746 = vmatpush1.msra.mxu0 0.0
      %747 = vmatprep.subr.mxu0 0.0
      %748 = vmatpush1.msra.mxu0 0.0
      %749 = vmatprep.subr.mxu0 0.0
      %750 = vmatpush1.msra.mxu0 0.0
      %751 = vmatprep.subr.mxu0 0.0
      %752 = vmatpush1.msra.mxu0 0.0
      %753 = vmatprep.subr.mxu0 0.0
      %754 = vmatpush1.msra.mxu0 0.0
      %755 = vmatprep.mubr.f32.mxu0 0.0
      %756 = vmatmul.mubr.f32.gmra.mrb[0].mxu0 %v686
      %v757 = vpop.f32.mrb[0].mxu0
      %v758 = vadd.f32 %v683, %v757
      %v759 = vpop.f32.mrb[0].mxu0
      %760 = vdwg.mxu0
      %v761 = vmax.f32 %v675, 0.0
      %v762 = vmax.f32 %v758, 0.0
      %v763 = vld [vmem:[%s6] sm:$0xff]
      %v764 = vld [vmem:[%s6 + $0x8] sm:$0xff]
      %v765 = vld [vmem:[%s7] sm:$0xff]
      %v766 = vld [vmem:[%s7 + $0x8] sm:$0xff]
      %v768 = vsel %vm600, %v765, 0
      %v771 = vsel %vm600, %v766, 0
      %v774 = vsel %vm604, %v762, 0
      %776 = vmatprep.subr.mxu0 0.0
      %777 = vmatpush1.msra.mxu0 %v774
      %778 = vmatprep.subr.mxu0 0.0
      %779 = vmatpush1.msra.mxu0 0.0
      %780 = vmatprep.subr.mxu0 0.0
      %781 = vmatpush1.msra.mxu0 0.0
      %782 = vmatprep.subr.mxu0 0.0
      %783 = vmatpush1.msra.mxu0 0.0
      %784 = vmatprep.subr.mxu0 0.0
      %785 = vmatpush1.msra.mxu0 0.0
      %786 = vmatprep.subr.mxu0 0.0
      %787 = vmatpush1.msra.mxu0 0.0
      %788 = vmatprep.subr.mxu0 0.0
      %789 = vmatpush1.msra.mxu0 0.0
      %790 = vmatprep.subr.mxu0 0.0
      %791 = vmatpush1.msra.mxu0 0.0
      %792 = vmatprep.subr.mxu0 0.0
      %793 = vmatpush1.msra.mxu0 0.0
      %794 = vmatprep.subr.mxu0 0.0
      %795 = vmatpush1.msra.mxu0 0.0
      %796 = vmatprep.subr.mxu0 0.0
      %797 = vmatpush1.msra.mxu0 0.0
      %798 = vmatprep.subr.mxu0 0.0
      %799 = vmatpush1.msra.mxu0 0.0
      %800 = vmatprep.subr.mxu0 0.0
      %801 = vmatpush1.msra.mxu0 0.0
      %802 = vmatprep.subr.mxu0 0.0
      %803 = vmatpush1.msra.mxu0 0.0
      %804 = vmatprep.subr.mxu0 0.0
      %805 = vmatpush1.msra.mxu0 0.0
      %806 = vmatprep.subr.mxu0 0.0
      %807 = vmatpush1.msra.mxu0 0.0
      %808 = vmatprep.subr.mxu0 0.0
      %809 = vmatpush1.msra.mxu0 0.0
      %810 = vmatprep.subr.mxu0 0.0
      %811 = vmatpush1.msra.mxu0 0.0
      %812 = vmatprep.subr.mxu0 0.0
      %813 = vmatpush1.msra.mxu0 0.0
      %814 = vmatprep.subr.mxu0 0.0
      %815 = vmatpush1.msra.mxu0 0.0
      %816 = vmatprep.subr.mxu0 0.0
      %817 = vmatpush1.msra.mxu0 0.0
      %818 = vmatprep.subr.mxu0 0.0
      %819 = vmatpush1.msra.mxu0 0.0
      %820 = vmatprep.subr.mxu0 0.0
      %821 = vmatpush1.msra.mxu0 0.0
      %822 = vmatprep.subr.mxu0 0.0
      %823 = vmatpush1.msra.mxu0 0.0
      %824 = vmatprep.subr.mxu0 0.0
      %825 = vmatpush1.msra.mxu0 0.0
      %826 = vmatprep.subr.mxu0 0.0
      %827 = vmatpush1.msra.mxu0 0.0
      %828 = vmatprep.subr.mxu0 0.0
      %829 = vmatpush1.msra.mxu0 0.0
      %830 = vmatprep.subr.mxu0 0.0
      %831 = vmatpush1.msra.mxu0 0.0
      %832 = vmatprep.subr.mxu0 0.0
      %833 = vmatpush1.msra.mxu0 0.0
      %834 = vmatprep.subr.mxu0 0.0
      %835 = vmatpush1.msra.mxu0 0.0
      %836 = vmatprep.subr.mxu0 0.0
      %837 = vmatpush1.msra.mxu0 0.0
      %838 = vmatprep.subr.mxu0 0.0
      %839 = vmatpush1.msra.mxu0 0.0
      %840 = vmatprep.mubr.f32.mxu0 0.0
      %841 = vmatmul.mubr.f32.gmra.mrb[0].mxu0 %v768
      %v842 = vpop.f32.mrb[0].mxu0
      %v843 = vadd.f32 0.0, %v842
      %v844 = vpop.f32.mrb[0].mxu0
      %845 = vmatprep.mubr.f32.mxu0 0.0
      %846 = vmatmul.mubr.f32.gmra.mrb[0].mxu0 %v771
      %v847 = vpop.f32.mrb[0].mxu0
      %v848 = vadd.f32 0.0, %v847
      %v849 = vpop.f32.mrb[0].mxu0
      %850 = vdwg.mxu0
      %v852 = vsel %vm600, %v763, 0
      %v855 = vsel %vm600, %v764, 0
      %v858 = vsel %vm604, %v761, 0
      %860 = vmatprep.subr.mxu0 0.0
      %861 = vmatpush1.msra.mxu0 %v858
      %862 = vmatprep.subr.mxu0 0.0
      %863 = vmatpush1.msra.mxu0 0.0
      %864 = vmatprep.subr.mxu0 0.0
      %865 = vmatpush1.msra.mxu0 0.0
      %866 = vmatprep.subr.mxu0 0.0
      %867 = vmatpush1.msra.mxu0 0.0
      %868 = vmatprep.subr.mxu0 0.0
      %869 = vmatpush1.msra.mxu0 0.0
      %870 = vmatprep.subr.mxu0 0.0
      %871 = vmatpush1.msra.mxu0 0.0
      %872 = vmatprep.subr.mxu0 0.0
      %873 = vmatpush1.msra.mxu0 0.0
      %874 = vmatprep.subr.mxu0 0.0
      %875 = vmatpush1.msra.mxu0 0.0
      %876 = vmatprep.subr.mxu0 0.0
      %877 = vmatpush1.msra.mxu0 0.0
      %878 = vmatprep.subr.mxu0 0.0
      %879 = vmatpush1.msra.mxu0 0.0
      %880 = vmatprep.subr.mxu0 0.0
      %881 = vmatpush1.msra.mxu0 0.0
      %882 = vmatprep.subr.mxu0 0.0
      %883 = vmatpush1.msra.mxu0 0.0
      %884 = vmatprep.subr.mxu0 0.0
      %885 = vmatpush1.msra.mxu0 0.0
      %886 = vmatprep.subr.mxu0 0.0
      %887 = vmatpush1.msra.mxu0 0.0
      %888 = vmatprep.subr.mxu0 0.0
      %889 = vmatpush1.msra.mxu0 0.0
      %890 = vmatprep.subr.mxu0 0.0
      %891 = vmatpush1.msra.mxu0 0.0
      %892 = vmatprep.subr.mxu0 0.0
      %893 = vmatpush1.msra.mxu0 0.0
      %894 = vmatprep.subr.mxu0 0.0
      %895 = vmatpush1.msra.mxu0 0.0
      %896 = vmatprep.subr.mxu0 0.0
      %897 = vmatpush1.msra.mxu0 0.0
      %898 = vmatprep.subr.mxu0 0.0
      %899 = vmatpush1.msra.mxu0 0.0
      %900 = vmatprep.subr.mxu0 0.0
      %901 = vmatpush1.msra.mxu0 0.0
      %902 = vmatprep.subr.mxu0 0.0
      %903 = vmatpush1.msra.mxu0 0.0
      %904 = vmatprep.subr.mxu0 0.0
      %905 = vmatpush1.msra.mxu0 0.0
      %906 = vmatprep.subr.mxu0 0.0
      %907 = vmatpush1.msra.mxu0 0.0
      %908 = vmatprep.subr.mxu0 0.0
      %909 = vmatpush1.msra.mxu0 0.0
      %910 = vmatprep.subr.mxu0 0.0
      %911 = vmatpush1.msra.mxu0 0.0
      %912 = vmatprep.subr.mxu0 0.0
      %913 = vmatpush1.msra.mxu0 0.0
      %914 = vmatprep.subr.mxu0 0.0
      %915 = vmatpush1.msra.mxu0 0.0
      %916 = vmatprep.subr.mxu0 0.0
      %917 = vmatpush1.msra.mxu0 0.0
      %918 = vmatprep.subr.mxu0 0.0
      %919 = vmatpush1.msra.mxu0 0.0
      %920 = vmatprep.subr.mxu0 0.0
      %921 = vmatpush1.msra.mxu0 0.0
      %922 = vmatprep.subr.mxu0 0.0
      %923 = vmatpush1.msra.mxu0 0.0
      %924 = vmatprep.mubr.f32.mxu0 0.0
      %925 = vmatmul.mubr.f32.gmra.mrb[0].mxu0 %v852
      %v926 = vpop.f32.mrb[0].mxu0
      %v927 = vadd.f32 %v843, %v926
      %v928 = vpop.f32.mrb[0].mxu0
      %929 = vmatprep.mubr.f32.mxu0 0.0
      %930 = vmatmul.mubr.f32.gmra.mrb[0].mxu0 %v855
      %v931 = vpop.f32.mrb[0].mxu0
      %v932 = vadd.f32 %v848, %v931
      %v933 = vpop.f32.mrb[0].mxu0
      %934 = vdwg.mxu0
      %v935 = vld [vmem:[%s8] sm:$0xff]
      %v936 = vld [vmem:[%s8 + $0x8] sm:$0xff]
      %938 = vset.pattern.permute.xlu0 0
      %939 = vperm.xlu0 %938, %v935
      %v940 = vpop.permute.xlu0 %939
      %943 = vset.pattern.permute.xlu0 0
      %944 = vperm.xlu0 %943, %v936
      %v945 = vpop.permute.xlu0 %944
      %v947 = vadd.f32 %v927, %v940
      %v948 = vadd.f32 %v932, %v945
      %v949 = vadd.f32 %v947, 1.0
      %v951 = vrot.slane %v758, 4
      %v953 = vmul.f32 %v949, %v951
      %v955 = vrot.slane %v947, 4
      %v957 = vadd.f32 %v953, %v955
      %v958 = vmax.f32 %v957, 0.0
      %v959 = vadd.f32 %v948, 1.0
      %v961 = vrot.slane %v675, 4
      %v963 = vmul.f32 %v959, %v961
      %v965 = vrot.slane %v948, 4
      %v967 = vadd.f32 %v963, %v965
      %v968 = vmax.f32 %v967, 0.0
      %v969 = vld [vmem:[%s9] sm:$0xf]
      %v970 = vld [vmem:[%s10] sm:$0xf]
      %972 = vset.pattern.permute.xlu0 0
      %973 = vperm.xlu0 %972, %v970
      %v974 = vpop.permute.xlu0 %973
      %v977 = vsel %vm600, %v969, 0
      %v980 = vsel %vm604, %v958, 0
      %982 = vmatprep.subr.mxu0 0.0
      %983 = vmatpush1.msra.mxu0 %v980
      %984 = vmatprep.subr.mxu0 0.0
      %985 = vmatpush1.msra.mxu0 0.0
      %986 = vmatprep.subr.mxu0 0.0
      %987 = vmatpush1.msra.mxu0 0.0
      %988 = vmatprep.subr.mxu0 0.0
      %989 = vmatpush1.msra.mxu0 0.0
      %990 = vmatprep.subr.mxu0 0.0
      %991 = vmatpush1.msra.mxu0 0.0
      %992 = vmatprep.subr.mxu0 0.0
      %993 = vmatpush1.msra.mxu0 0.0
      %994 = vmatprep.subr.mxu0 0.0
      %995 = vmatpush1.msra.mxu0 0.0
      %996 = vmatprep.subr.mxu0 0.0
      %997 = vmatpush1.msra.mxu0 0.0
      %998 = vmatprep.subr.mxu0 0.0
      %999 = vmatpush1.msra.mxu0 0.0
      %1000 = vmatprep.subr.mxu0 0.0
      %1001 = vmatpush1.msra.mxu0 0.0
      %1002 = vmatprep.subr.mxu0 0.0
      %1003 = vmatpush1.msra.mxu0 0.0
      %1004 = vmatprep.subr.mxu0 0.0
      %1005 = vmatpush1.msra.mxu0 0.0
      %1006 = vmatprep.subr.mxu0 0.0
      %1007 = vmatpush1.msra.mxu0 0.0
      %1008 = vmatprep.subr.mxu0 0.0
      %1009 = vmatpush1.msra.mxu0 0.0
      %1010 = vmatprep.subr.mxu0 0.0
      %1011 = vmatpush1.msra.mxu0 0.0
      %1012 = vmatprep.subr.mxu0 0.0
      %1013 = vmatpush1.msra.mxu0 0.0
      %1014 = vmatprep.subr.mxu0 0.0
      %1015 = vmatpush1.msra.mxu0 0.0
      %1016 = vmatprep.subr.mxu0 0.0
      %1017 = vmatpush1.msra.mxu0 0.0
      %1018 = vmatprep.subr.mxu0 0.0
      %1019 = vmatpush1.msra.mxu0 0.0
      %1020 = vmatprep.subr.mxu0 0.0
      %1021 = vmatpush1.msra.mxu0 0.0
      %1022 = vmatprep.subr.mxu0 0.0
      %1023 = vmatpush1.msra.mxu0 0.0
      %1024 = vmatprep.subr.mxu0 0.0
      %1025 = vmatpush1.msra.mxu0 0.0
      %1026 = vmatprep.subr.mxu0 0.0
      %1027 = vmatpush1.msra.mxu0 0.0
      %1028 = vmatprep.subr.mxu0 0.0
      %1029 = vmatpush1.msra.mxu0 0.0
      %1030 = vmatprep.subr.mxu0 0.0
      %1031 = vmatpush1.msra.mxu0 0.0
      %1032 = vmatprep.subr.mxu0 0.0
      %1033 = vmatpush1.msra.mxu0 0.0
      %1034 = vmatprep.subr.mxu0 0.0
      %1035 = vmatpush1.msra.mxu0 0.0
      %1036 = vmatprep.subr.mxu0 0.0
      %1037 = vmatpush1.msra.mxu0 0.0
      %1038 = vmatprep.subr.mxu0 0.0
      %1039 = vmatpush1.msra.mxu0 0.0
      %1040 = vmatprep.subr.mxu0 0.0
      %1041 = vmatpush1.msra.mxu0 0.0
      %1042 = vmatprep.subr.mxu0 0.0
      %1043 = vmatpush1.msra.mxu0 0.0
      %1044 = vmatprep.subr.mxu0 0.0
      %1045 = vmatpush1.msra.mxu0 0.0
      %1046 = vmatprep.mubr.f32.mxu0 0.0
      %1047 = vmatmul.mubr.f32.gmra.mrb[0].mxu0 %v977
      %v1048 = vpop.f32.mrb[0].mxu0
      %v1049 = vadd.f32 %v974, %v1048
      %v1050 = vpop.f32.mrb[0].mxu0
      %1051 = vdwg.mxu0
      %s1052 = scalar_lea.vmem %s9, 4
      %v1053 = vld [vmem:[%s1052] sm:$0xf]
      %s1054 = scalar_lea.vmem %s10, 4
      %v1055 = vld [vmem:[%s1054] sm:$0xf]
      %1057 = vset.pattern.permute.xlu0 0
      %1058 = vperm.xlu0 %1057, %v1055
      %v1059 = vpop.permute.xlu0 %1058
      %v1062 = vsel %vm600, %v1053, 0
      %v1065 = vsel %vm604, %v968, 0
      %1067 = vmatprep.subr.mxu0 0.0
      %1068 = vmatpush1.msra.mxu0 %v1065
      %1069 = vmatprep.subr.mxu0 0.0
      %1070 = vmatpush1.msra.mxu0 0.0
      %1071 = vmatprep.subr.mxu0 0.0
      %1072 = vmatpush1.msra.mxu0 0.0
      %1073 = vmatprep.subr.mxu0 0.0
      %1074 = vmatpush1.msra.mxu0 0.0
      %1075 = vmatprep.subr.mxu0 0.0
      %1076 = vmatpush1.msra.mxu0 0.0
      %1077 = vmatprep.subr.mxu0 0.0
      %1078 = vmatpush1.msra.mxu0 0.0
      %1079 = vmatprep.subr.mxu0 0.0
      %1080 = vmatpush1.msra.mxu0 0.0
      %1081 = vmatprep.subr.mxu0 0.0
      %1082 = vmatpush1.msra.mxu0 0.0
      %1083 = vmatprep.subr.mxu0 0.0
      %1084 = vmatpush1.msra.mxu0 0.0
      %1085 = vmatprep.subr.mxu0 0.0
      %1086 = vmatpush1.msra.mxu0 0.0
      %1087 = vmatprep.subr.mxu0 0.0
      %1088 = vmatpush1.msra.mxu0 0.0
      %1089 = vmatprep.subr.mxu0 0.0
      %1090 = vmatpush1.msra.mxu0 0.0
      %1091 = vmatprep.subr.mxu0 0.0
      %1092 = vmatpush1.msra.mxu0 0.0
      %1093 = vmatprep.subr.mxu0 0.0
      %1094 = vmatpush1.msra.mxu0 0.0
      %1095 = vmatprep.subr.mxu0 0.0
      %1096 = vmatpush1.msra.mxu0 0.0
      %1097 = vmatprep.subr.mxu0 0.0
      %1098 = vmatpush1.msra.mxu0 0.0
      %1099 = vmatprep.subr.mxu0 0.0
      %1100 = vmatpush1.msra.mxu0 0.0
      %1101 = vmatprep.subr.mxu0 0.0
      %1102 = vmatpush1.msra.mxu0 0.0
      %1103 = vmatprep.subr.mxu0 0.0
      %1104 = vmatpush1.msra.mxu0 0.0
      %1105 = vmatprep.subr.mxu0 0.0
      %1106 = vmatpush1.msra.mxu0 0.0
      %1107 = vmatprep.subr.mxu0 0.0
      %1108 = vmatpush1.msra.mxu0 0.0
      %1109 = vmatprep.subr.mxu0 0.0
      %1110 = vmatpush1.msra.mxu0 0.0
      %1111 = vmatprep.subr.mxu0 0.0
      %1112 = vmatpush1.msra.mxu0 0.0
      %1113 = vmatprep.subr.mxu0 0.0
      %1114 = vmatpush1.msra.mxu0 0.0
      %1115 = vmatprep.subr.mxu0 0.0
      %1116 = vmatpush1.msra.mxu0 0.0
      %1117 = vmatprep.subr.mxu0 0.0
      %1118 = vmatpush1.msra.mxu0 0.0
      %1119 = vmatprep.subr.mxu0 0.0
      %1120 = vmatpush1.msra.mxu0 0.0
      %1121 = vmatprep.subr.mxu0 0.0
      %1122 = vmatpush1.msra.mxu0 0.0
      %1123 = vmatprep.subr.mxu0 0.0
      %1124 = vmatpush1.msra.mxu0 0.0
      %1125 = vmatprep.subr.mxu0 0.0
      %1126 = vmatpush1.msra.mxu0 0.0
      %1127 = vmatprep.subr.mxu0 0.0
      %1128 = vmatpush1.msra.mxu0 0.0
      %1129 = vmatprep.subr.mxu0 0.0
      %1130 = vmatpush1.msra.mxu0 0.0
      %1131 = vmatprep.mubr.f32.mxu0 0.0
      %1132 = vmatmul.mubr.f32.gmra.mrb[0].mxu0 %v1062
      %v1133 = vpop.f32.mrb[0].mxu0
      %v1134 = vadd.f32 %v1059, %v1133
      %v1135 = vpop.f32.mrb[0].mxu0
      %1136 = vdwg.mxu0
      %v1137 = vmul.f32 %v1049, 0.1
      %v1138 = vadd.f32 %v590, %v1137
      %v1139 = vmul.f32 %v1134, 0.1
      %v1140 = vadd.f32 %v592, %v1139
      %v1141 = vpack.c.bf16 %v1138, %v1138
      %vm1142 = vcmask 517120
      %1143 = vst.msk [vmem:[%s569] sm:$0x3] %vm1142, %v1141
      %v1144 = vpack.c.bf16 %v1140, %v1140
      %1145 = vst.msk [vmem:[%s580] sm:$0x3] %vm1142, %v1144
      %v1146 = vsub.f32 %v1138, %v1140
      %p1147 = scmp.eq.s32.totalorder %s32, 0
      // Predicated region
      $region65: #{plard_forward.2} parent=63 // pred_check
        %p1148 = pneg %p1147
      $region66: #{plard_forward.2} parent=63 // pred_check_branch
        %1150 = sbr.rel (%p1148) target = $region68
      $region67: #{plard_forward.2} parent=63 // pred_region
        %vm1151 = vcmask 3072
        %1152 = vst.msk [vmem:[%s588] sm:$0xf] %vm1151, 0.0
      $region68: #{plard_forward.2} parent=63 // pred_fallthru
        _
      %v1153 = vld [vmem:[%s588] sm:$0xf]
      %vm1154 = vcmask 519168
      %v1155 = vsel %vm1154, %v1146, 0.0
      %1156 = vadd.xlane.f32.xlu0 %v1155
      %v1157 = vpop.xlane.xlu0 %1156
      %v1158 = vadd.f32 %v1153, %v1157
      %vm1159 = vcmask 3072
      %1160 = vst.msk [vmem:[%s588] sm:$0xf] %vm1159, %v1158
      %p1161 = scmp.lt.s32.totalorder %s30, 1
      %s1162 = scalar_select %p1161, %s30, 1
      %p1163 = scmp.lt.s32.totalorder %s31, 3
      %s1164 = scalar_select %p1163, %s31, 3
      %p1165 = scmp.lt.s32.totalorder %s32, 0
      %s1166 = scalar_select %p1165, %s32, 0
      %s1167 = sadd.s32 %s1166, %s1164
      %s1168 = smul.addr %s1162, 4
      %s1169 = sadd.s32 %s1167, %s1168
      %s1170 = smul.addr %s1169, 2
      %s1171 = scalar_lea.vmem %s11, %s1170
      %p1172 = scmp.lt.s32.totalorder %s30, 1
      %s1173 = scalar_select %p1172, %s30, 1
      %p1174 = scmp.lt.s32.totalorder %s31, 3
      %s1175 = scalar_select %p1174, %s31, 3
      %p1176 = scmp.lt.s32.totalorder %s32, 0
      %s1177 = scalar_select %p1176, %s32, 0
      %s1178 = sadd.s32 %s1177, %s1175
      %s1179 = smul.addr %s1173, 4
      %s1180 = sadd.s32 %s1178, %s1179
      %s1181 = smul.addr %s1180, 2
      %s1182 = scalar_lea.vmem %s12, %s1181
      %p1183 = scmp.lt.s32.totalorder %s30, 1
      %s1184 = scalar_select %p1183, %s30, 1
      %p1185 = scmp.lt.s32.totalorder %s31, 3
      %s1186 = scalar_select %p1185, %s31, 3
      %s1187 = smul.addr %s1184, 4
      %s1188 = sadd.s32 %s1186, %s1187
      %s1189 = smul.addr %s1188, 4
      %s1190 = scalar_lea.vmem %s13, %s1189
      // Predicated region
      $region69: #{plard_forward.2} parent=63 // pred_check
        %p1191 = pneg %p315
      $region70: #{plard_forward.2} parent=63 // pred_check_branch
        %1193 = sbr.rel (%p1191) target = $region72
      $region71: #{plard_forward.2} parent=63 // pred_region
        _
      $region72: #{plard_forward.2} parent=63 // pred_fallthru
        _
      // Predicated region
      $region73: #{plard_forward.2} parent=63 // pred_check
        %p1194 = pneg %p345
      $region74: #{plard_forward.2} parent=63 // pred_check_branch
        %1196 = sbr.rel (%p1194) target = $region76
      $region75: #{plard_forward.2} parent=63 // pred_region
        _
      $region76: #{plard_forward.2} parent=63 // pred_fallthru
        _
      // Predicated region
      $region77: #{plard_forward.2} parent=63 // pred_check
        %p1197 = pneg %p373
      $region78: #{plard_forward.2} parent=63 // pred_check_branch
        %1199 = sbr.rel (%p1197) target = $region80
      $region79: #{plard_forward.2} parent=63 // pred_region
        _
      $region80: #{plard_forward.2} parent=63 // pred_fallthru
        _
    $region64: #{plard_forward.2} parent=5 // pred_fallthru
      _
    %p1200 = scmp.le.s32.totalorder 2, %s20
    // Predicated region
    $region81: #{plard_forward.2} parent=5 // pred_check
      %p1201 = pneg %p1200
    $region82: #{plard_forward.2} parent=5 // pred_check_branch
      %1203 = sbr.rel (%p1201) target = $region84
    $region83: #{plard_forward.2} parent=5 // pred_region
      %s1204 = ssub.s32 %s20, 2
      // Predicated region
      $region85: #{plard_forward.2} parent=83 // pred_check
        %p1205 = pneg %p321
      $region86: #{plard_forward.2} parent=83 // pred_check_branch
        %1207 = sbr.rel (%p1205) target = $region88
      $region87: #{plard_forward.2} parent=83 // pred_region
        %p1208 = scmp.lt.s32.totalorder %s33, 1
        %s1209 = scalar_select %p1208, %s33, 1
        %p1210 = scmp.lt.s32.totalorder %s34, 3
        %s1211 = scalar_select %p1210, %s34, 3
        %p1212 = scmp.lt.s32.totalorder %s35, 0
        %s1213 = scalar_select %p1212, %s35, 0
        %s1214 = sadd.s32 %s1213, %s1211
        %s1215 = smul.addr %s1209, 4
        %s1216 = sadd.s32 %s1214, %s1215
        %s1217 = smul.addr %s1216, 2
        %s1218 = scalar_lea.vmem %s11, %s1217
      $region88: #{plard_forward.2} parent=83 // pred_fallthru
        _
      // Predicated region
      $region89: #{plard_forward.2} parent=83 // pred_check
        %p1219 = pneg %p351
      $region90: #{plard_forward.2} parent=83 // pred_check_branch
        %1221 = sbr.rel (%p1219) target = $region92
      $region91: #{plard_forward.2} parent=83 // pred_region
        %p1222 = scmp.lt.s32.totalorder %s33, 1
        %s1223 = scalar_select %p1222, %s33, 1
        %p1224 = scmp.lt.s32.totalorder %s34, 3
        %s1225 = scalar_select %p1224, %s34, 3
        %p1226 = scmp.lt.s32.totalorder %s35, 0
        %s1227 = scalar_select %p1226, %s35, 0
        %s1228 = sadd.s32 %s1227, %s1225
        %s1229 = smul.addr %s1223, 4
        %s1230 = sadd.s32 %s1228, %s1229
        %s1231 = smul.addr %s1230, 2
        %s1232 = scalar_lea.vmem %s12, %s1231
      $region92: #{plard_forward.2} parent=83 // pred_fallthru
        _
      // Predicated region
      $region93: #{plard_forward.2} parent=83 // pred_check
        %p1233 = pneg %p379
      $region94: #{plard_forward.2} parent=83 // pred_check_branch
        %1235 = sbr.rel (%p1233) target = $region96
      $region95: #{plard_forward.2} parent=83 // pred_region
        %p1236 = scmp.lt.s32.totalorder %s33, 1
        %s1237 = scalar_select %p1236, %s33, 1
        %p1238 = scmp.lt.s32.totalorder %s34, 3
        %s1239 = scalar_select %p1238, %s34, 3
        %s1240 = smul.addr %s1237, 4
        %s1241 = sadd.s32 %s1239, %s1240
        %s1242 = smul.addr %s1241, 4
        %s1243 = scalar_lea.vmem %s13, %s1242
      $region96: #{plard_forward.2} parent=83 // pred_fallthru
        _
    $region84: #{plard_forward.2} parent=5 // pred_fallthru
      _
  $region6: #{plard_forward.2} parent=0 // loop_footer
    %s24 = sadd.s32 1, %s20
  $region7: #{plard_forward.2} parent=0 // loop_footer_branch
    %19 = sbr.rel target = $region3
  $region8: #{plard_forward.2} parent=0 // loop_exit
    _

// kernel: plard_forward.3
$region0: #{plard_forward.3}
  #allocation0 [shape = 'u32[]', space=smem, size = 0x4, offset = 0x4, fixed_abs, tag = 'smem constant byte address 0x4 - core index']
  #allocation1 [shape = 'u32[144,128]{1,0:T(1,128)}', space=vmem, size = 0x12000, scoped, tag = 'internal scratch']
  %s0 = inlined_call_operand.vmem [shape: bf16[2,4,4,64], index: 0, kind: input, shape index: {}]
  %s1 = inlined_call_operand.vmem [shape: bf16[2,4,4,64], index: 1, kind: input, shape index: {}]
  %s2 = inlined_call_operand.vmem [shape: f32[2,4,1], index: 2, kind: input, shape index: {}]
  %s3 = inlined_call_operand.vmem [shape: f32[8,4], index: 3, kind: input, shape index: {}]
  %s4 = inlined_call_operand.vmem [shape: f32[8,36], index: 4, kind: input, shape index: {}]
  %s5 = inlined_call_operand.vmem [shape: f32[8,4], index: 5, kind: input, shape index: {}]
  %s6 = inlined_call_operand.vmem [shape: f32[8,36], index: 6, kind: input, shape index: {}]
  %s7 = inlined_call_operand.vmem [shape: f32[4,8,1], index: 7, kind: input, shape index: {}]
  %s8 = inlined_call_operand.vmem [shape: f32[4,8,1], index: 8, kind: input, shape index: {}]
  %s9 = inlined_call_operand.vmem [shape: f32[2,8,64], index: 9, kind: output, shape index: {0}]
  %s10 = inlined_call_operand.vmem [shape: f32[2,8,64], index: 10, kind: output, shape index: {1}]
  %11 = xla_tuple %s9, %s10
  %s12 = sld [smem:[#allocation0]]
  $region77: #{plard_forward.3} parent=0
    _
  %s14 = ssub.s32 1, %s12
  %s15 = scalar_select 0, %s14, %s12
  loop: start=0, step=1, limit=4
  $region2: #{plard_forward.3} parent=0 // loop_pre_header
    _
  $region3: #{plard_forward.3} parent=0 // loop_header
    %s17 = sphi 0, %s21
    %p18 = scmp.ge.s32.totalorder %s17, 4
    %s27 = sphi 0, %s29
    %s30 = sphi 0, %s27
    %s31 = sphi 0, %s30
    %s47 = sphi 0, %s31
    %s53 = sphi 0, %s55
    %s56 = sphi 0, %s53
    %s57 = sphi 0, %s56
    %s73 = sphi 0, %s57
    %s79 = sphi 0, %s81
    %s82 = sphi 0, %s79
    %s83 = sphi 0, %s82
    %s99 = sphi 0, %s83
    %s103 = sphi 0, %s103
    %s105 = sphi 0, %s103
    %s106 = sphi 0, %s105
    %s120 = sphi 0, %s106
    %s124 = sphi 0, %s124
    %s126 = sphi 0, %s124
    %s127 = sphi 0, %s126
    %s141 = sphi 0, %s127
    %s145 = sphi 0, %s145
    %s147 = sphi 0, %s145
    %s148 = sphi 0, %s147
    %s162 = sphi 0, %s148
    %s166 = sphi 0, %s166
    %s168 = sphi 0, %s166
    %s169 = sphi 0, %s168
    %s183 = sphi 0, %s169
    %s187 = sphi 0, %s187
    %s189 = sphi 0, %s187
    %s190 = sphi 0, %s189
    %s204 = sphi 0, %s190
    %s208 = sphi 0, %s208
    %s210 = sphi 0, %s208
    %s211 = sphi 0, %s210
    %s225 = sphi 0, %s211
    %s231 = sphi 0, %s233
    %s234 = sphi 0, %s231
    %s235 = sphi 0, %s234
    %s251 = sphi 0, %s235
    %s257 = sphi 0, %s259
    %s260 = sphi 0, %s257
    %s261 = sphi 0, %s260
    %s277 = sphi 0, %s261
  $region4: #{plard_forward.3} parent=0 // loop_header_branch
    %20 = sbr.rel (%p18) target = $region8
  $region5: #{plard_forward.3} parent=0 // loop_body
    %s22 = ssub.s32 %s17, 1
    %s23 = ssub.s32 %s17, 2
    %s24 = sadd.s32 %s17, 1
    %s25 = ssub.s32 %s17, %s24
    %p26 = scmp.eq.s32.totalorder %s25, 0
    %s28 = sadd.s32 %s27, 1
    %s29 = scalar_select %p26, %s27, %s28
    %p32 = pneg %p26
    %p33 = scmp.eq.s32.totalorder %s17, 1
    %p34 = por %p32, %p33
    %p35 = scmp.ne.s32.totalorder %s27, %s30
    %p36 = scmp.eq.s32.totalorder %s17, 0
    %p37 = por %p35, %p36
    %p38 = scmp.ne.s32.totalorder %s27, %s30
    %p39 = scmp.eq.s32.totalorder %s22, 1
    %p40 = por %p38, %p39
    %p41 = scmp.ne.s32.totalorder %s30, %s31
    %p42 = scmp.eq.s32.totalorder %s22, 0
    %p43 = por %p41, %p42
    %p44 = scmp.ne.s32.totalorder %s30, %s31
    %p45 = scmp.eq.s32.totalorder %s23, 1
    %p46 = por %p44, %p45
    %p48 = scmp.ne.s32.totalorder %s31, %s47
    %p49 = scmp.eq.s32.totalorder %s23, 0
    %p50 = por %p48, %p49
    %s51 = ssub.s32 %s17, %s24
    %p52 = scmp.eq.s32.totalorder %s51, 0
    %s54 = sadd.s32 %s53, 1
    %s55 = scalar_select %p52, %s53, %s54
    %p58 = pneg %p52
    %p59 = scmp.eq.s32.totalorder %s17, 1
    %p60 = por %p58, %p59
    %p61 = scmp.ne.s32.totalorder %s53, %s56
    %p62 = scmp.eq.s32.totalorder %s17, 0
    %p63 = por %p61, %p62
    %p64 = scmp.ne.s32.totalorder %s53, %s56
    %p65 = scmp.eq.s32.totalorder %s22, 1
    %p66 = por %p64, %p65
    %p67 = scmp.ne.s32.totalorder %s56, %s57
    %p68 = scmp.eq.s32.totalorder %s22, 0
    %p69 = por %p67, %p68
    %p70 = scmp.ne.s32.totalorder %s56, %s57
    %p71 = scmp.eq.s32.totalorder %s23, 1
    %p72 = por %p70, %p71
    %p74 = scmp.ne.s32.totalorder %s57, %s73
    %p75 = scmp.eq.s32.totalorder %s23, 0
    %p76 = por %p74, %p75
    %s77 = ssub.s32 %s17, %s24
    %p78 = scmp.eq.s32.totalorder %s77, 0
    %s80 = sadd.s32 %s79, 1
    %s81 = scalar_select %p78, %s79, %s80
    %p84 = pneg %p78
    %p85 = scmp.eq.s32.totalorder %s17, 1
    %p86 = por %p84, %p85
    %p87 = scmp.ne.s32.totalorder %s79, %s82
    %p88 = scmp.eq.s32.totalorder %s17, 0
    %p89 = por %p87, %p88
    %p90 = scmp.ne.s32.totalorder %s79, %s82
    %p91 = scmp.eq.s32.totalorder %s22, 1
    %p92 = por %p90, %p91
    %p93 = scmp.ne.s32.totalorder %s82, %s83
    %p94 = scmp.eq.s32.totalorder %s22, 0
    %p95 = por %p93, %p94
    %p96 = scmp.ne.s32.totalorder %s82, %s83
    %p97 = scmp.eq.s32.totalorder %s23, 1
    %p98 = por %p96, %p97
    %p100 = scmp.ne.s32.totalorder %s83, %s99
    %p101 = scmp.eq.s32.totalorder %s23, 0
    %p102 = por %p100, %p101
    %s104 = sadd.s32 %s103, 1
    %p107 = scmp.eq.s32.totalorder %s17, 1
    %p108 = scmp.ne.s32.totalorder %s103, %s105
    %p109 = scmp.eq.s32.totalorder %s17, 0
    %p110 = por %p108, %p109
    %p111 = scmp.ne.s32.totalorder %s103, %s105
    %p112 = scmp.eq.s32.totalorder %s22, 1
    %p113 = por %p111, %p112
    %p114 = scmp.ne.s32.totalorder %s105, %s106
    %p115 = scmp.eq.s32.totalorder %s22, 0
    %p116 = por %p114, %p115
    %p117 = scmp.ne.s32.totalorder %s105, %s106
    %p118 = scmp.eq.s32.totalorder %s23, 1
    %p119 = por %p117, %p118
    %p121 = scmp.ne.s32.totalorder %s106, %s120
    %p122 = scmp.eq.s32.totalorder %s23, 0
    %p123 = por %p121, %p122
    %s125 = sadd.s32 %s124, 1
    %p128 = scmp.eq.s32.totalorder %s17, 1
    %p129 = scmp.ne.s32.totalorder %s124, %s126
    %p130 = scmp.eq.s32.totalorder %s17, 0
    %p131 = por %p129, %p130
    %p132 = scmp.ne.s32.totalorder %s124, %s126
    %p133 = scmp.eq.s32.totalorder %s22, 1
    %p134 = por %p132, %p133
    %p135 = scmp.ne.s32.totalorder %s126, %s127
    %p136 = scmp.eq.s32.totalorder %s22, 0
    %p137 = por %p135, %p136
    %p138 = scmp.ne.s32.totalorder %s126, %s127
    %p139 = scmp.eq.s32.totalorder %s23, 1
    %p140 = por %p138, %p139
    %p142 = scmp.ne.s32.totalorder %s127, %s141
    %p143 = scmp.eq.s32.totalorder %s23, 0
    %p144 = por %p142, %p143
    %s146 = sadd.s32 %s145, 1
    %p149 = scmp.eq.s32.totalorder %s17, 1
    %p150 = scmp.ne.s32.totalorder %s145, %s147
    %p151 = scmp.eq.s32.totalorder %s17, 0
    %p152 = por %p150, %p151
    %p153 = scmp.ne.s32.totalorder %s145, %s147
    %p154 = scmp.eq.s32.totalorder %s22, 1
    %p155 = por %p153, %p154
    %p156 = scmp.ne.s32.totalorder %s147, %s148
    %p157 = scmp.eq.s32.totalorder %s22, 0
    %p158 = por %p156, %p157
    %p159 = scmp.ne.s32.totalorder %s147, %s148
    %p160 = scmp.eq.s32.totalorder %s23, 1
    %p161 = por %p159, %p160
    %p163 = scmp.ne.s32.totalorder %s148, %s162
    %p164 = scmp.eq.s32.totalorder %s23, 0
    %p165 = por %p163, %p164
    %s167 = sadd.s32 %s166, 1
    %p170 = scmp.eq.s32.totalorder %s17, 1
    %p171 = scmp.ne.s32.totalorder %s166, %s168
    %p172 = scmp.eq.s32.totalorder %s17, 0
    %p173 = por %p171, %p172
    %p174 = scmp.ne.s32.totalorder %s166, %s168
    %p175 = scmp.eq.s32.totalorder %s22, 1
    %p176 = por %p174, %p175
    %p177 = scmp.ne.s32.totalorder %s168, %s169
    %p178 = scmp.eq.s32.totalorder %s22, 0
    %p179 = por %p177, %p178
    %p180 = scmp.ne.s32.totalorder %s168, %s169
    %p181 = scmp.eq.s32.totalorder %s23, 1
    %p182 = por %p180, %p181
    %p184 = scmp.ne.s32.totalorder %s169, %s183
    %p185 = scmp.eq.s32.totalorder %s23, 0
    %p186 = por %p184, %p185
    %s188 = sadd.s32 %s187, 1
    %p191 = scmp.eq.s32.totalorder %s17, 1
    %p192 = scmp.ne.s32.totalorder %s187, %s189
    %p193 = scmp.eq.s32.totalorder %s17, 0
    %p194 = por %p192, %p193
    %p195 = scmp.ne.s32.totalorder %s187, %s189
    %p196 = scmp.eq.s32.totalorder %s22, 1
    %p197 = por %p195, %p196
    %p198 = scmp.ne.s32.totalorder %s189, %s190
    %p199 = scmp.eq.s32.totalorder %s22, 0
    %p200 = por %p198, %p199
    %p201 = scmp.ne.s32.totalorder %s189, %s190
    %p202 = scmp.eq.s32.totalorder %s23, 1
    %p203 = por %p201, %p202
    %p205 = scmp.ne.s32.totalorder %s190, %s204
    %p206 = scmp.eq.s32.totalorder %s23, 0
    %p207 = por %p205, %p206
    %s209 = sadd.s32 %s208, 1
    %p212 = scmp.eq.s32.totalorder %s17, 1
    %p213 = scmp.ne.s32.totalorder %s208, %s210
    %p214 = scmp.eq.s32.totalorder %s17, 0
    %p215 = por %p213, %p214
    %p216 = scmp.ne.s32.totalorder %s208, %s210
    %p217 = scmp.eq.s32.totalorder %s22, 1
    %p218 = por %p216, %p217
    %p219 = scmp.ne.s32.totalorder %s210, %s211
    %p220 = scmp.eq.s32.totalorder %s22, 0
    %p221 = por %p219, %p220
    %p222 = scmp.ne.s32.totalorder %s210, %s211
    %p223 = scmp.eq.s32.totalorder %s23, 1
    %p224 = por %p222, %p223
    %p226 = scmp.ne.s32.totalorder %s211, %s225
    %p227 = scmp.eq.s32.totalorder %s23, 0
    %p228 = por %p226, %p227
    %s229 = ssub.s32 %s17, %s24
    %p230 = scmp.eq.s32.totalorder %s229, 0
    %s232 = sadd.s32 %s231, 1
    %s233 = scalar_select %p230, %s231, %s232
    %p236 = pneg %p230
    %p237 = scmp.eq.s32.totalorder %s17, 1
    %p238 = por %p236, %p237
    %p239 = scmp.ne.s32.totalorder %s231, %s234
    %p240 = scmp.eq.s32.totalorder %s17, 0
    %p241 = por %p239, %p240
    %p242 = scmp.ne.s32.totalorder %s231, %s234
    %p243 = scmp.eq.s32.totalorder %s22, 1
    %p244 = por %p242, %p243
    %p245 = scmp.ne.s32.totalorder %s234, %s235
    %p246 = scmp.eq.s32.totalorder %s22, 0
    %p247 = por %p245, %p246
    %p248 = scmp.ne.s32.totalorder %s234, %s235
    %p249 = scmp.eq.s32.totalorder %s23, 1
    %p250 = por %p248, %p249
    %p252 = scmp.ne.s32.totalorder %s235, %s251
    %p253 = scmp.eq.s32.totalorder %s23, 0
    %p254 = por %p252, %p253
    %s255 = ssub.s32 %s17, %s24
    %p256 = scmp.eq.s32.totalorder %s255, 0
    %s258 = sadd.s32 %s257, 1
    %s259 = scalar_select %p256, %s257, %s258
    %p262 = pneg %p256
    %p263 = scmp.eq.s32.totalorder %s17, 1
    %p264 = por %p262, %p263
    %p265 = scmp.ne.s32.totalorder %s257, %s260
    %p266 = scmp.eq.s32.totalorder %s17, 0
    %p267 = por %p265, %p266
    %p268 = scmp.ne.s32.totalorder %s257, %s260
    %p269 = scmp.eq.s32.totalorder %s22, 1
    %p270 = por %p268, %p269
    %p271 = scmp.ne.s32.totalorder %s260, %s261
    %p272 = scmp.eq.s32.totalorder %s22, 0
    %p273 = por %p271, %p272
    %p274 = scmp.ne.s32.totalorder %s260, %s261
    %p275 = scmp.eq.s32.totalorder %s23, 1
    %p276 = por %p274, %p275
    %p278 = scmp.ne.s32.totalorder %s261, %s277
    %p279 = scmp.eq.s32.totalorder %s23, 0
    %p280 = por %p278, %p279
    %p281 = scmp.le.s32.totalorder 1, %s17
    %p282 = scmp.lt.s32.totalorder %s17, 3
    %p283 = pnand %p281, %p282
    %p284 = pneg %p283
    // Predicated region
    $region9: #{plard_forward.3} parent=5 // pred_check
      _
    $region10: #{plard_forward.3} parent=5 // pred_check_branch
      %286 = sbr.rel (%p283) target = $region12
    $region11: #{plard_forward.3} parent=5 // pred_region
      %s287 = ssub.s32 %s17, 1
      // Predicated region
      $region13: #{plard_forward.3} parent=11 // pred_check
        %p288 = pneg %p116
      $region14: #{plard_forward.3} parent=11 // pred_check_branch
        %290 = sbr.rel (%p288) target = $region16
      $region15: #{plard_forward.3} parent=11 // pred_region
        _
      $region16: #{plard_forward.3} parent=11 // pred_fallthru
        _
      // Predicated region
      $region17: #{plard_forward.3} parent=11 // pred_check
        %p291 = pneg %p137
      $region18: #{plard_forward.3} parent=11 // pred_check_branch
        %293 = sbr.rel (%p291) target = $region20
      $region19: #{plard_forward.3} parent=11 // pred_region
        _
      $region20: #{plard_forward.3} parent=11 // pred_fallthru
        _
      // Predicated region
      $region21: #{plard_forward.3} parent=11 // pred_check
        %p294 = pneg %p158
      $region22: #{plard_forward.3} parent=11 // pred_check_branch
        %296 = sbr.rel (%p294) target = $region24
      $region23: #{plard_forward.3} parent=11 // pred_region
        _
      $region24: #{plard_forward.3} parent=11 // pred_fallthru
        _
      // Predicated region
      $region25: #{plard_forward.3} parent=11 // pred_check
        %p297 = pneg %p179
      $region26: #{plard_forward.3} parent=11 // pred_check_branch
        %299 = sbr.rel (%p297) target = $region28
      $region27: #{plard_forward.3} parent=11 // pred_region
        _
      $region28: #{plard_forward.3} parent=11 // pred_fallthru
        _
      // Predicated region
      $region29: #{plard_forward.3} parent=11 // pred_check
        %p300 = pneg %p200
      $region30: #{plard_forward.3} parent=11 // pred_check_branch
        %302 = sbr.rel (%p300) target = $region32
      $region31: #{plard_forward.3} parent=11 // pred_region
        _
      $region32: #{plard_forward.3} parent=11 // pred_fallthru
        _
      // Predicated region
      $region33: #{plard_forward.3} parent=11 // pred_check
        %p303 = pneg %p221
      $region34: #{plard_forward.3} parent=11 // pred_check_branch
        %305 = sbr.rel (%p303) target = $region36
      $region35: #{plard_forward.3} parent=11 // pred_region
        _
      $region36: #{plard_forward.3} parent=11 // pred_fallthru
        _
    $region12: #{plard_forward.3} parent=5 // pred_fallthru
      _
    %p306 = scmp.lt.s32.totalorder %s17, 2
    // Predicated region
    $region37: #{plard_forward.3} parent=5 // pred_check
      %p307 = pneg %p306
    $region38: #{plard_forward.3} parent=5 // pred_check_branch
      %309 = sbr.rel (%p307) target = $region40
    $region39: #{plard_forward.3} parent=5 // pred_region
      // Predicated region
      $region41: #{plard_forward.3} parent=39 // pred_check
        %p310 = pneg %p37
      $region42: #{plard_forward.3} parent=39 // pred_check_branch
        %312 = sbr.rel (%p310) target = $region44
      $region43: #{plard_forward.3} parent=39 // pred_region
        %p313 = scmp.lt.s32.totalorder %s17, 1
        %s314 = scalar_select %p313, %s17, 1
        %s315 = smul.addr %s314, 4
        %s316 = smul.addr %s315, 2
        %s317 = scalar_lea.vmem %s0, %s316
      $region44: #{plard_forward.3} parent=39 // pred_fallthru
        _
      // Predicated region
      $region45: #{plard_forward.3} parent=39 // pred_check
        %p318 = pneg %p63
      $region46: #{plard_forward.3} parent=39 // pred_check_branch
        %320 = sbr.rel (%p318) target = $region48
      $region47: #{plard_forward.3} parent=39 // pred_region
        %p321 = scmp.lt.s32.totalorder %s17, 1
        %s322 = scalar_select %p321, %s17, 1
        %s323 = smul.addr %s322, 4
        %s324 = smul.addr %s323, 2
        %s325 = scalar_lea.vmem %s1, %s324
      $region48: #{plard_forward.3} parent=39 // pred_fallthru
        _
      // Predicated region
      $region49: #{plard_forward.3} parent=39 // pred_check
        %p326 = pneg %p89
      $region50: #{plard_forward.3} parent=39 // pred_check_branch
        %328 = sbr.rel (%p326) target = $region52
      $region51: #{plard_forward.3} parent=39 // pred_region
        %p329 = scmp.lt.s32.totalorder %s17, 1
        %s330 = scalar_select %p329, %s17, 1
        %s331 = smul.addr %s330, 4
        %s332 = scalar_lea.vmem %s2, %s331
      $region52: #{plard_forward.3} parent=39 // pred_fallthru
        _
    $region40: #{plard_forward.3} parent=5 // pred_fallthru
      _
    %p333 = scmp.le.s32.totalorder 1, %s17
    %p334 = scmp.lt.s32.totalorder %s17, 3
    %p335 = pnand %p333, %p334
    %p336 = pneg %p335
    // Predicated region
    $region53: #{plard_forward.3} parent=5 // pred_check
      _
    $region54: #{plard_forward.3} parent=5 // pred_check_branch
      %338 = sbr.rel (%p335) target = $region56
    $region55: #{plard_forward.3} parent=5 // pred_region
      %s339 = ssub.s32 %s17, 1
      %p340 = scmp.lt.s32.totalorder %s22, 1
      %s341 = scalar_select %p340, %s22, 1
      %s342 = smul.addr %s341, 4
      %s343 = smul.addr %s342, 2
      %s344 = scalar_lea.vmem %s0, %s343
      %p345 = pneg %p43
      %p346 = pneg %p40
      %p347 = scmp.lt.s32.totalorder %s22, 1
      %s348 = scalar_select %p347, %s22, 1
      %s349 = smul.addr %s348, 4
      %s350 = smul.addr %s349, 2
      %s351 = scalar_lea.vmem %s1, %s350
      %p352 = pneg %p69
      %p353 = pneg %p66
      %p354 = scmp.lt.s32.totalorder %s22, 1
      %s355 = scalar_select %p354, %s22, 1
      %s356 = smul.addr %s355, 4
      %s357 = scalar_lea.vmem %s2, %s356
      %p358 = pneg %p95
      %p359 = pneg %p92
      %p360 = pneg %p116
      %p361 = pneg %p113
      %p362 = pneg %p137
      %p363 = pneg %p134
      %p364 = pneg %p158
      %p365 = pneg %p155
      %p366 = pneg %p179
      %p367 = pneg %p176
      %p368 = pneg %p200
      %p369 = pneg %p197
      %p370 = pneg %p221
      %p371 = pneg %p218
      %p372 = pneg %p247
      %p373 = pneg %p244
      %p374 = scmp.lt.s32.totalorder %s22, 1
      %s375 = scalar_select %p374, %s22, 1
      %s376 = smul.addr %s375, 8
      %s377 = scalar_lea.vmem %s9, %s376
      %p378 = pneg %p273
      %p379 = pneg %p270
      %p380 = scmp.lt.s32.totalorder %s22, 1
      %s381 = scalar_select %p380, %s22, 1
      %s382 = smul.addr %s381, 8
      %s383 = scalar_lea.vmem %s10, %s382
      %p384 = scmp.lt.s32.totalorder %s22, 1
      %s385 = scalar_select %p384, %s22, 1
      %s386 = smul.addr %s385, 4
      %s387 = smul.addr %s386, 2
      %s388 = scalar_lea.vmem %s0, %s387
      %p389 = scmp.lt.s32.totalorder %s22, 1
      %s390 = scalar_select %p389, %s22, 1
      %s391 = smul.addr %s390, 4
      %s392 = smul.addr %s391, 2
      %s393 = scalar_lea.vmem %s1, %s392
      %p394 = scmp.lt.s32.totalorder %s22, 1
      %s395 = scalar_select %p394, %s22, 1
      %s396 = smul.addr %s395, 4
      %s397 = scalar_lea.vmem %s2, %s396
      %p398 = scmp.lt.s32.totalorder %s22, 1
      %s399 = scalar_select %p398, %s22, 1
      %s400 = smul.addr %s399, 8
      %s401 = scalar_lea.vmem %s9, %s400
      %p402 = scmp.lt.s32.totalorder %s22, 1
      %s403 = scalar_select %p402, %s22, 1
      %s404 = smul.addr %s403, 8
      %s405 = scalar_lea.vmem %s10, %s404
      %v406 = vld [vmem:[%s388] sm:$0x3]
      %v407 = vld [vmem:[%s388 + $0x2] sm:$0x3]
      %v408 = vld [vmem:[%s388 + $0x4] sm:$0x3]
      %v409 = vld [vmem:[%s388 + $0x6] sm:$0x3]
      %v410 = vunpack.c.l.bf16 %v406
      %v411 = vunpack.c.l.bf16 %v407
      %v412 = vunpack.c.l.bf16 %v408
      %v413 = vunpack.c.l.bf16 %v409
      %v414 = vld [vmem:[%s393] sm:$0x3]
      %v415 = vld [vmem:[%s393 + $0x2] sm:$0x3]
      %v416 = vld [vmem:[%s393 + $0x4] sm:$0x3]
      %v417 = vld [vmem:[%s393 + $0x6] sm:$0x3]
      %v418 = vunpack.c.l.bf16 %v414
      %v419 = vunpack.c.l.bf16 %v415
      %v420 = vunpack.c.l.bf16 %v416
      %v421 = vunpack.c.l.bf16 %v417
      %v422 = vld [vmem:[%s397] sm:$0xf]
      %424 = vset.pattern.permute.xlu0 0
      %425 = vperm.xlu0 %424, %v422
      %v426 = vpop.permute.xlu0 %425
      %v428 = vmul.f32 %v426, %v418
      %v429 = vmul.f32 %v426, %v419
      %v430 = vmul.f32 %v426, %v420
      %v431 = vmul.f32 %v426, %v421
      %v432 = vadd.f32 %v410, %v428
      %v433 = vadd.f32 %v411, %v429
      %v434 = vadd.f32 %v412, %v430
      %v435 = vadd.f32 %v413, %v431
      %v436 = vmul.f32 %v426, %v410
      %v437 = vmul.f32 %v426, %v411
      %v438 = vmul.f32 %v426, %v412
      %v439 = vmul.f32 %v426, %v413
      %v440 = vsub.f32 %v418, %v436
      %v441 = vsub.f32 %v419, %v437
      %v442 = vsub.f32 %v420, %v438
      %v443 = vsub.f32 %v421, %v439
      %v444 = vlaneseq
      %v445 = vand.u32 %v444, 127
      %vm446 = vcmp.lt.s32.totalorder %v445, 0
      %v447 = vsub.s32 0, %v445
      %v448 = vsel %vm446, %v447, %v445
      %v449 = vshrl.u32 %v448, 3
      %v450 = vand.u32 %v448, 7
      %v451 = vsub.s32 0, %v450
      %v452 = vsel %vm446, %v451, %v450
      %vm453 = vcmp.ne.s32.totalorder %v452, 0
      %vm454 = vcmp.lt.s32.totalorder %v452, 0
      %vm455 = vmand %vm454, %vm453
      %v456 = vadd.s32 %v452, 8
      %v457 = vsel %vm455, %v456, %v452
      %vm458 = vcmp.ne.s32.totalorder %v457, 0
      %vm459 = vcmp.ge.s32.totalorder %v445, 8
      %vm460 = vmand %vm459, %vm458
      %v461 = vld [vmem:[%s3] sm:$0xff]
      %vm462 = vcmask 31744
      %v464 = vsel %vm462, %v461, 0
      %vm466 = vcmask 1043456
      %v468 = vsel %vm466, %v410, 0
      %470 = vmatprep.subr.mxu0 0.0
      %471 = vmatpush1.msra.mxu0 %v468
      %472 = vmatprep.subr.mxu0 0.0
      %473 = vmatpush1.msra.mxu0 0.0
      %474 = vmatprep.subr.mxu0 0.0
      %475 = vmatpush1.msra.mxu0 0.0
      %476 = vmatprep.subr.mxu0 0.0
      %477 = vmatpush1.msra.mxu0 0.0
      %478 = vmatprep.subr.mxu0 0.0
      %479 = vmatpush1.msra.mxu0 0.0
      %480 = vmatprep.subr.mxu0 0.0
      %481 = vmatpush1.msra.mxu0 0.0
      %482 = vmatprep.subr.mxu0 0.0
      %483 = vmatpush1.msra.mxu0 0.0
      %484 = vmatprep.subr.mxu0 0.0
      %485 = vmatpush1.msra.mxu0 0.0
      %486 = vmatprep.subr.mxu0 0.0
      %487 = vmatpush1.msra.mxu0 0.0
      %488 = vmatprep.subr.mxu0 0.0
      %489 = vmatpush1.msra.mxu0 0.0
      %490 = vmatprep.subr.mxu0 0.0
      %491 = vmatpush1.msra.mxu0 0.0
      %492 = vmatprep.subr.mxu0 0.0
      %493 = vmatpush1.msra.mxu0 0.0
      %494 = vmatprep.subr.mxu0 0.0
      %495 = vmatpush1.msra.mxu0 0.0
      %496 = vmatprep.subr.mxu0 0.0
      %497 = vmatpush1.msra.mxu0 0.0
      %498 = vmatprep.subr.mxu0 0.0
      %499 = vmatpush1.msra.mxu0 0.0
      %500 = vmatprep.subr.mxu0 0.0
      %501 = vmatpush1.msra.mxu0 0.0
      %502 = vmatprep.subr.mxu0 0.0
      %503 = vmatpush1.msra.mxu0 0.0
      %504 = vmatprep.subr.mxu0 0.0
      %505 = vmatpush1.msra.mxu0 0.0
      %506 = vmatprep.subr.mxu0 0.0
      %507 = vmatpush1.msra.mxu0 0.0
      %508 = vmatprep.subr.mxu0 0.0
      %509 = vmatpush1.msra.mxu0 0.0
      %510 = vmatprep.subr.mxu0 0.0
      %511 = vmatpush1.msra.mxu0 0.0
      %512 = vmatprep.subr.mxu0 0.0
      %513 = vmatpush1.msra.mxu0 0.0
      %514 = vmatprep.subr.mxu0 0.0
      %515 = vmatpush1.msra.mxu0 0.0
      %516 = vmatprep.subr.mxu0 0.0
      %517 = vmatpush1.msra.mxu0 0.0
      %518 = vmatprep.subr.mxu0 0.0
      %519 = vmatpush1.msra.mxu0 0.0
      %520 = vmatprep.subr.mxu0 0.0
      %521 = vmatpush1.msra.mxu0 0.0
      %522 = vmatprep.subr.mxu0 0.0
      %523 = vmatpush1.msra.mxu0 0.0
      %524 = vmatprep.subr.mxu0 0.0
      %525 = vmatpush1.msra.mxu0 0.0
      %526 = vmatprep.subr.mxu0 0.0
      %527 = vmatpush1.msra.mxu0 0.0
      %528 = vmatprep.subr.mxu0 0.0
      %529 = vmatpush1.msra.mxu0 0.0
      %530 = vmatprep.subr.mxu0 0.0
      %531 = vmatpush1.msra.mxu0 0.0
      %532 = vmatprep.subr.mxu0 0.0
      %533 = vmatpush1.msra.mxu0 0.0
      %534 = vmatprep.mubr.f32.mxu0 0.0
      %535 = vmatmul.mubr.f32.gmra.mrb[0].mxu0 %v464
      %v536 = vpop.f32.mrb[0].mxu0
      %v537 = vadd.f32 0.0, %v536
      %v538 = vpop.f32.mrb[0].mxu0
      %539 = vdwg.mxu0
      %v540 = vld [vmem:[%s7] sm:$0xff]
      %542 = vset.pattern.permute.xlu0 0
      %543 = vperm.xlu0 %542, %v540
      %v544 = vpop.permute.xlu0 %543
      %v546 = vmul.f32 %v537, %v544
      %v547 = vld [vmem:[%s8] sm:$0xff]
      %549 = vset.pattern.permute.xlu0 0
      %550 = vperm.xlu0 %549, %v547
      %v551 = vpop.permute.xlu0 %550
      %v553 = vadd.f32 %v546, %v551
      %v554 = vsub.f32 0.0, %v553
      %v555 = vmul.f32 %v554, 1.442695
      %v556 = vpow.pop %v555
      %v557 = vadd.f32 %v556, 1.0
      %v558 = vrcp.pop %v557
      %v559 = vmul.f32 %v553, %v558
      %v560 = vld [vmem:[%s4] sm:$0xff]
      %562 = vrot.lane.b32.xlu0 %v435, 73
      %v563 = vpop.permute.xlu0 %562
      %565 = vrot.lane.b32.xlu0 %v435, 9
      %v566 = vpop.permute.xlu0 %565
      %vm568 = vcmask 72704
      %v569 = vsel %vm568, %v563, %v566
      %v570 = vsel %vm460, 1, 0
      %vm571 = vcmp.eq.s32.totalorder %v570, 1
      %v572 = vsel %vm571, %v569, 0.0
      %574 = vrot.lane.b32.xlu0 %v434, 72
      %v575 = vpop.permute.xlu0 %574
      %577 = vrot.lane.b32.xlu0 %v434, 8
      %v578 = vpop.permute.xlu0 %577
      %vm580 = vcmask 64512
      %v581 = vsel %vm580, %v575, %v578
      %v582 = vsel %vm459, 1, 0
      %vm583 = vcmp.eq.s32.totalorder %v582, 1
      %v584 = vsel %vm583, %v581, 0.0
      %585 = vrot.lane.b32.xlu0 %v435, 72
      %v586 = vpop.permute.xlu0 %585
      %588 = vrot.lane.b32.xlu0 %v435, 8
      %v589 = vpop.permute.xlu0 %588
      %v591 = vsel %vm580, %v586, %v589
      %v592 = vsel %vm583, %v591, 0.0
      %594 = vrot.lane.b32.xlu0 %v433, 65
      %v595 = vpop.permute.xlu0 %594
      %597 = vrot.lane.b32.xlu0 %v433, 1
      %v598 = vpop.permute.xlu0 %597
      %vm600 = vcmask 7168
      %v601 = vsel %vm600, %v595, %v598
      %v602 = vsel %vm458, 1, 0
      %vm603 = vcmp.eq.s32.totalorder %v602, 1
      %v604 = vsel %vm603, %v601, 0.0
      %605 = vrot.lane.b32.xlu0 %v435, 65
      %v606 = vpop.permute.xlu0 %605
      %608 = vrot.lane.b32.xlu0 %v435, 1
      %v609 = vpop.permute.xlu0 %608
      %v611 = vsel %vm600, %v606, %v609
      %v612 = vsel %vm603, %v611, 0.0
      %v614 = vrot.slane %v584, 4
      %v617 = vrot.slane %v604, 4
      %v619 = vcombine.low %v433, %v433
      %v621 = vcombine.low %v434, %v434
      %v623 = vsel %vm466, %v572, %v614
      %v624 = vsel %vm466, %v592, %v617
      %v625 = vsel %vm466, %v432, %v619
      %v626 = vsel %vm466, %v612, %v621
      %vm627 = vcmask 293888
      %v629 = vsel %vm627, %v560, 0
      %v631 = vsel %vm466, %v435, 0
      %633 = vmatprep.subr.mxu0 0.0
      %634 = vmatpush1.msra.mxu0 %v623
      %635 = vmatprep.subr.mxu0 0.0
      %636 = vmatpush1.msra.mxu0 %v624
      %637 = vmatprep.subr.mxu0 0.0
      %638 = vmatpush1.msra.mxu0 %v625
      %639 = vmatprep.subr.mxu0 0.0
      %640 = vmatpush1.msra.mxu0 %v626
      %641 = vmatprep.subr.mxu0 0.0
      %642 = vmatpush1.msra.mxu0 %v631
      %643 = vmatprep.subr.mxu0 0.0
      %644 = vmatpush1.msra.mxu0 0.0
      %645 = vmatprep.subr.mxu0 0.0
      %646 = vmatpush1.msra.mxu0 0.0
      %647 = vmatprep.subr.mxu0 0.0
      %648 = vmatpush1.msra.mxu0 0.0
      %649 = vmatprep.subr.mxu0 0.0
      %650 = vmatpush1.msra.mxu0 0.0
      %651 = vmatprep.subr.mxu0 0.0
      %652 = vmatpush1.msra.mxu0 0.0
      %653 = vmatprep.subr.mxu0 0.0
      %654 = vmatpush1.msra.mxu0 0.0
      %655 = vmatprep.subr.mxu0 0.0
      %656 = vmatpush1.msra.mxu0 0.0
      %657 = vmatprep.subr.mxu0 0.0
      %658 = vmatpush1.msra.mxu0 0.0
      %659 = vmatprep.subr.mxu0 0.0
      %660 = vmatpush1.msra.mxu0 0.0
      %661 = vmatprep.subr.mxu0 0.0
      %662 = vmatpush1.msra.mxu0 0.0
      %663 = vmatprep.subr.mxu0 0.0
      %664 = vmatpush1.msra.mxu0 0.0
      %665 = vmatprep.subr.mxu0 0.0
      %666 = vmatpush1.msra.mxu0 0.0
      %667 = vmatprep.subr.mxu0 0.0
      %668 = vmatpush1.msra.mxu0 0.0
      %669 = vmatprep.subr.mxu0 0.0
      %670 = vmatpush1.msra.mxu0 0.0
      %671 = vmatprep.subr.mxu0 0.0
      %672 = vmatpush1.msra.mxu0 0.0
      %673 = vmatprep.subr.mxu0 0.0
      %674 = vmatpush1.msra.mxu0 0.0
      %675 = vmatprep.subr.mxu0 0.0
      %676 = vmatpush1.msra.mxu0 0.0
      %677 = vmatprep.subr.mxu0 0.0
      %678 = vmatpush1.msra.mxu0 0.0
      %679 = vmatprep.subr.mxu0 0.0
      %680 = vmatpush1.msra.mxu0 0.0
      %681 = vmatprep.subr.mxu0 0.0
      %682 = vmatpush1.msra.mxu0 0.0
      %683 = vmatprep.subr.mxu0 0.0
      %684 = vmatpush1.msra.mxu0 0.0
      %685 = vmatprep.subr.mxu0 0.0
      %686 = vmatpush1.msra.mxu0 0.0
      %687 = vmatprep.subr.mxu0 0.0
      %688 = vmatpush1.msra.mxu0 0.0
      %689 = vmatprep.subr.mxu0 0.0
      %690 = vmatpush1.msra.mxu0 0.0
      %691 = vmatprep.subr.mxu0 0.0
      %692 = vmatpush1.msra.mxu0 0.0
      %693 = vmatprep.subr.mxu0 0.0
      %694 = vmatpush1.msra.mxu0 0.0
      %695 = vmatprep.subr.mxu0 0.0
      %696 = vmatpush1.msra.mxu0 0.0
      %697 = vmatprep.mubr.f32.mxu0 0.0
      %698 = vmatmul.mubr.f32.gmra.mrb[0].mxu0 %v629
      %v699 = vpop.f32.mrb[0].mxu0
      %v700 = vadd.f32 0.0, %v699
      %v701 = vpop.f32.mrb[0].mxu0
      %702 = vdwg.mxu0
      %s703 = scalar_lea.vmem %s7, 8
      %v704 = vld [vmem:[%s703] sm:$0xff]
      %706 = vset.pattern.permute.xlu0 0
      %707 = vperm.xlu0 %706, %v704
      %v708 = vpop.permute.xlu0 %707
      %v710 = vmul.f32 %v700, %v708
      %s711 = scalar_lea.vmem %s8, 8
      %v712 = vld [vmem:[%s711] sm:$0xff]
      %714 = vset.pattern.permute.xlu0 0
      %715 = vperm.xlu0 %714, %v712
      %v716 = vpop.permute.xlu0 %715
      %v718 = vadd.f32 %v710, %v716
      %v719 = vsub.f32 0.0, %v718
      %v720 = vmul.f32 %v719, 1.442695
      %v721 = vpow.pop %v720
      %v722 = vadd.f32 %v721, 1.0
      %v723 = vrcp.pop %v722
      %v724 = vmul.f32 %v718, %v723
      %v725 = vadd.f32 %v559, %v724
      %vm726 = vcmask 523264
      %727 = vst.msk [vmem:[%s401] sm:$0xff] %vm726, %v725
      %v728 = vld [vmem:[%s5] sm:$0xff]
      %v730 = vsel %vm462, %v728, 0
      %v733 = vsel %vm466, %v418, 0
      %735 = vmatprep.subr.mxu0 0.0
      %736 = vmatpush1.msra.mxu0 %v733
      %737 = vmatprep.subr.mxu0 0.0
      %738 = vmatpush1.msra.mxu0 0.0
      %739 = vmatprep.subr.mxu0 0.0
      %740 = vmatpush1.msra.mxu0 0.0
      %741 = vmatprep.subr.mxu0 0.0
      %742 = vmatpush1.msra.mxu0 0.0
      %743 = vmatprep.subr.mxu0 0.0
      %744 = vmatpush1.msra.mxu0 0.0
      %745 = vmatprep.subr.mxu0 0.0
      %746 = vmatpush1.msra.mxu0 0.0
      %747 = vmatprep.subr.mxu0 0.0
      %748 = vmatpush1.msra.mxu0 0.0
      %749 = vmatprep.subr.mxu0 0.0
      %750 = vmatpush1.msra.mxu0 0.0
      %751 = vmatprep.subr.mxu0 0.0
      %752 = vmatpush1.msra.mxu0 0.0
      %753 = vmatprep.subr.mxu0 0.0
      %754 = vmatpush1.msra.mxu0 0.0
      %755 = vmatprep.subr.mxu0 0.0
      %756 = vmatpush1.msra.mxu0 0.0
      %757 = vmatprep.subr.mxu0 0.0
      %758 = vmatpush1.msra.mxu0 0.0
      %759 = vmatprep.subr.mxu0 0.0
      %760 = vmatpush1.msra.mxu0 0.0
      %761 = vmatprep.subr.mxu0 0.0
      %762 = vmatpush1.msra.mxu0 0.0
      %763 = vmatprep.subr.mxu0 0.0
      %764 = vmatpush1.msra.mxu0 0.0
      %765 = vmatprep.subr.mxu0 0.0
      %766 = vmatpush1.msra.mxu0 0.0
      %767 = vmatprep.subr.mxu0 0.0
      %768 = vmatpush1.msra.mxu0 0.0
      %769 = vmatprep.subr.mxu0 0.0
      %770 = vmatpush1.msra.mxu0 0.0
      %771 = vmatprep.subr.mxu0 0.0
      %772 = vmatpush1.msra.mxu0 0.0
      %773 = vmatprep.subr.mxu0 0.0
      %774 = vmatpush1.msra.mxu0 0.0
      %775 = vmatprep.subr.mxu0 0.0
      %776 = vmatpush1.msra.mxu0 0.0
      %777 = vmatprep.subr.mxu0 0.0
      %778 = vmatpush1.msra.mxu0 0.0
      %779 = vmatprep.subr.mxu0 0.0
      %780 = vmatpush1.msra.mxu0 0.0
      %781 = vmatprep.subr.mxu0 0.0
      %782 = vmatpush1.msra.mxu0 0.0
      %783 = vmatprep.subr.mxu0 0.0
      %784 = vmatpush1.msra.mxu0 0.0
      %785 = vmatprep.subr.mxu0 0.0
      %786 = vmatpush1.msra.mxu0 0.0
      %787 = vmatprep.subr.mxu0 0.0
      %788 = vmatpush1.msra.mxu0 0.0
      %789 = vmatprep.subr.mxu0 0.0
      %790 = vmatpush1.msra.mxu0 0.0
      %791 = vmatprep.subr.mxu0 0.0
      %792 = vmatpush1.msra.mxu0 0.0
      %793 = vmatprep.subr.mxu0 0.0
      %794 = vmatpush1.msra.mxu0 0.0
      %795 = vmatprep.subr.mxu0 0.0
      %796 = vmatpush1.msra.mxu0 0.0
      %797 = vmatprep.subr.mxu0 0.0
      %798 = vmatpush1.msra.mxu0 0.0
      %799 = vmatprep.mubr.f32.mxu0 0.0
      %800 = vmatmul.mubr.f32.gmra.mrb[0].mxu0 %v730
      %v801 = vpop.f32.mrb[0].mxu0
      %v802 = vadd.f32 0.0, %v801
      %v803 = vpop.f32.mrb[0].mxu0
      %804 = vdwg.mxu0
      %s805 = scalar_lea.vmem %s7, 16
      %v806 = vld [vmem:[%s805] sm:$0xff]
      %808 = vset.pattern.permute.xlu0 0
      %809 = vperm.xlu0 %808, %v806
      %v810 = vpop.permute.xlu0 %809
      %v812 = vmul.f32 %v802, %v810
      %s813 = scalar_lea.vmem %s8, 16
      %v814 = vld [vmem:[%s813] sm:$0xff]
      %816 = vset.pattern.permute.xlu0 0
      %817 = vperm.xlu0 %816, %v814
      %v818 = vpop.permute.xlu0 %817
      %v820 = vadd.f32 %v812, %v818
      %v821 = vsub.f32 0.0, %v820
      %v822 = vmul.f32 %v821, 1.442695
      %v823 = vpow.pop %v822
      %v824 = vadd.f32 %v823, 1.0
      %v825 = vrcp.pop %v824
      %v826 = vmul.f32 %v820, %v825
      %v827 = vld [vmem:[%s6] sm:$0xff]
      %829 = vrot.lane.b32.xlu0 %v443, 73
      %v830 = vpop.permute.xlu0 %829
      %832 = vrot.lane.b32.xlu0 %v443, 9
      %v833 = vpop.permute.xlu0 %832
      %v835 = vsel %vm568, %v830, %v833
      %v836 = vsel %vm571, %v835, 0.0
      %838 = vrot.lane.b32.xlu0 %v442, 72
      %v839 = vpop.permute.xlu0 %838
      %841 = vrot.lane.b32.xlu0 %v442, 8
      %v842 = vpop.permute.xlu0 %841
      %v844 = vsel %vm580, %v839, %v842
      %v845 = vsel %vm583, %v844, 0.0
      %846 = vrot.lane.b32.xlu0 %v443, 72
      %v847 = vpop.permute.xlu0 %846
      %849 = vrot.lane.b32.xlu0 %v443, 8
      %v850 = vpop.permute.xlu0 %849
      %v852 = vsel %vm580, %v847, %v850
      %v853 = vsel %vm583, %v852, 0.0
      %855 = vrot.lane.b32.xlu0 %v441, 65
      %v856 = vpop.permute.xlu0 %855
      %858 = vrot.lane.b32.xlu0 %v441, 1
      %v859 = vpop.permute.xlu0 %858
      %v861 = vsel %vm600, %v856, %v859
      %v862 = vsel %vm603, %v861, 0.0
      %863 = vrot.lane.b32.xlu0 %v443, 65
      %v864 = vpop.permute.xlu0 %863
      %866 = vrot.lane.b32.xlu0 %v443, 1
      %v867 = vpop.permute.xlu0 %866
      %v869 = vsel %vm600, %v864, %v867
      %v870 = vsel %vm603, %v869, 0.0
      %v872 = vrot.slane %v845, 4
      %v875 = vrot.slane %v862, 4
      %v877 = vcombine.low %v441, %v441
      %v879 = vcombine.low %v442, %v442
      %v881 = vsel %vm466, %v836, %v872
      %v882 = vsel %vm466, %v853, %v875
      %v883 = vsel %vm466, %v440, %v877
      %v884 = vsel %vm466, %v870, %v879
      %v886 = vsel %vm627, %v827, 0
      %v888 = vsel %vm466, %v443, 0
      %890 = vmatprep.subr.mxu0 0.0
      %891 = vmatpush1.msra.mxu0 %v881
      %892 = vmatprep.subr.mxu0 0.0
      %893 = vmatpush1.msra.mxu0 %v882
      %894 = vmatprep.subr.mxu0 0.0
      %895 = vmatpush1.msra.mxu0 %v883
      %896 = vmatprep.subr.mxu0 0.0
      %897 = vmatpush1.msra.mxu0 %v884
      %898 = vmatprep.subr.mxu0 0.0
      %899 = vmatpush1.msra.mxu0 %v888
      %900 = vmatprep.subr.mxu0 0.0
      %901 = vmatpush1.msra.mxu0 0.0
      %902 = vmatprep.subr.mxu0 0.0
      %903 = vmatpush1.msra.mxu0 0.0
      %904 = vmatprep.subr.mxu0 0.0
      %905 = vmatpush1.msra.mxu0 0.0
      %906 = vmatprep.subr.mxu0 0.0
      %907 = vmatpush1.msra.mxu0 0.0
      %908 = vmatprep.subr.mxu0 0.0
      %909 = vmatpush1.msra.mxu0 0.0
      %910 = vmatprep.subr.mxu0 0.0
      %911 = vmatpush1.msra.mxu0 0.0
      %912 = vmatprep.subr.mxu0 0.0
      %913 = vmatpush1.msra.mxu0 0.0
      %914 = vmatprep.subr.mxu0 0.0
      %915 = vmatpush1.msra.mxu0 0.0
      %916 = vmatprep.subr.mxu0 0.0
      %917 = vmatpush1.msra.mxu0 0.0
      %918 = vmatprep.subr.mxu0 0.0
      %919 = vmatpush1.msra.mxu0 0.0
      %920 = vmatprep.subr.mxu0 0.0
      %921 = vmatpush1.msra.mxu0 0.0
      %922 = vmatprep.subr.mxu0 0.0
      %923 = vmatpush1.msra.mxu0 0.0
      %924 = vmatprep.subr.mxu0 0.0
      %925 = vmatpush1.msra.mxu0 0.0
      %926 = vmatprep.subr.mxu0 0.0
      %927 = vmatpush1.msra.mxu0 0.0
      %928 = vmatprep.subr.mxu0 0.0
      %929 = vmatpush1.msra.mxu0 0.0
      %930 = vmatprep.subr.mxu0 0.0
      %931 = vmatpush1.msra.mxu0 0.0
      %932 = vmatprep.subr.mxu0 0.0
      %933 = vmatpush1.msra.mxu0 0.0
      %934 = vmatprep.subr.mxu0 0.0
      %935 = vmatpush1.msra.mxu0 0.0
      %936 = vmatprep.subr.mxu0 0.0
      %937 = vmatpush1.msra.mxu0 0.0
      %938 = vmatprep.subr.mxu0 0.0
      %939 = vmatpush1.msra.mxu0 0.0
      %940 = vmatprep.subr.mxu0 0.0
      %941 = vmatpush1.msra.mxu0 0.0
      %942 = vmatprep.subr.mxu0 0.0
      %943 = vmatpush1.msra.mxu0 0.0
      %944 = vmatprep.subr.mxu0 0.0
      %945 = vmatpush1.msra.mxu0 0.0
      %946 = vmatprep.subr.mxu0 0.0
      %947 = vmatpush1.msra.mxu0 0.0
      %948 = vmatprep.subr.mxu0 0.0
      %949 = vmatpush1.msra.mxu0 0.0
      %950 = vmatprep.subr.mxu0 0.0
      %951 = vmatpush1.msra.mxu0 0.0
      %952 = vmatprep.subr.mxu0 0.0
      %953 = vmatpush1.msra.mxu0 0.0
      %954 = vmatprep.mubr.f32.mxu0 0.0
      %955 = vmatmul.mubr.f32.gmra.mrb[0].mxu0 %v886
      %v956 = vpop.f32.mrb[0].mxu0
      %v957 = vadd.f32 0.0, %v956
      %v958 = vpop.f32.mrb[0].mxu0
      %959 = vdwg.mxu0
      %s960 = scalar_lea.vmem %s7, 24
      %v961 = vld [vmem:[%s960] sm:$0xff]
      %963 = vset.pattern.permute.xlu0 0
      %964 = vperm.xlu0 %963, %v961
      %v965 = vpop.permute.xlu0 %964
      %v967 = vmul.f32 %v957, %v965
      %s968 = scalar_lea.vmem %s8, 24
      %v969 = vld [vmem:[%s968] sm:$0xff]
      %971 = vset.pattern.permute.xlu0 0
      %972 = vperm.xlu0 %971, %v969
      %v973 = vpop.permute.xlu0 %972
      %v975 = vadd.f32 %v967, %v973
      %v976 = vsub.f32 0.0, %v975
      %v977 = vmul.f32 %v976, 1.442695
      %v978 = vpow.pop %v977
      %v979 = vadd.f32 %v978, 1.0
      %v980 = vrcp.pop %v979
      %v981 = vmul.f32 %v975, %v980
      %v982 = vadd.f32 %v826, %v981
      %983 = vst.msk [vmem:[%s405] sm:$0xff] %vm726, %v982
      %p984 = scmp.lt.s32.totalorder %s22, 1
      %s985 = scalar_select %p984, %s22, 1
      %s986 = smul.addr %s985, 8
      %s987 = scalar_lea.vmem %s9, %s986
      %p988 = scmp.lt.s32.totalorder %s22, 1
      %s989 = scalar_select %p988, %s22, 1
      %s990 = smul.addr %s989, 8
      %s991 = scalar_lea.vmem %s10, %s990
      // Predicated region
      $region57: #{plard_forward.3} parent=55 // pred_check
        %p992 = pneg %p244
      $region58: #{plard_forward.3} parent=55 // pred_check_branch
        %994 = sbr.rel (%p992) target = $region60
      $region59: #{plard_forward.3} parent=55 // pred_region
        _
      $region60: #{plard_forward.3} parent=55 // pred_fallthru
        _
      // Predicated region
      $region61: #{plard_forward.3} parent=55 // pred_check
        %p995 = pneg %p270
      $region62: #{plard_forward.3} parent=55 // pred_check_branch
        %997 = sbr.rel (%p995) target = $region64
      $region63: #{plard_forward.3} parent=55 // pred_region
        _
      $region64: #{plard_forward.3} parent=55 // pred_fallthru
        _
    $region56: #{plard_forward.3} parent=5 // pred_fallthru
      _
    %p998 = scmp.le.s32.totalorder 2, %s17
    // Predicated region
    $region65: #{plard_forward.3} parent=5 // pred_check
      %p999 = pneg %p998
    $region66: #{plard_forward.3} parent=5 // pred_check_branch
      %1001 = sbr.rel (%p999) target = $region68
    $region67: #{plard_forward.3} parent=5 // pred_region
      %s1002 = ssub.s32 %s17, 2
      // Predicated region
      $region69: #{plard_forward.3} parent=67 // pred_check
        %p1003 = pneg %p250
      $region70: #{plard_forward.3} parent=67 // pred_check_branch
        %1005 = sbr.rel (%p1003) target = $region72
      $region71: #{plard_forward.3} parent=67 // pred_region
        %p1006 = scmp.lt.s32.totalorder %s23, 1
        %s1007 = scalar_select %p1006, %s23, 1
        %s1008 = smul.addr %s1007, 8
        %s1009 = scalar_lea.vmem %s9, %s1008
      $region72: #{plard_forward.3} parent=67 // pred_fallthru
        _
      // Predicated region
      $region73: #{plard_forward.3} parent=67 // pred_check
        %p1010 = pneg %p276
      $region74: #{plard_forward.3} parent=67 // pred_check_branch
        %1012 = sbr.rel (%p1010) target = $region76
      $region75: #{plard_forward.3} parent=67 // pred_region
        %p1013 = scmp.lt.s32.totalorder %s23, 1
        %s1014 = scalar_select %p1013, %s23, 1
        %s1015 = smul.addr %s1014, 8
        %s1016 = scalar_lea.vmem %s10, %s1015
      $region76: #{plard_forward.3} parent=67 // pred_fallthru
        _
    $region68: #{plard_forward.3} parent=5 // pred_fallthru
      _
  $region6: #{plard_forward.3} parent=0 // loop_footer
    %s21 = sadd.s32 1, %s17
  $region7: #{plard_forward.3} parent=0 // loop_footer_branch
    %16 = sbr.rel target = $region3
  $region8: #{plard_forward.3} parent=0 // loop_exit
    _

</llo_original>
